<compile_context>
chip_gen: v7x
topology: tpu7x:2x2x1
jax: 0.10.0
libtpu: 0.0.40
codegen_flags: <defaults>
</compile_context>

<pallas_src>
import functools

import jax
import jax.numpy as jnp
import numpy as np
from jax.experimental import pallas as pl
from jax.experimental.pallas import tpu as pltpu


# ---------------------------------------------------------------------------
# In-kernel per-row boundary flags (replaces the host-built lane-padded masks).
# ---------------------------------------------------------------------------
def _edge_masks(rows, H, W, dtype):
    hw = H * W
    row = jax.lax.broadcasted_iota(jnp.int32, (rows, 1), 0)
    pix = row % hw                                  # pixel index inside its image
    col = row % W                                   # column index (hw % W == 0)
    m_up = (pix >= W).astype(dtype)                 # dh == -1 reads row above
    m_dn = (pix < hw - W).astype(dtype)             # dh == +1 reads row below
    m_lf = (col >= 1).astype(dtype)                 # dw == -1 reads column left
    m_rt = (col < W - 1).astype(dtype)              # dw == +1 reads column right
    return m_up, m_dn, m_lf, m_rt


# ---------------------------------------------------------------------------
# Shared in-kernel compute: residual r and pre-BN y for one tile of images.
# ---------------------------------------------------------------------------
def _residual_and_y(x_ref, w1_ref, wr_ref, w3_ref, b1_ref, bdw_ref, b3_ref,
                    wdw_ref, *, H, W):
    x = x_ref[...]                                           # (rows, Cin)

    # Both 1x1 convs reuse the same loaded x vregs (MXU matmuls, f32 acc).
    r = jnp.dot(x, wr_ref[...], preferred_element_type=jnp.float32)
    t = jnp.dot(x, w1_ref[...], preferred_element_type=jnp.float32) + b1_ref[...]

    rows = t.shape[0]
    m_up, m_dn, m_lf, m_rt = _edge_masks(rows, H, W, t.dtype)
    masks = {(-1, -1): m_up * m_lf, (-1, 0): m_up, (-1, 1): m_up * m_rt,
             (0, -1): m_lf,                        (0, 1): m_rt,
             (1, -1): m_dn * m_lf,  (1, 0): m_dn,  (1, 1): m_dn * m_rt}
    wdw = wdw_ref[...]                                       # (9, Cm), loaded once

    # Depthwise 3x3 (padding=1) as 9 taps: XLU roll + boundary mask + VPU FMA.
    # Row offset of tap (dh, dw) in the flat (b, h, w)-major layout is dh*W+dw;
    # out-of-image reads (including wrap-around) are masked to zero, exactly
    # reproducing the conv's zero padding.
    acc = t * wdw[4:5, :]                                    # center tap, no mask
    k = 0
    for dh in (-1, 0, 1):
        for dw in (-1, 0, 1):
            if dh == 0 and dw == 0:
                k += 1
                continue
            shift = (-(dh * W + dw)) % rows                  # static, >= 0
            shifted = pltpu.roll(t, shift, 0)                # == t[row + dh*W + dw]
            acc = acc + (shifted * masks[(dh, dw)]) * wdw[k:k + 1, :]
            k += 1

    u = jnp.maximum(acc + bdw_ref[...], 0.0)                 # bias + ReLU
    y = jnp.dot(u.astype(w3_ref.dtype), w3_ref[...],
                preferred_element_type=jnp.float32) + b3_ref[...]
    return r, y


# ---------------------------------------------------------------------------
# Pass 1: per-tile partial sums needed for both (training-mode) BatchNorms.
# ---------------------------------------------------------------------------
def _stats_kernel(x_ref, w1_ref, wr_ref, w3_ref, b1_ref, bdw_ref, b3_ref,
                  wdw_ref, stats_ref, *, H, W):
    r, y = _residual_and_y(x_ref, w1_ref, wr_ref, w3_ref, b1_ref, bdw_ref,
                           b3_ref, wdw_ref, H=H, W=W)
    # Individual row stores — no sublane concat/relayout before the store.
    # TODO(synk): subtract a per-channel shift before accumulating moments if
    # channel means are ever large vs. std (cancellation in E[y^2]-E[y]^2).
    stats_ref[0:1, :] = jnp.sum(y, axis=0, keepdims=True)
    stats_ref[1:2, :] = jnp.sum(y * y, axis=0, keepdims=True)
    stats_ref[2:3, :] = jnp.sum(r, axis=0, keepdims=True)
    stats_ref[3:4, :] = jnp.sum(r * r, axis=0, keepdims=True)
    stats_ref[4:5, :] = jnp.sum(r * y, axis=0, keepdims=True)


# ---------------------------------------------------------------------------
# Pass 2: recompute r, y with the BN affine pre-folded into wr/w3/b3; store r+y.
# ---------------------------------------------------------------------------
def _out_kernel(x_ref, w1_ref, wr_ref, w3_ref, b1_ref, bdw_ref, b3_ref,
                wdw_ref, out_ref, *, H, W):
    r, y = _residual_and_y(x_ref, w1_ref, wr_ref, w3_ref, b1_ref, bdw_ref,
                           b3_ref, wdw_ref, H=H, W=W)
    out_ref[...] = (r + y).astype(out_ref.dtype)


# ---------------------------------------------------------------------------
# Wrapper
# ---------------------------------------------------------------------------
def channel_embed_forward(x, params, H, W, *, mxu_dtype=jnp.bfloat16,
                          out_dtype=jnp.bfloat16, eps=1e-5,
                          images_per_tile=None, output_layout="NCHW"):
    """x: (B, N, Cin) tokens with N == H*W.

    Returns (B, Cout, H, W) for output_layout="NCHW" (matches the PyTorch
    module) or (B, H, W, Cout) for "NHWC" (skips the layout transpose).
    """
    B, N, Cin = x.shape
    assert N == H * W
    Cm = params["w1"].shape[1]
    Cout = params["wr"].shape[1]
    hw = H * W
    rows_total = B * hw
    f32 = jnp.float32

    # ---- host-side layout / dtype prep (no compute hoisted) ----------------
    x_rows = x.reshape(rows_total, Cin).astype(mxu_dtype)
    w1 = params["w1"].astype(mxu_dtype)
    wr = params["wr"].astype(mxu_dtype)
    w3 = params["w3"].astype(mxu_dtype)
    b1 = params["b1"].astype(f32)
    bdw = params["bdw"].astype(f32)
    b3 = params["b3"].astype(f32)
    wdw = params["wdw"].astype(f32)
    weight_args = (w1, wr, w3, b1, bdw, b3, wdw)
    weight_bytes = sum(int(a.size) * a.dtype.itemsize for a in weight_args)

    # ---- VMEM-aware tile choice: whole images per grid step ----------------
    try:
        vmem_cap = int(pltpu.get_tpu_info().vmem_capacity_bytes)
    except Exception:
        vmem_cap = 64 * 1024 * 1024                          # v7x per-TC worst case
    vmem_limit = int(0.75 * vmem_cap)                        # ~96 MiB v5e/v6e, ~48 MiB v7x

    x_isz = np.dtype(mxu_dtype).itemsize
    o_isz = np.dtype(out_dtype).itemsize
    # Per image: double-buffered pipelined x / out blocks + in-kernel f32 temps
    # (t, shifted, acc, u ~ 4*Cm; r, y ~ 2*Cout).
    per_img = hw * (2 * Cin * x_isz + 2 * Cout * o_isz + (4 * Cm + 2 * Cout) * 4)
    avail = vmem_limit - 2 * weight_bytes - (2 << 20)        # weights (2 bufs) + headroom
    tile_budget = max(int(0.75 * max(avail, 0)), per_img)
    sub_align = 8 if (x_isz >= 4 and o_isz >= 4) else 16     # sublane packing for bf16

    if images_per_tile is not None:
        bt = max(1, min(int(images_per_tile), B))
        while bt > 1 and (B % bt or (bt * hw) % sub_align):
            bt -= 1
        if B % bt or (bt * hw) % sub_align:
            bt = B                                           # full-block exemption
    else:
        cap = max(1, min(B, tile_budget // max(per_img, 1)))
        if B > 1:
            cap = min(cap, B // 2)       # >= 2 grid steps: pipelining + dual-TC on v7x
        bt = None
        for cand in range(cap, 0, -1):
            if B % cand == 0 and (cand * hw) % sub_align == 0:
                bt = cand
                break
        if bt is None:
            # TODO(synk): zero-pad rows instead of this un-pipelined full block.
            bt = B
    rows_tile = bt * hw
    num_tiles = B // bt

    # ---- specs --------------------------------------------------------------
    def const2(shape):
        # Weights / biases stay VMEM-resident across grid steps.
        return pl.BlockSpec(shape, lambda i: (0, 0))

    x_spec = pl.BlockSpec((rows_tile, Cin), lambda i: (i, 0))
    weight_specs = [
        const2((Cin, Cm)), const2((Cin, Cout)), const2((Cm, Cout)),
        const2((1, Cm)), const2((1, Cm)), const2((1, Cout)), const2((9, Cm)),
    ]

    matmul_flops = 2 * rows_total * (Cin * Cm + Cin * Cout + Cm * Cout)
    dw_flops = 2 * 9 * rows_total * Cm
    in_bytes = int(x_rows.size) * x_rows.dtype.itemsize + weight_bytes
    cparams = pltpu.CompilerParams(
        dimension_semantics=("parallel",),
        vmem_limit_bytes=vmem_limit)

    # ---- pass 1: per-tile partial BN statistics -----------------------------
    stats = pl.pallas_call(
        functools.partial(_stats_kernel, H=H, W=W),
        out_shape=jax.ShapeDtypeStruct((num_tiles, 5, Cout), f32),
        grid=(num_tiles,),
        in_specs=[x_spec] + weight_specs,
        out_specs=pl.BlockSpec((None, 5, Cout), lambda i: (i, 0, 0)),
        compiler_params=cparams,
        cost_estimate=pl.CostEstimate(
            flops=matmul_flops + dw_flops, transcendentals=0,
            bytes_accessed=in_bytes + num_tiles * 5 * Cout * 4),
    )(x_rows, *weight_args)

    # ---- combine: fold both training-mode BatchNorms into pass-2 weights ----
    s = jnp.sum(stats, axis=0)                               # (5, Cout) global sums
    n = float(rows_total)
    e_y, e_y2, e_r, e_r2, e_ry = s[0] / n, s[1] / n, s[2] / n, s[3] / n, s[4] / n
    g1, be1 = params["g1"][0].astype(f32), params["be1"][0].astype(f32)
    g2, be2 = params["g2"][0].astype(f32), params["be2"][0].astype(f32)

    var_y = jnp.maximum(e_y2 - e_y * e_y, 0.0)               # BN1 batch stats
    a1 = g1 * jax.lax.rsqrt(var_y + eps)
    c1 = be1 - a1 * e_y                                      # bn1(y) = a1*y + c1
    e_s = e_r + a1 * e_y + c1                                # s = r + bn1(y)
    e_s2 = (e_r2 + a1 * a1 * e_y2 + c1 * c1
            + 2.0 * a1 * e_ry + 2.0 * c1 * e_r + 2.0 * a1 * c1 * e_y)
    var_s = jnp.maximum(e_s2 - e_s * e_s, 0.0)
    a2 = g2 * jax.lax.rsqrt(var_s + eps)
    c2 = be2 - a2 * e_s                                      # bn2(s) = a2*s + c2

    # out = a2*r + (a2*a1)*y + (a2*c1 + c2): folded into wr / w3 / b3 so pass 2
    # just stores r + y.
    wr2 = (params["wr"].astype(f32) * a2[None, :]).astype(mxu_dtype)
    w32 = (params["w3"].astype(f32) * (a2 * a1)[None, :]).astype(mxu_dtype)
    b32 = ((a2 * a1) * params["b3"][0].astype(f32) + a2 * c1 + c2).reshape(1, Cout)
    pass2_args = (w1, wr2, w32, b1, bdw, b32.astype(f32), wdw)

    # ---- pass 2: recompute r, y per tile and write the normalized output ----
    out_rows = pl.pallas_call(
        functools.partial(_out_kernel, H=H, W=W),
        out_shape=jax.ShapeDtypeStruct((rows_total, Cout), out_dtype),
        grid=(num_tiles,),
        in_specs=[x_spec] + weight_specs,
        out_specs=pl.BlockSpec((rows_tile, Cout), lambda i: (i, 0)),
        compiler_params=cparams,
        cost_estimate=pl.CostEstimate(
            flops=matmul_flops + dw_flops, transcendentals=0,
            bytes_accessed=in_bytes + rows_total * Cout * o_isz),
    )(x_rows, *pass2_args)

    out_nhwc = out_rows.reshape(B, H, W, Cout)
    if output_layout == "NHWC":
        return out_nhwc
    # TODO(synk): emit NCHW directly from pass 2 to remove this extra HBM
    # round-trip (it now moves bf16, i.e. half the bytes of rev 2).
    return out_nhwc.transpose(0, 3, 1, 2)


# ---------------------------------------------------------------------------
# Pure-JAX reference mirroring the PyTorch semantics (NHWC formulation).
# ---------------------------------------------------------------------------
def reference_forward(x, params, H, W, eps=1e-5):
    B, N, Cin = x.shape
    xi = x.reshape(B, H, W, Cin).astype(jnp.float32)
    residual = jnp.einsum("bhwc,cd->bhwd", xi, params["wr"])
    t = jnp.einsum("bhwc,cd->bhwd", xi, params["w1"]) + params["b1"][0]
    Cm = t.shape[-1]
    tp = jnp.pad(t, ((0, 0), (1, 1), (1, 1), (0, 0)))
    wdw = params["wdw"].reshape(3, 3, Cm)
    acc = jnp.zeros_like(t)
    for dh in range(3):
        for dw in range(3):
            acc = acc + tp[:, dh:dh + H, dw:dw + W, :] * wdw[dh, dw]
    acc = jnp.maximum(acc + params["bdw"][0], 0.0)
    y = jnp.einsum("bhwc,cd->bhwd", acc, params["w3"]) + params["b3"][0]

    def bn(v, g, b):
        m = v.mean(axis=(0, 1, 2), keepdims=True)
        var = ((v - m) ** 2).mean(axis=(0, 1, 2), keepdims=True)
        return (v - m) * jax.lax.rsqrt(var + eps) * g + b

    y = bn(y, params["g1"][0], params["be1"][0])
    s = residual + y
    out = bn(s, params["g2"][0], params["be2"][0])
    return out.transpose(0, 3, 1, 2)


def make_params(key, in_channels, out_channels, reduction=1):
    Cm = out_channels // reduction
    ks = jax.random.split(key, 8)
    f32 = jnp.float32
    return {
        # residual: Conv2d(Cin, Cout, 1, bias=False); weight stored as (Cin, Cout)
        "wr": 0.1 * jax.random.normal(ks[0], (in_channels, out_channels), f32),
        # channel_embed[0]: Conv2d(Cin, Cm, 1, bias=True)
        "w1": 0.1 * jax.random.normal(ks[1], (in_channels, Cm), f32),
        "b1": 0.1 * jax.random.normal(ks[2], (1, Cm), f32),
        # channel_embed[1]: depthwise Conv2d(Cm, Cm, 3, groups=Cm); (9, Cm), k=3*kh+kw
        "wdw": 0.1 * jax.random.normal(ks[3], (9, Cm), f32),
        "bdw": 0.1 * jax.random.normal(ks[4], (1, Cm), f32),
        # channel_embed[3]: Conv2d(Cm, Cout, 1, bias=True)
        "w3": 0.1 * jax.random.normal(ks[5], (Cm, out_channels), f32),
        "b3": 0.1 * jax.random.normal(ks[6], (1, out_channels), f32),
        # BatchNorm affine params (PyTorch init: weight=1, bias=0)
        "g1": jnp.ones((1, out_channels), f32),
        "be1": jnp.zeros((1, out_channels), f32),
        "g2": jnp.ones((1, out_channels), f32),
        "be2": jnp.zeros((1, out_channels), f32),
    }


if __name__ == "__main__":
    B, H, W = 2, 16, 16
    in_channels, out_channels, reduction = 16, 32, 1
    N = H * W

    key = jax.random.PRNGKey(0)
    kx, kp = jax.random.split(key)
    x = jax.random.normal(kx, (B, N, in_channels), jnp.float32)
    params = make_params(kp, in_channels, out_channels, reduction)

    ref = reference_forward(x, params, H, W)

    # f32 MXU + f32 output: tight structural check (roll direction, in-kernel
    # iota masks, tap indexing, fused-BN weight folding).
    out_f32 = jax.block_until_ready(
        channel_embed_forward(x, params, H, W,
                              mxu_dtype=jnp.float32, out_dtype=jnp.float32))
    assert out_f32.shape == (B, out_channels, H, W)
    np.testing.assert_allclose(np.asarray(out_f32), np.asarray(ref),
                               rtol=2e-3, atol=2e-3)

    # Default perf configuration: bf16 MXU operands, bf16 output.  Looser
    # tolerance only accounts for bf16 rounding — structure is verified above.
    out_bf16 = jax.block_until_ready(channel_embed_forward(x, params, H, W))
    assert out_bf16.shape == (B, out_channels, H, W)
    assert out_bf16.dtype == jnp.bfloat16
    np.testing.assert_allclose(np.asarray(out_bf16.astype(jnp.float32)),
                               np.asarray(ref), rtol=1e-1, atol=1e-1)

    print("KERNEL_OK")
</pallas_src>

<mosaic_0001>
module attributes {stable_mosaic.version = 11 : i64} {
  func.func @_stats_kernel(%arg0: i32, %arg1: memref<256x16xf32, #tpu.memory_space<vmem>>, %arg2: memref<16x32xf32, #tpu.memory_space<vmem>>, %arg3: memref<16x32xf32, #tpu.memory_space<vmem>>, %arg4: memref<32x32xf32, #tpu.memory_space<vmem>>, %arg5: memref<1x32xf32, #tpu.memory_space<vmem>>, %arg6: memref<1x32xf32, #tpu.memory_space<vmem>>, %arg7: memref<1x32xf32, #tpu.memory_space<vmem>>, %arg8: memref<9x32xf32, #tpu.memory_space<vmem>>, %arg9: memref<1x5x32xf32, #tpu.memory_space<vmem>>) attributes {dimension_semantics = [#tpu.dimension_semantics<parallel>], iteration_bounds = array<i64: 2>, scalar_prefetch = 0 : i64, scratch_operands = 0 : i64, tpu.core_type = #tpu.core_type<tc>, window_params = [{transform_indices = @transform_0, window_bounds = array<i64: 256, 16>}, {pipeline_mode = #tpu.pipeline_mode<synchronous>, transform_indices = @transform_1, window_bounds = array<i64: 16, 32>}, {pipeline_mode = #tpu.pipeline_mode<synchronous>, transform_indices = @transform_2, window_bounds = array<i64: 16, 32>}, {pipeline_mode = #tpu.pipeline_mode<synchronous>, transform_indices = @transform_3, window_bounds = array<i64: 32, 32>}, {pipeline_mode = #tpu.pipeline_mode<synchronous>, transform_indices = @transform_4, window_bounds = array<i64: 1, 32>}, {pipeline_mode = #tpu.pipeline_mode<synchronous>, transform_indices = @transform_5, window_bounds = array<i64: 1, 32>}, {pipeline_mode = #tpu.pipeline_mode<synchronous>, transform_indices = @transform_6, window_bounds = array<i64: 1, 32>}, {pipeline_mode = #tpu.pipeline_mode<synchronous>, transform_indices = @transform_7, window_bounds = array<i64: 9, 32>}, {transform_indices = @transform_8, window_bounds = array<i64: 1, 5, 32>}]} {
    %c0 = arith.constant 0 : index
    %c0_0 = arith.constant 0 : index
    %0 = vector.load %arg1[%c0, %c0_0] : memref<256x16xf32, #tpu.memory_space<vmem>>, vector<256x16xf32>
    %c0_1 = arith.constant 0 : index
    %c0_2 = arith.constant 0 : index
    %1 = vector.load %arg3[%c0_1, %c0_2] : memref<16x32xf32, #tpu.memory_space<vmem>>, vector<16x32xf32>
    %cst = arith.constant dense<0.000000e+00> : vector<256x32xf32>
    %2 = tpu.matmul %0, %1, %cst {dimension_numbers = #tpu.dot_dimension_numbers<[1], [0], [0], [1], [0, 0, 1, 1], [], []>} : vector<256x16xf32>, vector<16x32xf32>, vector<256x32xf32> -> vector<256x32xf32>
    %c0_3 = arith.constant 0 : index
    %c0_4 = arith.constant 0 : index
    %3 = vector.load %arg2[%c0_3, %c0_4] : memref<16x32xf32, #tpu.memory_space<vmem>>, vector<16x32xf32>
    %cst_5 = arith.constant dense<0.000000e+00> : vector<256x32xf32>
    %4 = tpu.matmul %0, %3, %cst_5 {dimension_numbers = #tpu.dot_dimension_numbers<[1], [0], [0], [1], [0, 0, 1, 1], [], []>} : vector<256x16xf32>, vector<16x32xf32>, vector<256x32xf32> -> vector<256x32xf32>
    %c0_6 = arith.constant 0 : index
    %c0_7 = arith.constant 0 : index
    %5 = vector.load %arg5[%c0_6, %c0_7] : memref<1x32xf32, #tpu.memory_space<vmem>>, vector<1x32xf32>
    %6 = vector.broadcast %5 : vector<1x32xf32> to vector<256x32xf32>
    %7 = arith.addf %4, %6 : vector<256x32xf32>
    %8 = tpu.iota {dimensions = array<i32: 0>} : vector<256x1xi32>
    %c256_i32 = arith.constant 256 : i32
    %c0_i32 = arith.constant 0 : i32
    %9 = arith.cmpi eq, %c256_i32, %c0_i32 : i32
    %c1_i32 = arith.constant 1 : i32
    %10 = arith.select %9, %c1_i32, %c256_i32 : i32
    %11 = vector.broadcast %10 : i32 to vector<256x1xi32>
    %12 = arith.remsi %8, %11 : vector<256x1xi32>
    %c0_i32_8 = arith.constant 0 : i32
    %13 = vector.broadcast %c0_i32_8 : i32 to vector<256x1xi32>
    %14 = arith.cmpi ne, %12, %13 : vector<256x1xi32>
    %c0_i32_9 = arith.constant 0 : i32
    %15 = vector.broadcast %c0_i32_9 : i32 to vector<256x1xi32>
    %16 = arith.cmpi slt, %12, %15 : vector<256x1xi32>
    %c0_i32_10 = arith.constant 0 : i32
    %17 = arith.cmpi slt, %10, %c0_i32_10 : i32
    %18 = vector.broadcast %17 : i1 to vector<256x1xi1>
    %19 = vector.broadcast %18 : vector<256x1xi1> to vector<256x1xi1>
    %20 = arith.xori %16, %19 : vector<256x1xi1>
    %21 = arith.andi %20, %14 : vector<256x1xi1>
    %22 = vector.broadcast %10 : i32 to vector<256x1xi32>
    %23 = arith.addi %12, %22 : vector<256x1xi32>
    %24 = arith.select %21, %23, %12 : vector<256x1xi1>, vector<256x1xi32>
    %c16_i32 = arith.constant 16 : i32
    %c0_i32_11 = arith.constant 0 : i32
    %25 = arith.cmpi eq, %c16_i32, %c0_i32_11 : i32
    %c1_i32_12 = arith.constant 1 : i32
    %26 = arith.select %25, %c1_i32_12, %c16_i32 : i32
    %27 = vector.broadcast %26 : i32 to vector<256x1xi32>
    %28 = arith.remsi %8, %27 : vector<256x1xi32>
    %c0_i32_13 = arith.constant 0 : i32
    %29 = vector.broadcast %c0_i32_13 : i32 to vector<256x1xi32>
    %30 = arith.cmpi ne, %28, %29 : vector<256x1xi32>
    %c0_i32_14 = arith.constant 0 : i32
    %31 = vector.broadcast %c0_i32_14 : i32 to vector<256x1xi32>
    %32 = arith.cmpi slt, %28, %31 : vector<256x1xi32>
    %c0_i32_15 = arith.constant 0 : i32
    %33 = arith.cmpi slt, %26, %c0_i32_15 : i32
    %34 = vector.broadcast %33 : i1 to vector<256x1xi1>
    %35 = vector.broadcast %34 : vector<256x1xi1> to vector<256x1xi1>
    %36 = arith.xori %32, %35 : vector<256x1xi1>
    %37 = arith.andi %36, %30 : vector<256x1xi1>
    %38 = vector.broadcast %26 : i32 to vector<256x1xi32>
    %39 = arith.addi %28, %38 : vector<256x1xi32>
    %40 = arith.select %37, %39, %28 : vector<256x1xi1>, vector<256x1xi32>
    %c16_i32_16 = arith.constant 16 : i32
    %41 = vector.broadcast %c16_i32_16 : i32 to vector<256x1xi32>
    %42 = arith.cmpi sge, %24, %41 : vector<256x1xi32>
    %43 = arith.extui %42 : vector<256x1xi1> to vector<256x1xi32>
    %44 = arith.sitofp %43 : vector<256x1xi32> to vector<256x1xf32>
    %c240_i32 = arith.constant 240 : i32
    %45 = vector.broadcast %c240_i32 : i32 to vector<256x1xi32>
    %46 = arith.cmpi slt, %24, %45 : vector<256x1xi32>
    %47 = arith.extui %46 : vector<256x1xi1> to vector<256x1xi32>
    %48 = arith.sitofp %47 : vector<256x1xi32> to vector<256x1xf32>
    %c1_i32_17 = arith.constant 1 : i32
    %49 = vector.broadcast %c1_i32_17 : i32 to vector<256x1xi32>
    %50 = arith.cmpi sge, %40, %49 : vector<256x1xi32>
    %51 = arith.extui %50 : vector<256x1xi1> to vector<256x1xi32>
    %52 = arith.sitofp %51 : vector<256x1xi32> to vector<256x1xf32>
    %c15_i32 = arith.constant 15 : i32
    %53 = vector.broadcast %c15_i32 : i32 to vector<256x1xi32>
    %54 = arith.cmpi slt, %40, %53 : vector<256x1xi32>
    %55 = arith.extui %54 : vector<256x1xi1> to vector<256x1xi32>
    %56 = arith.sitofp %55 : vector<256x1xi32> to vector<256x1xf32>
    %57 = arith.mulf %44, %52 : vector<256x1xf32>
    %58 = arith.mulf %44, %56 : vector<256x1xf32>
    %59 = arith.mulf %48, %52 : vector<256x1xf32>
    %60 = arith.mulf %48, %56 : vector<256x1xf32>
    %c0_18 = arith.constant 0 : index
    %c0_19 = arith.constant 0 : index
    %61 = vector.load %arg8[%c0_18, %c0_19] : memref<9x32xf32, #tpu.memory_space<vmem>>, vector<9x32xf32>
    %62 = vector.extract_strided_slice %61 {offsets = [4, 0], sizes = [1, 32], strides = [1, 1]} : vector<9x32xf32> to vector<1x32xf32>
    %63 = vector.broadcast %62 : vector<1x32xf32> to vector<256x32xf32>
    %64 = arith.mulf %7, %63 : vector<256x32xf32>
    %c17_i32 = arith.constant 17 : i32
    %65 = tpu.dynamic_rotate %7 by %c17_i32 dim 0 : vector<256x32xf32>, i32 -> vector<256x32xf32>
    %66 = vector.broadcast %57 : vector<256x1xf32> to vector<256x32xf32>
    %67 = arith.mulf %65, %66 : vector<256x32xf32>
    %68 = vector.extract_strided_slice %61 {offsets = [0, 0], sizes = [1, 32], strides = [1, 1]} : vector<9x32xf32> to vector<1x32xf32>
    %69 = vector.broadcast %68 : vector<1x32xf32> to vector<256x32xf32>
    %70 = arith.mulf %67, %69 : vector<256x32xf32>
    %71 = arith.addf %64, %70 : vector<256x32xf32>
    %c16_i32_20 = arith.constant 16 : i32
    %72 = tpu.dynamic_rotate %7 by %c16_i32_20 dim 0 : vector<256x32xf32>, i32 -> vector<256x32xf32>
    %73 = vector.broadcast %44 : vector<256x1xf32> to vector<256x32xf32>
    %74 = arith.mulf %72, %73 : vector<256x32xf32>
    %75 = vector.extract_strided_slice %61 {offsets = [1, 0], sizes = [1, 32], strides = [1, 1]} : vector<9x32xf32> to vector<1x32xf32>
    %76 = vector.broadcast %75 : vector<1x32xf32> to vector<256x32xf32>
    %77 = arith.mulf %74, %76 : vector<256x32xf32>
    %78 = arith.addf %71, %77 : vector<256x32xf32>
    %c15_i32_21 = arith.constant 15 : i32
    %79 = tpu.dynamic_rotate %7 by %c15_i32_21 dim 0 : vector<256x32xf32>, i32 -> vector<256x32xf32>
    %80 = vector.broadcast %58 : vector<256x1xf32> to vector<256x32xf32>
    %81 = arith.mulf %79, %80 : vector<256x32xf32>
    %82 = vector.extract_strided_slice %61 {offsets = [2, 0], sizes = [1, 32], strides = [1, 1]} : vector<9x32xf32> to vector<1x32xf32>
    %83 = vector.broadcast %82 : vector<1x32xf32> to vector<256x32xf32>
    %84 = arith.mulf %81, %83 : vector<256x32xf32>
    %85 = arith.addf %78, %84 : vector<256x32xf32>
    %c1_i32_22 = arith.constant 1 : i32
    %86 = tpu.dynamic_rotate %7 by %c1_i32_22 dim 0 : vector<256x32xf32>, i32 -> vector<256x32xf32>
    %87 = vector.broadcast %52 : vector<256x1xf32> to vector<256x32xf32>
    %88 = arith.mulf %86, %87 : vector<256x32xf32>
    %89 = vector.extract_strided_slice %61 {offsets = [3, 0], sizes = [1, 32], strides = [1, 1]} : vector<9x32xf32> to vector<1x32xf32>
    %90 = vector.broadcast %89 : vector<1x32xf32> to vector<256x32xf32>
    %91 = arith.mulf %88, %90 : vector<256x32xf32>
    %92 = arith.addf %85, %91 : vector<256x32xf32>
    %c255_i32 = arith.constant 255 : i32
    %93 = tpu.dynamic_rotate %7 by %c255_i32 dim 0 : vector<256x32xf32>, i32 -> vector<256x32xf32>
    %94 = vector.broadcast %56 : vector<256x1xf32> to vector<256x32xf32>
    %95 = arith.mulf %93, %94 : vector<256x32xf32>
    %96 = vector.extract_strided_slice %61 {offsets = [5, 0], sizes = [1, 32], strides = [1, 1]} : vector<9x32xf32> to vector<1x32xf32>
    %97 = vector.broadcast %96 : vector<1x32xf32> to vector<256x32xf32>
    %98 = arith.mulf %95, %97 : vector<256x32xf32>
    %99 = arith.addf %92, %98 : vector<256x32xf32>
    %c241_i32 = arith.constant 241 : i32
    %100 = tpu.dynamic_rotate %7 by %c241_i32 dim 0 : vector<256x32xf32>, i32 -> vector<256x32xf32>
    %101 = vector.broadcast %59 : vector<256x1xf32> to vector<256x32xf32>
    %102 = arith.mulf %100, %101 : vector<256x32xf32>
    %103 = vector.extract_strided_slice %61 {offsets = [6, 0], sizes = [1, 32], strides = [1, 1]} : vector<9x32xf32> to vector<1x32xf32>
    %104 = vector.broadcast %103 : vector<1x32xf32> to vector<256x32xf32>
    %105 = arith.mulf %102, %104 : vector<256x32xf32>
    %106 = arith.addf %99, %105 : vector<256x32xf32>
    %c240_i32_23 = arith.constant 240 : i32
    %107 = tpu.dynamic_rotate %7 by %c240_i32_23 dim 0 : vector<256x32xf32>, i32 -> vector<256x32xf32>
    %108 = vector.broadcast %48 : vector<256x1xf32> to vector<256x32xf32>
    %109 = arith.mulf %107, %108 : vector<256x32xf32>
    %110 = vector.extract_strided_slice %61 {offsets = [7, 0], sizes = [1, 32], strides = [1, 1]} : vector<9x32xf32> to vector<1x32xf32>
    %111 = vector.broadcast %110 : vector<1x32xf32> to vector<256x32xf32>
    %112 = arith.mulf %109, %111 : vector<256x32xf32>
    %113 = arith.addf %106, %112 : vector<256x32xf32>
    %c239_i32 = arith.constant 239 : i32
    %114 = tpu.dynamic_rotate %7 by %c239_i32 dim 0 : vector<256x32xf32>, i32 -> vector<256x32xf32>
    %115 = vector.broadcast %60 : vector<256x1xf32> to vector<256x32xf32>
    %116 = arith.mulf %114, %115 : vector<256x32xf32>
    %117 = vector.extract_strided_slice %61 {offsets = [8, 0], sizes = [1, 32], strides = [1, 1]} : vector<9x32xf32> to vector<1x32xf32>
    %118 = vector.broadcast %117 : vector<1x32xf32> to vector<256x32xf32>
    %119 = arith.mulf %116, %118 : vector<256x32xf32>
    %120 = arith.addf %113, %119 : vector<256x32xf32>
    %c0_24 = arith.constant 0 : index
    %c0_25 = arith.constant 0 : index
    %121 = vector.load %arg6[%c0_24, %c0_25] : memref<1x32xf32, #tpu.memory_space<vmem>>, vector<1x32xf32>
    %122 = vector.broadcast %121 : vector<1x32xf32> to vector<256x32xf32>
    %123 = arith.addf %120, %122 : vector<256x32xf32>
    %cst_26 = arith.constant 0.000000e+00 : f32
    %124 = vector.broadcast %cst_26 : f32 to vector<256x32xf32>
    %125 = arith.maximumf %123, %124 : vector<256x32xf32>
    %c0_27 = arith.constant 0 : index
    %c0_28 = arith.constant 0 : index
    %126 = vector.load %arg4[%c0_27, %c0_28] : memref<32x32xf32, #tpu.memory_space<vmem>>, vector<32x32xf32>
    %cst_29 = arith.constant dense<0.000000e+00> : vector<256x32xf32>
    %127 = tpu.matmul %125, %126, %cst_29 {dimension_numbers = #tpu.dot_dimension_numbers<[1], [0], [0], [1], [0, 0, 1, 1], [], []>} : vector<256x32xf32>, vector<32x32xf32>, vector<256x32xf32> -> vector<256x32xf32>
    %c0_30 = arith.constant 0 : index
    %c0_31 = arith.constant 0 : index
    %128 = vector.load %arg7[%c0_30, %c0_31] : memref<1x32xf32, #tpu.memory_space<vmem>>, vector<1x32xf32>
    %129 = vector.broadcast %128 : vector<1x32xf32> to vector<256x32xf32>
    %130 = arith.addf %127, %129 : vector<256x32xf32>
    %cst_32 = arith.constant dense<0.000000e+00> : vector<32xf32>
    %131 = vector.multi_reduction <add>, %130, %cst_32 [0] : vector<256x32xf32> to vector<32xf32>
    %132 = vector.shape_cast %131 : vector<32xf32> to vector<1x32xf32>
    %c0_33 = arith.constant 0 : index
    %c0_34 = arith.constant 0 : index
    %c0_35 = arith.constant 0 : index
    %133 = vector.load %arg9[%c0_33, %c0_34, %c0_35] : memref<1x5x32xf32, #tpu.memory_space<vmem>>, vector<1x1x32xf32>
    %134 = vector.shape_cast %133 : vector<1x1x32xf32> to vector<1x32xf32>
    %135 = vector.shape_cast %132 : vector<1x32xf32> to vector<1x1x32xf32>
    tpu.vector_store %arg9[%c0_33, %c0_34, %c0_35], %135 {strides = array<i32>} : memref<1x5x32xf32, #tpu.memory_space<vmem>>, vector<1x1x32xf32>,
    %136 = arith.mulf %130, %130 : vector<256x32xf32>
    %cst_36 = arith.constant dense<0.000000e+00> : vector<32xf32>
    %137 = vector.multi_reduction <add>, %136, %cst_36 [0] : vector<256x32xf32> to vector<32xf32>
    %138 = vector.shape_cast %137 : vector<32xf32> to vector<1x32xf32>
    %c0_37 = arith.constant 0 : index
    %c1 = arith.constant 1 : index
    %c0_38 = arith.constant 0 : index
    %139 = vector.load %arg9[%c0_37, %c1, %c0_38] : memref<1x5x32xf32, #tpu.memory_space<vmem>>, vector<1x1x32xf32>
    %140 = vector.shape_cast %139 : vector<1x1x32xf32> to vector<1x32xf32>
    %141 = vector.shape_cast %138 : vector<1x32xf32> to vector<1x1x32xf32>
    tpu.vector_store %arg9[%c0_37, %c1, %c0_38], %141 {strides = array<i32>} : memref<1x5x32xf32, #tpu.memory_space<vmem>>, vector<1x1x32xf32>,
    %cst_39 = arith.constant dense<0.000000e+00> : vector<32xf32>
    %142 = vector.multi_reduction <add>, %2, %cst_39 [0] : vector<256x32xf32> to vector<32xf32>
    %143 = vector.shape_cast %142 : vector<32xf32> to vector<1x32xf32>
    %c0_40 = arith.constant 0 : index
    %c2 = arith.constant 2 : index
    %c0_41 = arith.constant 0 : index
    %144 = vector.load %arg9[%c0_40, %c2, %c0_41] : memref<1x5x32xf32, #tpu.memory_space<vmem>>, vector<1x1x32xf32>
    %145 = vector.shape_cast %144 : vector<1x1x32xf32> to vector<1x32xf32>
    %146 = vector.shape_cast %143 : vector<1x32xf32> to vector<1x1x32xf32>
    tpu.vector_store %arg9[%c0_40, %c2, %c0_41], %146 {strides = array<i32>} : memref<1x5x32xf32, #tpu.memory_space<vmem>>, vector<1x1x32xf32>,
    %147 = arith.mulf %2, %2 : vector<256x32xf32>
    %cst_42 = arith.constant dense<0.000000e+00> : vector<32xf32>
    %148 = vector.multi_reduction <add>, %147, %cst_42 [0] : vector<256x32xf32> to vector<32xf32>
    %149 = vector.shape_cast %148 : vector<32xf32> to vector<1x32xf32>
    %c0_43 = arith.constant 0 : index
    %c3 = arith.constant 3 : index
    %c0_44 = arith.constant 0 : index
    %150 = vector.load %arg9[%c0_43, %c3, %c0_44] : memref<1x5x32xf32, #tpu.memory_space<vmem>>, vector<1x1x32xf32>
    %151 = vector.shape_cast %150 : vector<1x1x32xf32> to vector<1x32xf32>
    %152 = vector.shape_cast %149 : vector<1x32xf32> to vector<1x1x32xf32>
    tpu.vector_store %arg9[%c0_43, %c3, %c0_44], %152 {strides = array<i32>} : memref<1x5x32xf32, #tpu.memory_space<vmem>>, vector<1x1x32xf32>,
    %153 = arith.mulf %2, %130 : vector<256x32xf32>
    %cst_45 = arith.constant dense<0.000000e+00> : vector<32xf32>
    %154 = vector.multi_reduction <add>, %153, %cst_45 [0] : vector<256x32xf32> to vector<32xf32>
    %155 = vector.shape_cast %154 : vector<32xf32> to vector<1x32xf32>
    %c0_46 = arith.constant 0 : index
    %c4 = arith.constant 4 : index
    %c0_47 = arith.constant 0 : index
    %156 = vector.load %arg9[%c0_46, %c4, %c0_47] : memref<1x5x32xf32, #tpu.memory_space<vmem>>, vector<1x1x32xf32>
    %157 = vector.shape_cast %156 : vector<1x1x32xf32> to vector<1x32xf32>
    %158 = vector.shape_cast %155 : vector<1x32xf32> to vector<1x1x32xf32>
    tpu.vector_store %arg9[%c0_46, %c4, %c0_47], %158 {strides = array<i32>} : memref<1x5x32xf32, #tpu.memory_space<vmem>>, vector<1x1x32xf32>,
    return
  }
  func.func @transform_0(%arg0: i32) -> (i32, i32) {
    %c0_i32 = arith.constant 0 : i32
    %c0_i32_0 = arith.constant 0 : i32
    return %arg0, %c0_i32 : i32, i32
  }
  func.func @transform_1(%arg0: i32) -> (i32, i32) {
    %c0_i32 = arith.constant 0 : i32
    %c0_i32_0 = arith.constant 0 : i32
    %c0_i32_1 = arith.constant 0 : i32
    return %c0_i32, %c0_i32_0 : i32, i32
  }
  func.func @transform_2(%arg0: i32) -> (i32, i32) {
    %c0_i32 = arith.constant 0 : i32
    %c0_i32_0 = arith.constant 0 : i32
    %c0_i32_1 = arith.constant 0 : i32
    return %c0_i32, %c0_i32_0 : i32, i32
  }
  func.func @transform_3(%arg0: i32) -> (i32, i32) {
    %c0_i32 = arith.constant 0 : i32
    %c0_i32_0 = arith.constant 0 : i32
    %c0_i32_1 = arith.constant 0 : i32
    return %c0_i32, %c0_i32_0 : i32, i32
  }
  func.func @transform_4(%arg0: i32) -> (i32, i32) {
    %c0_i32 = arith.constant 0 : i32
    %c0_i32_0 = arith.constant 0 : i32
    %c0_i32_1 = arith.constant 0 : i32
    return %c0_i32, %c0_i32_0 : i32, i32
  }
  func.func @transform_5(%arg0: i32) -> (i32, i32) {
    %c0_i32 = arith.constant 0 : i32
    %c0_i32_0 = arith.constant 0 : i32
    %c0_i32_1 = arith.constant 0 : i32
    return %c0_i32, %c0_i32_0 : i32, i32
  }
  func.func @transform_6(%arg0: i32) -> (i32, i32) {
    %c0_i32 = arith.constant 0 : i32
    %c0_i32_0 = arith.constant 0 : i32
    %c0_i32_1 = arith.constant 0 : i32
    return %c0_i32, %c0_i32_0 : i32, i32
  }
  func.func @transform_7(%arg0: i32) -> (i32, i32) {
    %c0_i32 = arith.constant 0 : i32
    %c0_i32_0 = arith.constant 0 : i32
    %c0_i32_1 = arith.constant 0 : i32
    return %c0_i32, %c0_i32_0 : i32, i32
  }
  func.func @transform_8(%arg0: i32) -> (i32, i32, i32) {
    %c0_i32 = arith.constant 0 : i32
    %c0_i32_0 = arith.constant 0 : i32
    %c0_i32_1 = arith.constant 0 : i32
    return %arg0, %c0_i32, %c0_i32_0 : i32, i32, i32
  }
}

</mosaic_0001>

<llo_original>
// kernel: tpu_custom_call.1
$region0: #{tpu_custom_call.1}
  #allocation0 [shape = 'u32[]', space=smem, size = 0x4, offset = 0x4, fixed_abs, tag = 'smem constant byte address 0x4 - core index']
  #allocation1 [shape = 'u32[144,128]{1,0:T(1,128)}', space=vmem, size = 0x12000, scoped, tag = 'internal scratch']
  %s0 = inlined_call_operand.vmem [shape: f32[512,16], index: 0, kind: input, shape index: {}]
  %s1 = inlined_call_operand.vmem [shape: f32[16,32], index: 1, kind: input, shape index: {}]
  %s2 = inlined_call_operand.vmem [shape: f32[16,32], index: 2, kind: input, shape index: {}]
  %s3 = inlined_call_operand.vmem [shape: f32[32,32], index: 3, kind: input, shape index: {}]
  %s4 = inlined_call_operand.vmem [shape: f32[1,32], index: 4, kind: input, shape index: {}]
  %s5 = inlined_call_operand.vmem [shape: f32[1,32], index: 5, kind: input, shape index: {}]
  %s6 = inlined_call_operand.vmem [shape: f32[1,32], index: 6, kind: input, shape index: {}]
  %s7 = inlined_call_operand.vmem [shape: f32[9,32], index: 7, kind: input, shape index: {}]
  %s8 = inlined_call_operand.vmem [shape: f32[2,5,32], index: 8, kind: output, shape index: {}]
  %s9 = sld [smem:[#allocation0]]
  $region65: #{tpu_custom_call.1} parent=0
    _
  %s11 = ssub.s32 1, %s9
  %s12 = scalar_select 0, %s11, %s9
  loop: start=0, step=1, limit=4
  $region2: #{tpu_custom_call.1} parent=0 // loop_pre_header
    _
  $region3: #{tpu_custom_call.1} parent=0 // loop_header
    %s14 = sphi 0, %s18
    %p15 = scmp.ge.s32.totalorder %s14, 4
    %s24 = sphi 0, %s26
    %s27 = sphi 0, %s24
    %s28 = sphi 0, %s27
    %s44 = sphi 0, %s28
    %s48 = sphi 0, %s48
    %s50 = sphi 0, %s48
    %s51 = sphi 0, %s50
    %s65 = sphi 0, %s51
    %s69 = sphi 0, %s69
    %s71 = sphi 0, %s69
    %s72 = sphi 0, %s71
    %s86 = sphi 0, %s72
    %s90 = sphi 0, %s90
    %s92 = sphi 0, %s90
    %s93 = sphi 0, %s92
    %s107 = sphi 0, %s93
    %s111 = sphi 0, %s111
    %s113 = sphi 0, %s111
    %s114 = sphi 0, %s113
    %s128 = sphi 0, %s114
    %s132 = sphi 0, %s132
    %s134 = sphi 0, %s132
    %s135 = sphi 0, %s134
    %s149 = sphi 0, %s135
    %s153 = sphi 0, %s153
    %s155 = sphi 0, %s153
    %s156 = sphi 0, %s155
    %s170 = sphi 0, %s156
    %s174 = sphi 0, %s174
    %s176 = sphi 0, %s174
    %s177 = sphi 0, %s176
    %s191 = sphi 0, %s177
    %s197 = sphi 0, %s199
    %s200 = sphi 0, %s197
    %s201 = sphi 0, %s200
    %s217 = sphi 0, %s201
  $region4: #{tpu_custom_call.1} parent=0 // loop_header_branch
    %17 = sbr.rel (%p15) target = $region8
  $region5: #{tpu_custom_call.1} parent=0 // loop_body
    %s19 = ssub.s32 %s14, 1
    %s20 = ssub.s32 %s14, 2
    %s21 = sadd.s32 %s14, 1
    %s22 = ssub.s32 %s14, %s21
    %p23 = scmp.eq.s32.totalorder %s22, 0
    %s25 = sadd.s32 %s24, 1
    %s26 = scalar_select %p23, %s24, %s25
    %p29 = pneg %p23
    %p30 = scmp.eq.s32.totalorder %s14, 1
    %p31 = por %p29, %p30
    %p32 = scmp.ne.s32.totalorder %s24, %s27
    %p33 = scmp.eq.s32.totalorder %s14, 0
    %p34 = por %p32, %p33
    %p35 = scmp.ne.s32.totalorder %s24, %s27
    %p36 = scmp.eq.s32.totalorder %s19, 1
    %p37 = por %p35, %p36
    %p38 = scmp.ne.s32.totalorder %s27, %s28
    %p39 = scmp.eq.s32.totalorder %s19, 0
    %p40 = por %p38, %p39
    %p41 = scmp.ne.s32.totalorder %s27, %s28
    %p42 = scmp.eq.s32.totalorder %s20, 1
    %p43 = por %p41, %p42
    %p45 = scmp.ne.s32.totalorder %s28, %s44
    %p46 = scmp.eq.s32.totalorder %s20, 0
    %p47 = por %p45, %p46
    %s49 = sadd.s32 %s48, 1
    %p52 = scmp.eq.s32.totalorder %s14, 1
    %p53 = scmp.ne.s32.totalorder %s48, %s50
    %p54 = scmp.eq.s32.totalorder %s14, 0
    %p55 = por %p53, %p54
    %p56 = scmp.ne.s32.totalorder %s48, %s50
    %p57 = scmp.eq.s32.totalorder %s19, 1
    %p58 = por %p56, %p57
    %p59 = scmp.ne.s32.totalorder %s50, %s51
    %p60 = scmp.eq.s32.totalorder %s19, 0
    %p61 = por %p59, %p60
    %p62 = scmp.ne.s32.totalorder %s50, %s51
    %p63 = scmp.eq.s32.totalorder %s20, 1
    %p64 = por %p62, %p63
    %p66 = scmp.ne.s32.totalorder %s51, %s65
    %p67 = scmp.eq.s32.totalorder %s20, 0
    %p68 = por %p66, %p67
    %s70 = sadd.s32 %s69, 1
    %p73 = scmp.eq.s32.totalorder %s14, 1
    %p74 = scmp.ne.s32.totalorder %s69, %s71
    %p75 = scmp.eq.s32.totalorder %s14, 0
    %p76 = por %p74, %p75
    %p77 = scmp.ne.s32.totalorder %s69, %s71
    %p78 = scmp.eq.s32.totalorder %s19, 1
    %p79 = por %p77, %p78
    %p80 = scmp.ne.s32.totalorder %s71, %s72
    %p81 = scmp.eq.s32.totalorder %s19, 0
    %p82 = por %p80, %p81
    %p83 = scmp.ne.s32.totalorder %s71, %s72
    %p84 = scmp.eq.s32.totalorder %s20, 1
    %p85 = por %p83, %p84
    %p87 = scmp.ne.s32.totalorder %s72, %s86
    %p88 = scmp.eq.s32.totalorder %s20, 0
    %p89 = por %p87, %p88
    %s91 = sadd.s32 %s90, 1
    %p94 = scmp.eq.s32.totalorder %s14, 1
    %p95 = scmp.ne.s32.totalorder %s90, %s92
    %p96 = scmp.eq.s32.totalorder %s14, 0
    %p97 = por %p95, %p96
    %p98 = scmp.ne.s32.totalorder %s90, %s92
    %p99 = scmp.eq.s32.totalorder %s19, 1
    %p100 = por %p98, %p99
    %p101 = scmp.ne.s32.totalorder %s92, %s93
    %p102 = scmp.eq.s32.totalorder %s19, 0
    %p103 = por %p101, %p102
    %p104 = scmp.ne.s32.totalorder %s92, %s93
    %p105 = scmp.eq.s32.totalorder %s20, 1
    %p106 = por %p104, %p105
    %p108 = scmp.ne.s32.totalorder %s93, %s107
    %p109 = scmp.eq.s32.totalorder %s20, 0
    %p110 = por %p108, %p109
    %s112 = sadd.s32 %s111, 1
    %p115 = scmp.eq.s32.totalorder %s14, 1
    %p116 = scmp.ne.s32.totalorder %s111, %s113
    %p117 = scmp.eq.s32.totalorder %s14, 0
    %p118 = por %p116, %p117
    %p119 = scmp.ne.s32.totalorder %s111, %s113
    %p120 = scmp.eq.s32.totalorder %s19, 1
    %p121 = por %p119, %p120
    %p122 = scmp.ne.s32.totalorder %s113, %s114
    %p123 = scmp.eq.s32.totalorder %s19, 0
    %p124 = por %p122, %p123
    %p125 = scmp.ne.s32.totalorder %s113, %s114
    %p126 = scmp.eq.s32.totalorder %s20, 1
    %p127 = por %p125, %p126
    %p129 = scmp.ne.s32.totalorder %s114, %s128
    %p130 = scmp.eq.s32.totalorder %s20, 0
    %p131 = por %p129, %p130
    %s133 = sadd.s32 %s132, 1
    %p136 = scmp.eq.s32.totalorder %s14, 1
    %p137 = scmp.ne.s32.totalorder %s132, %s134
    %p138 = scmp.eq.s32.totalorder %s14, 0
    %p139 = por %p137, %p138
    %p140 = scmp.ne.s32.totalorder %s132, %s134
    %p141 = scmp.eq.s32.totalorder %s19, 1
    %p142 = por %p140, %p141
    %p143 = scmp.ne.s32.totalorder %s134, %s135
    %p144 = scmp.eq.s32.totalorder %s19, 0
    %p145 = por %p143, %p144
    %p146 = scmp.ne.s32.totalorder %s134, %s135
    %p147 = scmp.eq.s32.totalorder %s20, 1
    %p148 = por %p146, %p147
    %p150 = scmp.ne.s32.totalorder %s135, %s149
    %p151 = scmp.eq.s32.totalorder %s20, 0
    %p152 = por %p150, %p151
    %s154 = sadd.s32 %s153, 1
    %p157 = scmp.eq.s32.totalorder %s14, 1
    %p158 = scmp.ne.s32.totalorder %s153, %s155
    %p159 = scmp.eq.s32.totalorder %s14, 0
    %p160 = por %p158, %p159
    %p161 = scmp.ne.s32.totalorder %s153, %s155
    %p162 = scmp.eq.s32.totalorder %s19, 1
    %p163 = por %p161, %p162
    %p164 = scmp.ne.s32.totalorder %s155, %s156
    %p165 = scmp.eq.s32.totalorder %s19, 0
    %p166 = por %p164, %p165
    %p167 = scmp.ne.s32.totalorder %s155, %s156
    %p168 = scmp.eq.s32.totalorder %s20, 1
    %p169 = por %p167, %p168
    %p171 = scmp.ne.s32.totalorder %s156, %s170
    %p172 = scmp.eq.s32.totalorder %s20, 0
    %p173 = por %p171, %p172
    %s175 = sadd.s32 %s174, 1
    %p178 = scmp.eq.s32.totalorder %s14, 1
    %p179 = scmp.ne.s32.totalorder %s174, %s176
    %p180 = scmp.eq.s32.totalorder %s14, 0
    %p181 = por %p179, %p180
    %p182 = scmp.ne.s32.totalorder %s174, %s176
    %p183 = scmp.eq.s32.totalorder %s19, 1
    %p184 = por %p182, %p183
    %p185 = scmp.ne.s32.totalorder %s176, %s177
    %p186 = scmp.eq.s32.totalorder %s19, 0
    %p187 = por %p185, %p186
    %p188 = scmp.ne.s32.totalorder %s176, %s177
    %p189 = scmp.eq.s32.totalorder %s20, 1
    %p190 = por %p188, %p189
    %p192 = scmp.ne.s32.totalorder %s177, %s191
    %p193 = scmp.eq.s32.totalorder %s20, 0
    %p194 = por %p192, %p193
    %s195 = ssub.s32 %s14, %s21
    %p196 = scmp.eq.s32.totalorder %s195, 0
    %s198 = sadd.s32 %s197, 1
    %s199 = scalar_select %p196, %s197, %s198
    %p202 = pneg %p196
    %p203 = scmp.eq.s32.totalorder %s14, 1
    %p204 = por %p202, %p203
    %p205 = scmp.ne.s32.totalorder %s197, %s200
    %p206 = scmp.eq.s32.totalorder %s14, 0
    %p207 = por %p205, %p206
    %p208 = scmp.ne.s32.totalorder %s197, %s200
    %p209 = scmp.eq.s32.totalorder %s19, 1
    %p210 = por %p208, %p209
    %p211 = scmp.ne.s32.totalorder %s200, %s201
    %p212 = scmp.eq.s32.totalorder %s19, 0
    %p213 = por %p211, %p212
    %p214 = scmp.ne.s32.totalorder %s200, %s201
    %p215 = scmp.eq.s32.totalorder %s20, 1
    %p216 = por %p214, %p215
    %p218 = scmp.ne.s32.totalorder %s201, %s217
    %p219 = scmp.eq.s32.totalorder %s20, 0
    %p220 = por %p218, %p219
    %p221 = scmp.le.s32.totalorder 1, %s14
    %p222 = scmp.lt.s32.totalorder %s14, 3
    %p223 = pnand %p221, %p222
    %p224 = pneg %p223
    // Predicated region
    $region9: #{tpu_custom_call.1} parent=5 // pred_check
      _
    $region10: #{tpu_custom_call.1} parent=5 // pred_check_branch
      %226 = sbr.rel (%p223) target = $region12
    $region11: #{tpu_custom_call.1} parent=5 // pred_region
      %s227 = ssub.s32 %s14, 1
      // Predicated region
      $region13: #{tpu_custom_call.1} parent=11 // pred_check
        %p228 = pneg %p61
      $region14: #{tpu_custom_call.1} parent=11 // pred_check_branch
        %230 = sbr.rel (%p228) target = $region16
      $region15: #{tpu_custom_call.1} parent=11 // pred_region
        _
      $region16: #{tpu_custom_call.1} parent=11 // pred_fallthru
        _
      // Predicated region
      $region17: #{tpu_custom_call.1} parent=11 // pred_check
        %p231 = pneg %p82
      $region18: #{tpu_custom_call.1} parent=11 // pred_check_branch
        %233 = sbr.rel (%p231) target = $region20
      $region19: #{tpu_custom_call.1} parent=11 // pred_region
        _
      $region20: #{tpu_custom_call.1} parent=11 // pred_fallthru
        _
      // Predicated region
      $region21: #{tpu_custom_call.1} parent=11 // pred_check
        %p234 = pneg %p103
      $region22: #{tpu_custom_call.1} parent=11 // pred_check_branch
        %236 = sbr.rel (%p234) target = $region24
      $region23: #{tpu_custom_call.1} parent=11 // pred_region
        _
      $region24: #{tpu_custom_call.1} parent=11 // pred_fallthru
        _
      // Predicated region
      $region25: #{tpu_custom_call.1} parent=11 // pred_check
        %p237 = pneg %p124
      $region26: #{tpu_custom_call.1} parent=11 // pred_check_branch
        %239 = sbr.rel (%p237) target = $region28
      $region27: #{tpu_custom_call.1} parent=11 // pred_region
        _
      $region28: #{tpu_custom_call.1} parent=11 // pred_fallthru
        _
      // Predicated region
      $region29: #{tpu_custom_call.1} parent=11 // pred_check
        %p240 = pneg %p145
      $region30: #{tpu_custom_call.1} parent=11 // pred_check_branch
        %242 = sbr.rel (%p240) target = $region32
      $region31: #{tpu_custom_call.1} parent=11 // pred_region
        _
      $region32: #{tpu_custom_call.1} parent=11 // pred_fallthru
        _
      // Predicated region
      $region33: #{tpu_custom_call.1} parent=11 // pred_check
        %p243 = pneg %p166
      $region34: #{tpu_custom_call.1} parent=11 // pred_check_branch
        %245 = sbr.rel (%p243) target = $region36
      $region35: #{tpu_custom_call.1} parent=11 // pred_region
        _
      $region36: #{tpu_custom_call.1} parent=11 // pred_fallthru
        _
      // Predicated region
      $region37: #{tpu_custom_call.1} parent=11 // pred_check
        %p246 = pneg %p187
      $region38: #{tpu_custom_call.1} parent=11 // pred_check_branch
        %248 = sbr.rel (%p246) target = $region40
      $region39: #{tpu_custom_call.1} parent=11 // pred_region
        _
      $region40: #{tpu_custom_call.1} parent=11 // pred_fallthru
        _
    $region12: #{tpu_custom_call.1} parent=5 // pred_fallthru
      _
    %p249 = scmp.lt.s32.totalorder %s14, 2
    // Predicated region
    $region41: #{tpu_custom_call.1} parent=5 // pred_check
      %p250 = pneg %p249
    $region42: #{tpu_custom_call.1} parent=5 // pred_check_branch
      %252 = sbr.rel (%p250) target = $region44
    $region43: #{tpu_custom_call.1} parent=5 // pred_region
      // Predicated region
      $region45: #{tpu_custom_call.1} parent=43 // pred_check
        %p253 = pneg %p34
      $region46: #{tpu_custom_call.1} parent=43 // pred_check_branch
        %255 = sbr.rel (%p253) target = $region48
      $region47: #{tpu_custom_call.1} parent=43 // pred_region
        %s256 = smul.u32 32, %s14
        %p257 = scmp.lt.s32.totalorder %s256, 63
        %s258 = scalar_select %p257, %s256, 63
        %s259 = smul.addr %s258, 8
        %s260 = scalar_lea.vmem %s0, %s259
        %s261 = smul.u32 32, %s14
      $region48: #{tpu_custom_call.1} parent=43 // pred_fallthru
        _
    $region44: #{tpu_custom_call.1} parent=5 // pred_fallthru
      _
    %p262 = scmp.le.s32.totalorder 1, %s14
    %p263 = scmp.lt.s32.totalorder %s14, 3
    %p264 = pnand %p262, %p263
    %p265 = pneg %p264
    // Predicated region
    $region49: #{tpu_custom_call.1} parent=5 // pred_check
      _
    $region50: #{tpu_custom_call.1} parent=5 // pred_check_branch
      %267 = sbr.rel (%p264) target = $region52
    $region51: #{tpu_custom_call.1} parent=5 // pred_region
      %s268 = ssub.s32 %s14, 1
      %s269 = smul.u32 32, %s19
      %p270 = scmp.lt.s32.totalorder %s269, 63
      %s271 = scalar_select %p270, %s269, 63
      %s272 = smul.addr %s271, 8
      %s273 = scalar_lea.vmem %s0, %s272
      %p274 = pneg %p40
      %p275 = pneg %p37
      %p276 = pneg %p61
      %p277 = pneg %p58
      %p278 = pneg %p82
      %p279 = pneg %p79
      %p280 = pneg %p103
      %p281 = pneg %p100
      %p282 = pneg %p124
      %p283 = pneg %p121
      %p284 = pneg %p145
      %p285 = pneg %p142
      %p286 = pneg %p166
      %p287 = pneg %p163
      %p288 = pneg %p187
      %p289 = pneg %p184
      %p290 = pneg %p213
      %p291 = pneg %p210
      %p292 = scmp.lt.s32.totalorder %s19, 1
      %s293 = scalar_select %p292, %s19, 1
      %s294 = smul.addr %s293, 8
      %s295 = scalar_lea.vmem %s8, %s294
      %s296 = smul.u32 32, %s19
      %p297 = scmp.lt.s32.totalorder %s296, 63
      %s298 = scalar_select %p297, %s296, 63
      %s299 = smul.addr %s298, 8
      %s300 = scalar_lea.vmem %s0, %s299
      %s301 = smul.u32 32, %s19
      %p302 = scmp.lt.s32.totalorder %s19, 1
      %s303 = scalar_select %p302, %s19, 1
      %s304 = smul.addr %s303, 8
      %s305 = scalar_lea.vmem %s8, %s304
      %v306 = vld [vmem:[%s300] sm:$0xff]
      %v307 = vld [vmem:[%s300 + $0x8] sm:$0xff]
      %v308 = vld [vmem:[%s300 + $0x10] sm:$0xff]
      %v309 = vld [vmem:[%s300 + $0x18] sm:$0xff]
      %v310 = vld [vmem:[%s300 + $0x20] sm:$0xff]
      %v311 = vld [vmem:[%s300 + $0x28] sm:$0xff]
      %v312 = vld [vmem:[%s300 + $0x30] sm:$0xff]
      %v313 = vld [vmem:[%s300 + $0x38] sm:$0xff]
      %v314 = vld [vmem:[%s300 + $0x40] sm:$0xff]
      %v315 = vld [vmem:[%s300 + $0x48] sm:$0xff]
      %v316 = vld [vmem:[%s300 + $0x50] sm:$0xff]
      %v317 = vld [vmem:[%s300 + $0x58] sm:$0xff]
      %v318 = vld [vmem:[%s300 + $0x60] sm:$0xff]
      %v319 = vld [vmem:[%s300 + $0x68] sm:$0xff]
      %v320 = vld [vmem:[%s300 + $0x70] sm:$0xff]
      %v321 = vld [vmem:[%s300 + $0x78] sm:$0xff]
      %v322 = vld [vmem:[%s300 + $0x80] sm:$0xff]
      %v323 = vld [vmem:[%s300 + $0x88] sm:$0xff]
      %v324 = vld [vmem:[%s300 + $0x90] sm:$0xff]
      %v325 = vld [vmem:[%s300 + $0x98] sm:$0xff]
      %v326 = vld [vmem:[%s300 + $0xa0] sm:$0xff]
      %v327 = vld [vmem:[%s300 + $0xa8] sm:$0xff]
      %v328 = vld [vmem:[%s300 + $0xb0] sm:$0xff]
      %v329 = vld [vmem:[%s300 + $0xb8] sm:$0xff]
      %v330 = vld [vmem:[%s300 + $0xc0] sm:$0xff]
      %v331 = vld [vmem:[%s300 + $0xc8] sm:$0xff]
      %v332 = vld [vmem:[%s300 + $0xd0] sm:$0xff]
      %v333 = vld [vmem:[%s300 + $0xd8] sm:$0xff]
      %v334 = vld [vmem:[%s300 + $0xe0] sm:$0xff]
      %v335 = vld [vmem:[%s300 + $0xe8] sm:$0xff]
      %v336 = vld [vmem:[%s300 + $0xf0] sm:$0xff]
      %v337 = vld [vmem:[%s300 + $0xf8] sm:$0xff]
      %v338 = vld [vmem:[%s2] sm:$0xff]
      %v339 = vld [vmem:[%s2 + $0x8] sm:$0xff]
      %vm340 = vcmask 130048
      %v342 = vsel %vm340, %v306, 0
      %v345 = vsel %vm340, %v307, 0
      %v348 = vsel %vm340, %v308, 0
      %v351 = vsel %vm340, %v309, 0
      %v354 = vsel %vm340, %v310, 0
      %v357 = vsel %vm340, %v311, 0
      %v360 = vsel %vm340, %v312, 0
      %v363 = vsel %vm340, %v313, 0
      %v366 = vsel %vm340, %v314, 0
      %v369 = vsel %vm340, %v315, 0
      %v372 = vsel %vm340, %v316, 0
      %v375 = vsel %vm340, %v317, 0
      %v378 = vsel %vm340, %v318, 0
      %v381 = vsel %vm340, %v319, 0
      %v384 = vsel %vm340, %v320, 0
      %v387 = vsel %vm340, %v321, 0
      %v390 = vsel %vm340, %v322, 0
      %v393 = vsel %vm340, %v323, 0
      %v396 = vsel %vm340, %v324, 0
      %v399 = vsel %vm340, %v325, 0
      %v402 = vsel %vm340, %v326, 0
      %v405 = vsel %vm340, %v327, 0
      %v408 = vsel %vm340, %v328, 0
      %v411 = vsel %vm340, %v329, 0
      %v414 = vsel %vm340, %v330, 0
      %v417 = vsel %vm340, %v331, 0
      %v420 = vsel %vm340, %v332, 0
      %v423 = vsel %vm340, %v333, 0
      %v426 = vsel %vm340, %v334, 0
      %v429 = vsel %vm340, %v335, 0
      %v432 = vsel %vm340, %v336, 0
      %v435 = vsel %vm340, %v337, 0
      %437 = vmatprep.subr.mxu0 0.0
      %438 = vmatpush1.msra.mxu0 %v338
      %439 = vmatprep.subr.mxu0 0.0
      %440 = vmatpush1.msra.mxu0 %v339
      %441 = vmatprep.subr.mxu0 0.0
      %442 = vmatpush1.msra.mxu0 0.0
      %443 = vmatprep.subr.mxu0 0.0
      %444 = vmatpush1.msra.mxu0 0.0
      %445 = vmatprep.subr.mxu0 0.0
      %446 = vmatpush1.msra.mxu0 0.0
      %447 = vmatprep.subr.mxu0 0.0
      %448 = vmatpush1.msra.mxu0 0.0
      %449 = vmatprep.subr.mxu0 0.0
      %450 = vmatpush1.msra.mxu0 0.0
      %451 = vmatprep.subr.mxu0 0.0
      %452 = vmatpush1.msra.mxu0 0.0
      %453 = vmatprep.subr.mxu0 0.0
      %454 = vmatpush1.msra.mxu0 0.0
      %455 = vmatprep.subr.mxu0 0.0
      %456 = vmatpush1.msra.mxu0 0.0
      %457 = vmatprep.subr.mxu0 0.0
      %458 = vmatpush1.msra.mxu0 0.0
      %459 = vmatprep.subr.mxu0 0.0
      %460 = vmatpush1.msra.mxu0 0.0
      %461 = vmatprep.subr.mxu0 0.0
      %462 = vmatpush1.msra.mxu0 0.0
      %463 = vmatprep.subr.mxu0 0.0
      %464 = vmatpush1.msra.mxu0 0.0
      %465 = vmatprep.subr.mxu0 0.0
      %466 = vmatpush1.msra.mxu0 0.0
      %467 = vmatprep.subr.mxu0 0.0
      %468 = vmatpush1.msra.mxu0 0.0
      %469 = vmatprep.subr.mxu0 0.0
      %470 = vmatpush1.msra.mxu0 0.0
      %471 = vmatprep.subr.mxu0 0.0
      %472 = vmatpush1.msra.mxu0 0.0
      %473 = vmatprep.subr.mxu0 0.0
      %474 = vmatpush1.msra.mxu0 0.0
      %475 = vmatprep.subr.mxu0 0.0
      %476 = vmatpush1.msra.mxu0 0.0
      %477 = vmatprep.subr.mxu0 0.0
      %478 = vmatpush1.msra.mxu0 0.0
      %479 = vmatprep.subr.mxu0 0.0
      %480 = vmatpush1.msra.mxu0 0.0
      %481 = vmatprep.subr.mxu0 0.0
      %482 = vmatpush1.msra.mxu0 0.0
      %483 = vmatprep.subr.mxu0 0.0
      %484 = vmatpush1.msra.mxu0 0.0
      %485 = vmatprep.subr.mxu0 0.0
      %486 = vmatpush1.msra.mxu0 0.0
      %487 = vmatprep.subr.mxu0 0.0
      %488 = vmatpush1.msra.mxu0 0.0
      %489 = vmatprep.subr.mxu0 0.0
      %490 = vmatpush1.msra.mxu0 0.0
      %491 = vmatprep.subr.mxu0 0.0
      %492 = vmatpush1.msra.mxu0 0.0
      %493 = vmatprep.subr.mxu0 0.0
      %494 = vmatpush1.msra.mxu0 0.0
      %495 = vmatprep.subr.mxu0 0.0
      %496 = vmatpush1.msra.mxu0 0.0
      %497 = vmatprep.subr.mxu0 0.0
      %498 = vmatpush1.msra.mxu0 0.0
      %499 = vmatprep.subr.mxu0 0.0
      %500 = vmatpush1.msra.mxu0 0.0
      %501 = vmatprep.mubr.f32.mxu0 0.0
      %502 = vmatmul.mubr.f32.gmra.mrb[0].mxu0 %v342
      %v503 = vpop.f32.mrb[0].mxu0
      %v504 = vadd.f32 0.0, %v503
      %v505 = vpop.f32.mrb[0].mxu0
      %506 = vmatprep.mubr.f32.mxu0 0.0
      %507 = vmatmul.mubr.f32.gmra.mrb[0].mxu0 %v345
      %v508 = vpop.f32.mrb[0].mxu0
      %v509 = vadd.f32 0.0, %v508
      %v510 = vpop.f32.mrb[0].mxu0
      %511 = vmatprep.mubr.f32.mxu0 0.0
      %512 = vmatmul.mubr.f32.gmra.mrb[0].mxu0 %v348
      %v513 = vpop.f32.mrb[0].mxu0
      %v514 = vadd.f32 0.0, %v513
      %v515 = vpop.f32.mrb[0].mxu0
      %516 = vmatprep.mubr.f32.mxu0 0.0
      %517 = vmatmul.mubr.f32.gmra.mrb[0].mxu0 %v351
      %v518 = vpop.f32.mrb[0].mxu0
      %v519 = vadd.f32 0.0, %v518
      %v520 = vpop.f32.mrb[0].mxu0
      %521 = vmatprep.mubr.f32.mxu0 0.0
      %522 = vmatmul.mubr.f32.gmra.mrb[0].mxu0 %v354
      %v523 = vpop.f32.mrb[0].mxu0
      %v524 = vadd.f32 0.0, %v523
      %v525 = vpop.f32.mrb[0].mxu0
      %526 = vmatprep.mubr.f32.mxu0 0.0
      %527 = vmatmul.mubr.f32.gmra.mrb[0].mxu0 %v357
      %v528 = vpop.f32.mrb[0].mxu0
      %v529 = vadd.f32 0.0, %v528
      %v530 = vpop.f32.mrb[0].mxu0
      %531 = vmatprep.mubr.f32.mxu0 0.0
      %532 = vmatmul.mubr.f32.gmra.mrb[0].mxu0 %v360
      %v533 = vpop.f32.mrb[0].mxu0
      %v534 = vadd.f32 0.0, %v533
      %v535 = vpop.f32.mrb[0].mxu0
      %536 = vmatprep.mubr.f32.mxu0 0.0
      %537 = vmatmul.mubr.f32.gmra.mrb[0].mxu0 %v363
      %v538 = vpop.f32.mrb[0].mxu0
      %v539 = vadd.f32 0.0, %v538
      %v540 = vpop.f32.mrb[0].mxu0
      %541 = vmatprep.mubr.f32.mxu0 0.0
      %542 = vmatmul.mubr.f32.gmra.mrb[0].mxu0 %v366
      %v543 = vpop.f32.mrb[0].mxu0
      %v544 = vadd.f32 0.0, %v543
      %v545 = vpop.f32.mrb[0].mxu0
      %546 = vmatprep.mubr.f32.mxu0 0.0
      %547 = vmatmul.mubr.f32.gmra.mrb[0].mxu0 %v369
      %v548 = vpop.f32.mrb[0].mxu0
      %v549 = vadd.f32 0.0, %v548
      %v550 = vpop.f32.mrb[0].mxu0
      %551 = vmatprep.mubr.f32.mxu0 0.0
      %552 = vmatmul.mubr.f32.gmra.mrb[0].mxu0 %v372
      %v553 = vpop.f32.mrb[0].mxu0
      %v554 = vadd.f32 0.0, %v553
      %v555 = vpop.f32.mrb[0].mxu0
      %556 = vmatprep.mubr.f32.mxu0 0.0
      %557 = vmatmul.mubr.f32.gmra.mrb[0].mxu0 %v375
      %v558 = vpop.f32.mrb[0].mxu0
      %v559 = vadd.f32 0.0, %v558
      %v560 = vpop.f32.mrb[0].mxu0
      %561 = vmatprep.mubr.f32.mxu0 0.0
      %562 = vmatmul.mubr.f32.gmra.mrb[0].mxu0 %v378
      %v563 = vpop.f32.mrb[0].mxu0
      %v564 = vadd.f32 0.0, %v563
      %v565 = vpop.f32.mrb[0].mxu0
      %566 = vmatprep.mubr.f32.mxu0 0.0
      %567 = vmatmul.mubr.f32.gmra.mrb[0].mxu0 %v381
      %v568 = vpop.f32.mrb[0].mxu0
      %v569 = vadd.f32 0.0, %v568
      %v570 = vpop.f32.mrb[0].mxu0
      %571 = vmatprep.mubr.f32.mxu0 0.0
      %572 = vmatmul.mubr.f32.gmra.mrb[0].mxu0 %v384
      %v573 = vpop.f32.mrb[0].mxu0
      %v574 = vadd.f32 0.0, %v573
      %v575 = vpop.f32.mrb[0].mxu0
      %576 = vmatprep.mubr.f32.mxu0 0.0
      %577 = vmatmul.mubr.f32.gmra.mrb[0].mxu0 %v387
      %v578 = vpop.f32.mrb[0].mxu0
      %v579 = vadd.f32 0.0, %v578
      %v580 = vpop.f32.mrb[0].mxu0
      %581 = vmatprep.mubr.f32.mxu0 0.0
      %582 = vmatmul.mubr.f32.gmra.mrb[0].mxu0 %v390
      %v583 = vpop.f32.mrb[0].mxu0
      %v584 = vadd.f32 0.0, %v583
      %v585 = vpop.f32.mrb[0].mxu0
      %586 = vmatprep.mubr.f32.mxu0 0.0
      %587 = vmatmul.mubr.f32.gmra.mrb[0].mxu0 %v393
      %v588 = vpop.f32.mrb[0].mxu0
      %v589 = vadd.f32 0.0, %v588
      %v590 = vpop.f32.mrb[0].mxu0
      %591 = vmatprep.mubr.f32.mxu0 0.0
      %592 = vmatmul.mubr.f32.gmra.mrb[0].mxu0 %v396
      %v593 = vpop.f32.mrb[0].mxu0
      %v594 = vadd.f32 0.0, %v593
      %v595 = vpop.f32.mrb[0].mxu0
      %596 = vmatprep.mubr.f32.mxu0 0.0
      %597 = vmatmul.mubr.f32.gmra.mrb[0].mxu0 %v399
      %v598 = vpop.f32.mrb[0].mxu0
      %v599 = vadd.f32 0.0, %v598
      %v600 = vpop.f32.mrb[0].mxu0
      %601 = vmatprep.mubr.f32.mxu0 0.0
      %602 = vmatmul.mubr.f32.gmra.mrb[0].mxu0 %v402
      %v603 = vpop.f32.mrb[0].mxu0
      %v604 = vadd.f32 0.0, %v603
      %v605 = vpop.f32.mrb[0].mxu0
      %606 = vmatprep.mubr.f32.mxu0 0.0
      %607 = vmatmul.mubr.f32.gmra.mrb[0].mxu0 %v405
      %v608 = vpop.f32.mrb[0].mxu0
      %v609 = vadd.f32 0.0, %v608
      %v610 = vpop.f32.mrb[0].mxu0
      %611 = vmatprep.mubr.f32.mxu0 0.0
      %612 = vmatmul.mubr.f32.gmra.mrb[0].mxu0 %v408
      %v613 = vpop.f32.mrb[0].mxu0
      %v614 = vadd.f32 0.0, %v613
      %v615 = vpop.f32.mrb[0].mxu0
      %616 = vmatprep.mubr.f32.mxu0 0.0
      %617 = vmatmul.mubr.f32.gmra.mrb[0].mxu0 %v411
      %v618 = vpop.f32.mrb[0].mxu0
      %v619 = vadd.f32 0.0, %v618
      %v620 = vpop.f32.mrb[0].mxu0
      %621 = vmatprep.mubr.f32.mxu0 0.0
      %622 = vmatmul.mubr.f32.gmra.mrb[0].mxu0 %v414
      %v623 = vpop.f32.mrb[0].mxu0
      %v624 = vadd.f32 0.0, %v623
      %v625 = vpop.f32.mrb[0].mxu0
      %626 = vmatprep.mubr.f32.mxu0 0.0
      %627 = vmatmul.mubr.f32.gmra.mrb[0].mxu0 %v417
      %v628 = vpop.f32.mrb[0].mxu0
      %v629 = vadd.f32 0.0, %v628
      %v630 = vpop.f32.mrb[0].mxu0
      %631 = vmatprep.mubr.f32.mxu0 0.0
      %632 = vmatmul.mubr.f32.gmra.mrb[0].mxu0 %v420
      %v633 = vpop.f32.mrb[0].mxu0
      %v634 = vadd.f32 0.0, %v633
      %v635 = vpop.f32.mrb[0].mxu0
      %636 = vmatprep.mubr.f32.mxu0 0.0
      %637 = vmatmul.mubr.f32.gmra.mrb[0].mxu0 %v423
      %v638 = vpop.f32.mrb[0].mxu0
      %v639 = vadd.f32 0.0, %v638
      %v640 = vpop.f32.mrb[0].mxu0
      %641 = vmatprep.mubr.f32.mxu0 0.0
      %642 = vmatmul.mubr.f32.gmra.mrb[0].mxu0 %v426
      %v643 = vpop.f32.mrb[0].mxu0
      %v644 = vadd.f32 0.0, %v643
      %v645 = vpop.f32.mrb[0].mxu0
      %646 = vmatprep.mubr.f32.mxu0 0.0
      %647 = vmatmul.mubr.f32.gmra.mrb[0].mxu0 %v429
      %v648 = vpop.f32.mrb[0].mxu0
      %v649 = vadd.f32 0.0, %v648
      %v650 = vpop.f32.mrb[0].mxu0
      %651 = vmatprep.mubr.f32.mxu0 0.0
      %652 = vmatmul.mubr.f32.gmra.mrb[0].mxu0 %v432
      %v653 = vpop.f32.mrb[0].mxu0
      %v654 = vadd.f32 0.0, %v653
      %v655 = vpop.f32.mrb[0].mxu0
      %656 = vmatprep.mubr.f32.mxu0 0.0
      %657 = vmatmul.mubr.f32.gmra.mrb[0].mxu0 %v435
      %v658 = vpop.f32.mrb[0].mxu0
      %v659 = vadd.f32 0.0, %v658
      %v660 = vpop.f32.mrb[0].mxu0
      %661 = vdwg.mxu0
      %v662 = vld [vmem:[%s1] sm:$0xff]
      %v663 = vld [vmem:[%s1 + $0x8] sm:$0xff]
      %v664 = vld [vmem:[%s4] sm:$0x1]
      %v666 = vlaneseq
      %v667 = vshrl.u32 %v666, 7
      %v668 = vsub.s32 0, %v667
      %v669 = vrot.slane %v664, %v668
      %671 = vmatprep.subr.mxu0 0.0
      %672 = vmatpush1.msra.mxu0 %v662
      %673 = vmatprep.subr.mxu0 0.0
      %674 = vmatpush1.msra.mxu0 %v663
      %675 = vmatprep.subr.mxu0 0.0
      %676 = vmatpush1.msra.mxu0 0.0
      %677 = vmatprep.subr.mxu0 0.0
      %678 = vmatpush1.msra.mxu0 0.0
      %679 = vmatprep.subr.mxu0 0.0
      %680 = vmatpush1.msra.mxu0 0.0
      %681 = vmatprep.subr.mxu0 0.0
      %682 = vmatpush1.msra.mxu0 0.0
      %683 = vmatprep.subr.mxu0 0.0
      %684 = vmatpush1.msra.mxu0 0.0
      %685 = vmatprep.subr.mxu0 0.0
      %686 = vmatpush1.msra.mxu0 0.0
      %687 = vmatprep.subr.mxu0 0.0
      %688 = vmatpush1.msra.mxu0 0.0
      %689 = vmatprep.subr.mxu0 0.0
      %690 = vmatpush1.msra.mxu0 0.0
      %691 = vmatprep.subr.mxu0 0.0
      %692 = vmatpush1.msra.mxu0 0.0
      %693 = vmatprep.subr.mxu0 0.0
      %694 = vmatpush1.msra.mxu0 0.0
      %695 = vmatprep.subr.mxu0 0.0
      %696 = vmatpush1.msra.mxu0 0.0
      %697 = vmatprep.subr.mxu0 0.0
      %698 = vmatpush1.msra.mxu0 0.0
      %699 = vmatprep.subr.mxu0 0.0
      %700 = vmatpush1.msra.mxu0 0.0
      %701 = vmatprep.subr.mxu0 0.0
      %702 = vmatpush1.msra.mxu0 0.0
      %703 = vmatprep.subr.mxu0 0.0
      %704 = vmatpush1.msra.mxu0 0.0
      %705 = vmatprep.subr.mxu0 0.0
      %706 = vmatpush1.msra.mxu0 0.0
      %707 = vmatprep.subr.mxu0 0.0
      %708 = vmatpush1.msra.mxu0 0.0
      %709 = vmatprep.subr.mxu0 0.0
      %710 = vmatpush1.msra.mxu0 0.0
      %711 = vmatprep.subr.mxu0 0.0
      %712 = vmatpush1.msra.mxu0 0.0
      %713 = vmatprep.subr.mxu0 0.0
      %714 = vmatpush1.msra.mxu0 0.0
      %715 = vmatprep.subr.mxu0 0.0
      %716 = vmatpush1.msra.mxu0 0.0
      %717 = vmatprep.subr.mxu0 0.0
      %718 = vmatpush1.msra.mxu0 0.0
      %719 = vmatprep.subr.mxu0 0.0
      %720 = vmatpush1.msra.mxu0 0.0
      %721 = vmatprep.subr.mxu0 0.0
      %722 = vmatpush1.msra.mxu0 0.0
      %723 = vmatprep.subr.mxu0 0.0
      %724 = vmatpush1.msra.mxu0 0.0
      %725 = vmatprep.subr.mxu0 0.0
      %726 = vmatpush1.msra.mxu0 0.0
      %727 = vmatprep.subr.mxu0 0.0
      %728 = vmatpush1.msra.mxu0 0.0
      %729 = vmatprep.subr.mxu0 0.0
      %730 = vmatpush1.msra.mxu0 0.0
      %731 = vmatprep.subr.mxu0 0.0
      %732 = vmatpush1.msra.mxu0 0.0
      %733 = vmatprep.subr.mxu0 0.0
      %734 = vmatpush1.msra.mxu0 0.0
      %735 = vmatprep.mubr.f32.mxu0 0.0
      %736 = vmatmul.mubr.f32.gmra.mrb[0].mxu0 %v342
      %v737 = vpop.f32.mrb[0].mxu0
      %v738 = vadd.f32 %v669, %v737
      %v739 = vpop.f32.mrb[0].mxu0
      %740 = vmatprep.mubr.f32.mxu0 0.0
      %741 = vmatmul.mubr.f32.gmra.mrb[0].mxu0 %v345
      %v742 = vpop.f32.mrb[0].mxu0
      %v743 = vadd.f32 %v669, %v742
      %v744 = vpop.f32.mrb[0].mxu0
      %745 = vmatprep.mubr.f32.mxu0 0.0
      %746 = vmatmul.mubr.f32.gmra.mrb[0].mxu0 %v348
      %v747 = vpop.f32.mrb[0].mxu0
      %v748 = vadd.f32 %v669, %v747
      %v749 = vpop.f32.mrb[0].mxu0
      %750 = vmatprep.mubr.f32.mxu0 0.0
      %751 = vmatmul.mubr.f32.gmra.mrb[0].mxu0 %v351
      %v752 = vpop.f32.mrb[0].mxu0
      %v753 = vadd.f32 %v669, %v752
      %v754 = vpop.f32.mrb[0].mxu0
      %755 = vmatprep.mubr.f32.mxu0 0.0
      %756 = vmatmul.mubr.f32.gmra.mrb[0].mxu0 %v354
      %v757 = vpop.f32.mrb[0].mxu0
      %v758 = vadd.f32 %v669, %v757
      %v759 = vpop.f32.mrb[0].mxu0
      %760 = vmatprep.mubr.f32.mxu0 0.0
      %761 = vmatmul.mubr.f32.gmra.mrb[0].mxu0 %v357
      %v762 = vpop.f32.mrb[0].mxu0
      %v763 = vadd.f32 %v669, %v762
      %v764 = vpop.f32.mrb[0].mxu0
      %765 = vmatprep.mubr.f32.mxu0 0.0
      %766 = vmatmul.mubr.f32.gmra.mrb[0].mxu0 %v360
      %v767 = vpop.f32.mrb[0].mxu0
      %v768 = vadd.f32 %v669, %v767
      %v769 = vpop.f32.mrb[0].mxu0
      %770 = vmatprep.mubr.f32.mxu0 0.0
      %771 = vmatmul.mubr.f32.gmra.mrb[0].mxu0 %v363
      %v772 = vpop.f32.mrb[0].mxu0
      %v773 = vadd.f32 %v669, %v772
      %v774 = vpop.f32.mrb[0].mxu0
      %775 = vmatprep.mubr.f32.mxu0 0.0
      %776 = vmatmul.mubr.f32.gmra.mrb[0].mxu0 %v366
      %v777 = vpop.f32.mrb[0].mxu0
      %v778 = vadd.f32 %v669, %v777
      %v779 = vpop.f32.mrb[0].mxu0
      %780 = vmatprep.mubr.f32.mxu0 0.0
      %781 = vmatmul.mubr.f32.gmra.mrb[0].mxu0 %v369
      %v782 = vpop.f32.mrb[0].mxu0
      %v783 = vadd.f32 %v669, %v782
      %v784 = vpop.f32.mrb[0].mxu0
      %785 = vmatprep.mubr.f32.mxu0 0.0
      %786 = vmatmul.mubr.f32.gmra.mrb[0].mxu0 %v372
      %v787 = vpop.f32.mrb[0].mxu0
      %v788 = vadd.f32 %v669, %v787
      %v789 = vpop.f32.mrb[0].mxu0
      %790 = vmatprep.mubr.f32.mxu0 0.0
      %791 = vmatmul.mubr.f32.gmra.mrb[0].mxu0 %v375
      %v792 = vpop.f32.mrb[0].mxu0
      %v793 = vadd.f32 %v669, %v792
      %v794 = vpop.f32.mrb[0].mxu0
      %795 = vmatprep.mubr.f32.mxu0 0.0
      %796 = vmatmul.mubr.f32.gmra.mrb[0].mxu0 %v378
      %v797 = vpop.f32.mrb[0].mxu0
      %v798 = vadd.f32 %v669, %v797
      %v799 = vpop.f32.mrb[0].mxu0
      %800 = vmatprep.mubr.f32.mxu0 0.0
      %801 = vmatmul.mubr.f32.gmra.mrb[0].mxu0 %v381
      %v802 = vpop.f32.mrb[0].mxu0
      %v803 = vadd.f32 %v669, %v802
      %v804 = vpop.f32.mrb[0].mxu0
      %805 = vmatprep.mubr.f32.mxu0 0.0
      %806 = vmatmul.mubr.f32.gmra.mrb[0].mxu0 %v384
      %v807 = vpop.f32.mrb[0].mxu0
      %v808 = vadd.f32 %v669, %v807
      %v809 = vpop.f32.mrb[0].mxu0
      %810 = vmatprep.mubr.f32.mxu0 0.0
      %811 = vmatmul.mubr.f32.gmra.mrb[0].mxu0 %v387
      %v812 = vpop.f32.mrb[0].mxu0
      %v813 = vadd.f32 %v669, %v812
      %v814 = vpop.f32.mrb[0].mxu0
      %815 = vmatprep.mubr.f32.mxu0 0.0
      %816 = vmatmul.mubr.f32.gmra.mrb[0].mxu0 %v390
      %v817 = vpop.f32.mrb[0].mxu0
      %v818 = vadd.f32 %v669, %v817
      %v819 = vpop.f32.mrb[0].mxu0
      %820 = vmatprep.mubr.f32.mxu0 0.0
      %821 = vmatmul.mubr.f32.gmra.mrb[0].mxu0 %v393
      %v822 = vpop.f32.mrb[0].mxu0
      %v823 = vadd.f32 %v669, %v822
      %v824 = vpop.f32.mrb[0].mxu0
      %825 = vmatprep.mubr.f32.mxu0 0.0
      %826 = vmatmul.mubr.f32.gmra.mrb[0].mxu0 %v396
      %v827 = vpop.f32.mrb[0].mxu0
      %v828 = vadd.f32 %v669, %v827
      %v829 = vpop.f32.mrb[0].mxu0
      %830 = vmatprep.mubr.f32.mxu0 0.0
      %831 = vmatmul.mubr.f32.gmra.mrb[0].mxu0 %v399
      %v832 = vpop.f32.mrb[0].mxu0
      %v833 = vadd.f32 %v669, %v832
      %v834 = vpop.f32.mrb[0].mxu0
      %835 = vmatprep.mubr.f32.mxu0 0.0
      %836 = vmatmul.mubr.f32.gmra.mrb[0].mxu0 %v402
      %v837 = vpop.f32.mrb[0].mxu0
      %v838 = vadd.f32 %v669, %v837
      %v839 = vpop.f32.mrb[0].mxu0
      %840 = vmatprep.mubr.f32.mxu0 0.0
      %841 = vmatmul.mubr.f32.gmra.mrb[0].mxu0 %v405
      %v842 = vpop.f32.mrb[0].mxu0
      %v843 = vadd.f32 %v669, %v842
      %v844 = vpop.f32.mrb[0].mxu0
      %845 = vmatprep.mubr.f32.mxu0 0.0
      %846 = vmatmul.mubr.f32.gmra.mrb[0].mxu0 %v408
      %v847 = vpop.f32.mrb[0].mxu0
      %v848 = vadd.f32 %v669, %v847
      %v849 = vpop.f32.mrb[0].mxu0
      %850 = vmatprep.mubr.f32.mxu0 0.0
      %851 = vmatmul.mubr.f32.gmra.mrb[0].mxu0 %v411
      %v852 = vpop.f32.mrb[0].mxu0
      %v853 = vadd.f32 %v669, %v852
      %v854 = vpop.f32.mrb[0].mxu0
      %855 = vmatprep.mubr.f32.mxu0 0.0
      %856 = vmatmul.mubr.f32.gmra.mrb[0].mxu0 %v414
      %v857 = vpop.f32.mrb[0].mxu0
      %v858 = vadd.f32 %v669, %v857
      %v859 = vpop.f32.mrb[0].mxu0
      %860 = vmatprep.mubr.f32.mxu0 0.0
      %861 = vmatmul.mubr.f32.gmra.mrb[0].mxu0 %v417
      %v862 = vpop.f32.mrb[0].mxu0
      %v863 = vadd.f32 %v669, %v862
      %v864 = vpop.f32.mrb[0].mxu0
      %865 = vmatprep.mubr.f32.mxu0 0.0
      %866 = vmatmul.mubr.f32.gmra.mrb[0].mxu0 %v420
      %v867 = vpop.f32.mrb[0].mxu0
      %v868 = vadd.f32 %v669, %v867
      %v869 = vpop.f32.mrb[0].mxu0
      %870 = vmatprep.mubr.f32.mxu0 0.0
      %871 = vmatmul.mubr.f32.gmra.mrb[0].mxu0 %v423
      %v872 = vpop.f32.mrb[0].mxu0
      %v873 = vadd.f32 %v669, %v872
      %v874 = vpop.f32.mrb[0].mxu0
      %875 = vmatprep.mubr.f32.mxu0 0.0
      %876 = vmatmul.mubr.f32.gmra.mrb[0].mxu0 %v426
      %v877 = vpop.f32.mrb[0].mxu0
      %v878 = vadd.f32 %v669, %v877
      %v879 = vpop.f32.mrb[0].mxu0
      %880 = vmatprep.mubr.f32.mxu0 0.0
      %881 = vmatmul.mubr.f32.gmra.mrb[0].mxu0 %v429
      %v882 = vpop.f32.mrb[0].mxu0
      %v883 = vadd.f32 %v669, %v882
      %v884 = vpop.f32.mrb[0].mxu0
      %885 = vmatprep.mubr.f32.mxu0 0.0
      %886 = vmatmul.mubr.f32.gmra.mrb[0].mxu0 %v432
      %v887 = vpop.f32.mrb[0].mxu0
      %v888 = vadd.f32 %v669, %v887
      %v889 = vpop.f32.mrb[0].mxu0
      %890 = vmatprep.mubr.f32.mxu0 0.0
      %891 = vmatmul.mubr.f32.gmra.mrb[0].mxu0 %v435
      %v892 = vpop.f32.mrb[0].mxu0
      %v893 = vadd.f32 %v669, %v892
      %v894 = vpop.f32.mrb[0].mxu0
      %895 = vdwg.mxu0
      %v896 = vlaneseq
      %v897 = vshrl.u32 %v896, 7
      %v898 = vadd.s32 %v897, 8
      %v899 = vadd.s32 %v897, 16
      %v900 = vadd.s32 %v897, 24
      %v901 = vadd.s32 %v897, 32
      %v902 = vadd.s32 %v897, 40
      %v903 = vadd.s32 %v897, 48
      %v904 = vadd.s32 %v897, 56
      %v905 = vadd.s32 %v897, 64
      %v906 = vadd.s32 %v897, 72
      %v907 = vadd.s32 %v897, 80
      %v908 = vadd.s32 %v897, 88
      %v909 = vadd.s32 %v897, 96
      %v910 = vadd.s32 %v897, 104
      %v911 = vadd.s32 %v897, 112
      %v912 = vadd.s32 %v897, 120
      %v913 = vadd.s32 %v897, 128
      %v914 = vadd.s32 %v897, 136
      %v915 = vadd.s32 %v897, 144
      %v916 = vadd.s32 %v897, 152
      %v917 = vadd.s32 %v897, 160
      %v918 = vadd.s32 %v897, 168
      %v919 = vadd.s32 %v897, 176
      %v920 = vadd.s32 %v897, 184
      %v921 = vadd.s32 %v897, 192
      %v922 = vadd.s32 %v897, 200
      %v923 = vadd.s32 %v897, 208
      %v924 = vadd.s32 %v897, 216
      %v925 = vadd.s32 %v897, 224
      %v926 = vadd.s32 %v897, 232
      %v927 = vadd.s32 %v897, 240
      %v928 = vadd.s32 %v897, 248
      %vm929 = vcmp.lt.s32.totalorder %v897, 0
      %v930 = vsub.s32 0, %v897
      %v931 = vsel %vm929, %v930, %v897
      %v932 = vshrl.u32 %v931, 8
      %v933 = vand.u32 %v931, 255
      %v934 = vsub.s32 0, %v933
      %v935 = vsel %vm929, %v934, %v933
      %vm936 = vcmp.lt.s32.totalorder %v898, 0
      %v937 = vsub.s32 0, %v898
      %v938 = vsel %vm936, %v937, %v898
      %v939 = vshrl.u32 %v938, 8
      %v940 = vand.u32 %v938, 255
      %v941 = vsub.s32 0, %v940
      %v942 = vsel %vm936, %v941, %v940
      %vm943 = vcmp.lt.s32.totalorder %v899, 0
      %v944 = vsub.s32 0, %v899
      %v945 = vsel %vm943, %v944, %v899
      %v946 = vshrl.u32 %v945, 8
      %v947 = vand.u32 %v945, 255
      %v948 = vsub.s32 0, %v947
      %v949 = vsel %vm943, %v948, %v947
      %vm950 = vcmp.lt.s32.totalorder %v900, 0
      %v951 = vsub.s32 0, %v900
      %v952 = vsel %vm950, %v951, %v900
      %v953 = vshrl.u32 %v952, 8
      %v954 = vand.u32 %v952, 255
      %v955 = vsub.s32 0, %v954
      %v956 = vsel %vm950, %v955, %v954
      %vm957 = vcmp.lt.s32.totalorder %v901, 0
      %v958 = vsub.s32 0, %v901
      %v959 = vsel %vm957, %v958, %v901
      %v960 = vshrl.u32 %v959, 8
      %v961 = vand.u32 %v959, 255
      %v962 = vsub.s32 0, %v961
      %v963 = vsel %vm957, %v962, %v961
      %vm964 = vcmp.lt.s32.totalorder %v902, 0
      %v965 = vsub.s32 0, %v902
      %v966 = vsel %vm964, %v965, %v902
      %v967 = vshrl.u32 %v966, 8
      %v968 = vand.u32 %v966, 255
      %v969 = vsub.s32 0, %v968
      %v970 = vsel %vm964, %v969, %v968
      %vm971 = vcmp.lt.s32.totalorder %v903, 0
      %v972 = vsub.s32 0, %v903
      %v973 = vsel %vm971, %v972, %v903
      %v974 = vshrl.u32 %v973, 8
      %v975 = vand.u32 %v973, 255
      %v976 = vsub.s32 0, %v975
      %v977 = vsel %vm971, %v976, %v975
      %vm978 = vcmp.lt.s32.totalorder %v904, 0
      %v979 = vsub.s32 0, %v904
      %v980 = vsel %vm978, %v979, %v904
      %v981 = vshrl.u32 %v980, 8
      %v982 = vand.u32 %v980, 255
      %v983 = vsub.s32 0, %v982
      %v984 = vsel %vm978, %v983, %v982
      %vm985 = vcmp.lt.s32.totalorder %v905, 0
      %v986 = vsub.s32 0, %v905
      %v987 = vsel %vm985, %v986, %v905
      %v988 = vshrl.u32 %v987, 8
      %v989 = vand.u32 %v987, 255
      %v990 = vsub.s32 0, %v989
      %v991 = vsel %vm985, %v990, %v989
      %vm992 = vcmp.lt.s32.totalorder %v906, 0
      %v993 = vsub.s32 0, %v906
      %v994 = vsel %vm992, %v993, %v906
      %v995 = vshrl.u32 %v994, 8
      %v996 = vand.u32 %v994, 255
      %v997 = vsub.s32 0, %v996
      %v998 = vsel %vm992, %v997, %v996
      %vm999 = vcmp.lt.s32.totalorder %v907, 0
      %v1000 = vsub.s32 0, %v907
      %v1001 = vsel %vm999, %v1000, %v907
      %v1002 = vshrl.u32 %v1001, 8
      %v1003 = vand.u32 %v1001, 255
      %v1004 = vsub.s32 0, %v1003
      %v1005 = vsel %vm999, %v1004, %v1003
      %vm1006 = vcmp.lt.s32.totalorder %v908, 0
      %v1007 = vsub.s32 0, %v908
      %v1008 = vsel %vm1006, %v1007, %v908
      %v1009 = vshrl.u32 %v1008, 8
      %v1010 = vand.u32 %v1008, 255
      %v1011 = vsub.s32 0, %v1010
      %v1012 = vsel %vm1006, %v1011, %v1010
      %vm1013 = vcmp.lt.s32.totalorder %v909, 0
      %v1014 = vsub.s32 0, %v909
      %v1015 = vsel %vm1013, %v1014, %v909
      %v1016 = vshrl.u32 %v1015, 8
      %v1017 = vand.u32 %v1015, 255
      %v1018 = vsub.s32 0, %v1017
      %v1019 = vsel %vm1013, %v1018, %v1017
      %vm1020 = vcmp.lt.s32.totalorder %v910, 0
      %v1021 = vsub.s32 0, %v910
      %v1022 = vsel %vm1020, %v1021, %v910
      %v1023 = vshrl.u32 %v1022, 8
      %v1024 = vand.u32 %v1022, 255
      %v1025 = vsub.s32 0, %v1024
      %v1026 = vsel %vm1020, %v1025, %v1024
      %vm1027 = vcmp.lt.s32.totalorder %v911, 0
      %v1028 = vsub.s32 0, %v911
      %v1029 = vsel %vm1027, %v1028, %v911
      %v1030 = vshrl.u32 %v1029, 8
      %v1031 = vand.u32 %v1029, 255
      %v1032 = vsub.s32 0, %v1031
      %v1033 = vsel %vm1027, %v1032, %v1031
      %vm1034 = vcmp.lt.s32.totalorder %v912, 0
      %v1035 = vsub.s32 0, %v912
      %v1036 = vsel %vm1034, %v1035, %v912
      %v1037 = vshrl.u32 %v1036, 8
      %v1038 = vand.u32 %v1036, 255
      %v1039 = vsub.s32 0, %v1038
      %v1040 = vsel %vm1034, %v1039, %v1038
      %vm1041 = vcmp.lt.s32.totalorder %v913, 0
      %v1042 = vsub.s32 0, %v913
      %v1043 = vsel %vm1041, %v1042, %v913
      %v1044 = vshrl.u32 %v1043, 8
      %v1045 = vand.u32 %v1043, 255
      %v1046 = vsub.s32 0, %v1045
      %v1047 = vsel %vm1041, %v1046, %v1045
      %vm1048 = vcmp.lt.s32.totalorder %v914, 0
      %v1049 = vsub.s32 0, %v914
      %v1050 = vsel %vm1048, %v1049, %v914
      %v1051 = vshrl.u32 %v1050, 8
      %v1052 = vand.u32 %v1050, 255
      %v1053 = vsub.s32 0, %v1052
      %v1054 = vsel %vm1048, %v1053, %v1052
      %vm1055 = vcmp.lt.s32.totalorder %v915, 0
      %v1056 = vsub.s32 0, %v915
      %v1057 = vsel %vm1055, %v1056, %v915
      %v1058 = vshrl.u32 %v1057, 8
      %v1059 = vand.u32 %v1057, 255
      %v1060 = vsub.s32 0, %v1059
      %v1061 = vsel %vm1055, %v1060, %v1059
      %vm1062 = vcmp.lt.s32.totalorder %v916, 0
      %v1063 = vsub.s32 0, %v916
      %v1064 = vsel %vm1062, %v1063, %v916
      %v1065 = vshrl.u32 %v1064, 8
      %v1066 = vand.u32 %v1064, 255
      %v1067 = vsub.s32 0, %v1066
      %v1068 = vsel %vm1062, %v1067, %v1066
      %vm1069 = vcmp.lt.s32.totalorder %v917, 0
      %v1070 = vsub.s32 0, %v917
      %v1071 = vsel %vm1069, %v1070, %v917
      %v1072 = vshrl.u32 %v1071, 8
      %v1073 = vand.u32 %v1071, 255
      %v1074 = vsub.s32 0, %v1073
      %v1075 = vsel %vm1069, %v1074, %v1073
      %vm1076 = vcmp.lt.s32.totalorder %v918, 0
      %v1077 = vsub.s32 0, %v918
      %v1078 = vsel %vm1076, %v1077, %v918
      %v1079 = vshrl.u32 %v1078, 8
      %v1080 = vand.u32 %v1078, 255
      %v1081 = vsub.s32 0, %v1080
      %v1082 = vsel %vm1076, %v1081, %v1080
      %vm1083 = vcmp.lt.s32.totalorder %v919, 0
      %v1084 = vsub.s32 0, %v919
      %v1085 = vsel %vm1083, %v1084, %v919
      %v1086 = vshrl.u32 %v1085, 8
      %v1087 = vand.u32 %v1085, 255
      %v1088 = vsub.s32 0, %v1087
      %v1089 = vsel %vm1083, %v1088, %v1087
      %vm1090 = vcmp.lt.s32.totalorder %v920, 0
      %v1091 = vsub.s32 0, %v920
      %v1092 = vsel %vm1090, %v1091, %v920
      %v1093 = vshrl.u32 %v1092, 8
      %v1094 = vand.u32 %v1092, 255
      %v1095 = vsub.s32 0, %v1094
      %v1096 = vsel %vm1090, %v1095, %v1094
      %vm1097 = vcmp.lt.s32.totalorder %v921, 0
      %v1098 = vsub.s32 0, %v921
      %v1099 = vsel %vm1097, %v1098, %v921
      %v1100 = vshrl.u32 %v1099, 8
      %v1101 = vand.u32 %v1099, 255
      %v1102 = vsub.s32 0, %v1101
      %v1103 = vsel %vm1097, %v1102, %v1101
      %vm1104 = vcmp.lt.s32.totalorder %v922, 0
      %v1105 = vsub.s32 0, %v922
      %v1106 = vsel %vm1104, %v1105, %v922
      %v1107 = vshrl.u32 %v1106, 8
      %v1108 = vand.u32 %v1106, 255
      %v1109 = vsub.s32 0, %v1108
      %v1110 = vsel %vm1104, %v1109, %v1108
      %vm1111 = vcmp.lt.s32.totalorder %v923, 0
      %v1112 = vsub.s32 0, %v923
      %v1113 = vsel %vm1111, %v1112, %v923
      %v1114 = vshrl.u32 %v1113, 8
      %v1115 = vand.u32 %v1113, 255
      %v1116 = vsub.s32 0, %v1115
      %v1117 = vsel %vm1111, %v1116, %v1115
      %vm1118 = vcmp.lt.s32.totalorder %v924, 0
      %v1119 = vsub.s32 0, %v924
      %v1120 = vsel %vm1118, %v1119, %v924
      %v1121 = vshrl.u32 %v1120, 8
      %v1122 = vand.u32 %v1120, 255
      %v1123 = vsub.s32 0, %v1122
      %v1124 = vsel %vm1118, %v1123, %v1122
      %vm1125 = vcmp.lt.s32.totalorder %v925, 0
      %v1126 = vsub.s32 0, %v925
      %v1127 = vsel %vm1125, %v1126, %v925
      %v1128 = vshrl.u32 %v1127, 8
      %v1129 = vand.u32 %v1127, 255
      %v1130 = vsub.s32 0, %v1129
      %v1131 = vsel %vm1125, %v1130, %v1129
      %vm1132 = vcmp.lt.s32.totalorder %v926, 0
      %v1133 = vsub.s32 0, %v926
      %v1134 = vsel %vm1132, %v1133, %v926
      %v1135 = vshrl.u32 %v1134, 8
      %v1136 = vand.u32 %v1134, 255
      %v1137 = vsub.s32 0, %v1136
      %v1138 = vsel %vm1132, %v1137, %v1136
      %vm1139 = vcmp.lt.s32.totalorder %v927, 0
      %v1140 = vsub.s32 0, %v927
      %v1141 = vsel %vm1139, %v1140, %v927
      %v1142 = vshrl.u32 %v1141, 8
      %v1143 = vand.u32 %v1141, 255
      %v1144 = vsub.s32 0, %v1143
      %v1145 = vsel %vm1139, %v1144, %v1143
      %vm1146 = vcmp.lt.s32.totalorder %v928, 0
      %v1147 = vsub.s32 0, %v928
      %v1148 = vsel %vm1146, %v1147, %v928
      %v1149 = vshrl.u32 %v1148, 8
      %v1150 = vand.u32 %v1148, 255
      %v1151 = vsub.s32 0, %v1150
      %v1152 = vsel %vm1146, %v1151, %v1150
      %vm1153 = vcmp.ne.s32.totalorder %v935, 0
      %vm1154 = vcmp.ne.s32.totalorder %v942, 0
      %vm1155 = vcmp.ne.s32.totalorder %v949, 0
      %vm1156 = vcmp.ne.s32.totalorder %v956, 0
      %vm1157 = vcmp.ne.s32.totalorder %v963, 0
      %vm1158 = vcmp.ne.s32.totalorder %v970, 0
      %vm1159 = vcmp.ne.s32.totalorder %v977, 0
      %vm1160 = vcmp.ne.s32.totalorder %v984, 0
      %vm1161 = vcmp.ne.s32.totalorder %v991, 0
      %vm1162 = vcmp.ne.s32.totalorder %v998, 0
      %vm1163 = vcmp.ne.s32.totalorder %v1005, 0
      %vm1164 = vcmp.ne.s32.totalorder %v1012, 0
      %vm1165 = vcmp.ne.s32.totalorder %v1019, 0
      %vm1166 = vcmp.ne.s32.totalorder %v1026, 0
      %vm1167 = vcmp.ne.s32.totalorder %v1033, 0
      %vm1168 = vcmp.ne.s32.totalorder %v1040, 0
      %vm1169 = vcmp.ne.s32.totalorder %v1047, 0
      %vm1170 = vcmp.ne.s32.totalorder %v1054, 0
      %vm1171 = vcmp.ne.s32.totalorder %v1061, 0
      %vm1172 = vcmp.ne.s32.totalorder %v1068, 0
      %vm1173 = vcmp.ne.s32.totalorder %v1075, 0
      %vm1174 = vcmp.ne.s32.totalorder %v1082, 0
      %vm1175 = vcmp.ne.s32.totalorder %v1089, 0
      %vm1176 = vcmp.ne.s32.totalorder %v1096, 0
      %vm1177 = vcmp.ne.s32.totalorder %v1103, 0
      %vm1178 = vcmp.ne.s32.totalorder %v1110, 0
      %vm1179 = vcmp.ne.s32.totalorder %v1117, 0
      %vm1180 = vcmp.ne.s32.totalorder %v1124, 0
      %vm1181 = vcmp.ne.s32.totalorder %v1131, 0
      %vm1182 = vcmp.ne.s32.totalorder %v1138, 0
      %vm1183 = vcmp.ne.s32.totalorder %v1145, 0
      %vm1184 = vcmp.ne.s32.totalorder %v1152, 0
      %vm1185 = vcmp.lt.s32.totalorder %v935, 0
      %vm1186 = vcmp.lt.s32.totalorder %v942, 0
      %vm1187 = vcmp.lt.s32.totalorder %v949, 0
      %vm1188 = vcmp.lt.s32.totalorder %v956, 0
      %vm1189 = vcmp.lt.s32.totalorder %v963, 0
      %vm1190 = vcmp.lt.s32.totalorder %v970, 0
      %vm1191 = vcmp.lt.s32.totalorder %v977, 0
      %vm1192 = vcmp.lt.s32.totalorder %v984, 0
      %vm1193 = vcmp.lt.s32.totalorder %v991, 0
      %vm1194 = vcmp.lt.s32.totalorder %v998, 0
      %vm1195 = vcmp.lt.s32.totalorder %v1005, 0
      %vm1196 = vcmp.lt.s32.totalorder %v1012, 0
      %vm1197 = vcmp.lt.s32.totalorder %v1019, 0
      %vm1198 = vcmp.lt.s32.totalorder %v1026, 0
      %vm1199 = vcmp.lt.s32.totalorder %v1033, 0
      %vm1200 = vcmp.lt.s32.totalorder %v1040, 0
      %vm1201 = vcmp.lt.s32.totalorder %v1047, 0
      %vm1202 = vcmp.lt.s32.totalorder %v1054, 0
      %vm1203 = vcmp.lt.s32.totalorder %v1061, 0
      %vm1204 = vcmp.lt.s32.totalorder %v1068, 0
      %vm1205 = vcmp.lt.s32.totalorder %v1075, 0
      %vm1206 = vcmp.lt.s32.totalorder %v1082, 0
      %vm1207 = vcmp.lt.s32.totalorder %v1089, 0
      %vm1208 = vcmp.lt.s32.totalorder %v1096, 0
      %vm1209 = vcmp.lt.s32.totalorder %v1103, 0
      %vm1210 = vcmp.lt.s32.totalorder %v1110, 0
      %vm1211 = vcmp.lt.s32.totalorder %v1117, 0
      %vm1212 = vcmp.lt.s32.totalorder %v1124, 0
      %vm1213 = vcmp.lt.s32.totalorder %v1131, 0
      %vm1214 = vcmp.lt.s32.totalorder %v1138, 0
      %vm1215 = vcmp.lt.s32.totalorder %v1145, 0
      %vm1216 = vcmp.lt.s32.totalorder %v1152, 0
      %vm1217 = vmand %vm1185, %vm1153
      %vm1218 = vmand %vm1186, %vm1154
      %vm1219 = vmand %vm1187, %vm1155
      %vm1220 = vmand %vm1188, %vm1156
      %vm1221 = vmand %vm1189, %vm1157
      %vm1222 = vmand %vm1190, %vm1158
      %vm1223 = vmand %vm1191, %vm1159
      %vm1224 = vmand %vm1192, %vm1160
      %vm1225 = vmand %vm1193, %vm1161
      %vm1226 = vmand %vm1194, %vm1162
      %vm1227 = vmand %vm1195, %vm1163
      %vm1228 = vmand %vm1196, %vm1164
      %vm1229 = vmand %vm1197, %vm1165
      %vm1230 = vmand %vm1198, %vm1166
      %vm1231 = vmand %vm1199, %vm1167
      %vm1232 = vmand %vm1200, %vm1168
      %vm1233 = vmand %vm1201, %vm1169
      %vm1234 = vmand %vm1202, %vm1170
      %vm1235 = vmand %vm1203, %vm1171
      %vm1236 = vmand %vm1204, %vm1172
      %vm1237 = vmand %vm1205, %vm1173
      %vm1238 = vmand %vm1206, %vm1174
      %vm1239 = vmand %vm1207, %vm1175
      %vm1240 = vmand %vm1208, %vm1176
      %vm1241 = vmand %vm1209, %vm1177
      %vm1242 = vmand %vm1210, %vm1178
      %vm1243 = vmand %vm1211, %vm1179
      %vm1244 = vmand %vm1212, %vm1180
      %vm1245 = vmand %vm1213, %vm1181
      %vm1246 = vmand %vm1214, %vm1182
      %vm1247 = vmand %vm1215, %vm1183
      %vm1248 = vmand %vm1216, %vm1184
      %v1249 = vadd.s32 %v935, 256
      %v1250 = vadd.s32 %v942, 256
      %v1251 = vadd.s32 %v949, 256
      %v1252 = vadd.s32 %v956, 256
      %v1253 = vadd.s32 %v963, 256
      %v1254 = vadd.s32 %v970, 256
      %v1255 = vadd.s32 %v977, 256
      %v1256 = vadd.s32 %v984, 256
      %v1257 = vadd.s32 %v991, 256
      %v1258 = vadd.s32 %v998, 256
      %v1259 = vadd.s32 %v1005, 256
      %v1260 = vadd.s32 %v1012, 256
      %v1261 = vadd.s32 %v1019, 256
      %v1262 = vadd.s32 %v1026, 256
      %v1263 = vadd.s32 %v1033, 256
      %v1264 = vadd.s32 %v1040, 256
      %v1265 = vadd.s32 %v1047, 256
      %v1266 = vadd.s32 %v1054, 256
      %v1267 = vadd.s32 %v1061, 256
      %v1268 = vadd.s32 %v1068, 256
      %v1269 = vadd.s32 %v1075, 256
      %v1270 = vadd.s32 %v1082, 256
      %v1271 = vadd.s32 %v1089, 256
      %v1272 = vadd.s32 %v1096, 256
      %v1273 = vadd.s32 %v1103, 256
      %v1274 = vadd.s32 %v1110, 256
      %v1275 = vadd.s32 %v1117, 256
      %v1276 = vadd.s32 %v1124, 256
      %v1277 = vadd.s32 %v1131, 256
      %v1278 = vadd.s32 %v1138, 256
      %v1279 = vadd.s32 %v1145, 256
      %v1280 = vadd.s32 %v1152, 256
      %v1281 = vsel %vm1217, %v1249, %v935
      %v1282 = vsel %vm1218, %v1250, %v942
      %v1283 = vsel %vm1219, %v1251, %v949
      %v1284 = vsel %vm1220, %v1252, %v956
      %v1285 = vsel %vm1221, %v1253, %v963
      %v1286 = vsel %vm1222, %v1254, %v970
      %v1287 = vsel %vm1223, %v1255, %v977
      %v1288 = vsel %vm1224, %v1256, %v984
      %v1289 = vsel %vm1225, %v1257, %v991
      %v1290 = vsel %vm1226, %v1258, %v998
      %v1291 = vsel %vm1227, %v1259, %v1005
      %v1292 = vsel %vm1228, %v1260, %v1012
      %v1293 = vsel %vm1229, %v1261, %v1019
      %v1294 = vsel %vm1230, %v1262, %v1026
      %v1295 = vsel %vm1231, %v1263, %v1033
      %v1296 = vsel %vm1232, %v1264, %v1040
      %v1297 = vsel %vm1233, %v1265, %v1047
      %v1298 = vsel %vm1234, %v1266, %v1054
      %v1299 = vsel %vm1235, %v1267, %v1061
      %v1300 = vsel %vm1236, %v1268, %v1068
      %v1301 = vsel %vm1237, %v1269, %v1075
      %v1302 = vsel %vm1238, %v1270, %v1082
      %v1303 = vsel %vm1239, %v1271, %v1089
      %v1304 = vsel %vm1240, %v1272, %v1096
      %v1305 = vsel %vm1241, %v1273, %v1103
      %v1306 = vsel %vm1242, %v1274, %v1110
      %v1307 = vsel %vm1243, %v1275, %v1117
      %v1308 = vsel %vm1244, %v1276, %v1124
      %v1309 = vsel %vm1245, %v1277, %v1131
      %v1310 = vsel %vm1246, %v1278, %v1138
      %v1311 = vsel %vm1247, %v1279, %v1145
      %v1312 = vsel %vm1248, %v1280, %v1152
      %vm1313 = vcmp.lt.s32.totalorder %v897, 0
      %v1314 = vsub.s32 0, %v897
      %v1315 = vsel %vm1313, %v1314, %v897
      %v1316 = vshrl.u32 %v1315, 4
      %v1317 = vand.u32 %v1315, 15
      %v1318 = vsub.s32 0, %v1317
      %v1319 = vsel %vm1313, %v1318, %v1317
      %vm1320 = vcmp.lt.s32.totalorder %v898, 0
      %v1321 = vsub.s32 0, %v898
      %v1322 = vsel %vm1320, %v1321, %v898
      %v1323 = vshrl.u32 %v1322, 4
      %v1324 = vand.u32 %v1322, 15
      %v1325 = vsub.s32 0, %v1324
      %v1326 = vsel %vm1320, %v1325, %v1324
      %vm1327 = vcmp.lt.s32.totalorder %v899, 0
      %v1328 = vsub.s32 0, %v899
      %v1329 = vsel %vm1327, %v1328, %v899
      %v1330 = vshrl.u32 %v1329, 4
      %v1331 = vand.u32 %v1329, 15
      %v1332 = vsub.s32 0, %v1331
      %v1333 = vsel %vm1327, %v1332, %v1331
      %vm1334 = vcmp.lt.s32.totalorder %v900, 0
      %v1335 = vsub.s32 0, %v900
      %v1336 = vsel %vm1334, %v1335, %v900
      %v1337 = vshrl.u32 %v1336, 4
      %v1338 = vand.u32 %v1336, 15
      %v1339 = vsub.s32 0, %v1338
      %v1340 = vsel %vm1334, %v1339, %v1338
      %vm1341 = vcmp.lt.s32.totalorder %v901, 0
      %v1342 = vsub.s32 0, %v901
      %v1343 = vsel %vm1341, %v1342, %v901
      %v1344 = vshrl.u32 %v1343, 4
      %v1345 = vand.u32 %v1343, 15
      %v1346 = vsub.s32 0, %v1345
      %v1347 = vsel %vm1341, %v1346, %v1345
      %vm1348 = vcmp.lt.s32.totalorder %v902, 0
      %v1349 = vsub.s32 0, %v902
      %v1350 = vsel %vm1348, %v1349, %v902
      %v1351 = vshrl.u32 %v1350, 4
      %v1352 = vand.u32 %v1350, 15
      %v1353 = vsub.s32 0, %v1352
      %v1354 = vsel %vm1348, %v1353, %v1352
      %vm1355 = vcmp.lt.s32.totalorder %v903, 0
      %v1356 = vsub.s32 0, %v903
      %v1357 = vsel %vm1355, %v1356, %v903
      %v1358 = vshrl.u32 %v1357, 4
      %v1359 = vand.u32 %v1357, 15
      %v1360 = vsub.s32 0, %v1359
      %v1361 = vsel %vm1355, %v1360, %v1359
      %vm1362 = vcmp.lt.s32.totalorder %v904, 0
      %v1363 = vsub.s32 0, %v904
      %v1364 = vsel %vm1362, %v1363, %v904
      %v1365 = vshrl.u32 %v1364, 4
      %v1366 = vand.u32 %v1364, 15
      %v1367 = vsub.s32 0, %v1366
      %v1368 = vsel %vm1362, %v1367, %v1366
      %vm1369 = vcmp.lt.s32.totalorder %v905, 0
      %v1370 = vsub.s32 0, %v905
      %v1371 = vsel %vm1369, %v1370, %v905
      %v1372 = vshrl.u32 %v1371, 4
      %v1373 = vand.u32 %v1371, 15
      %v1374 = vsub.s32 0, %v1373
      %v1375 = vsel %vm1369, %v1374, %v1373
      %vm1376 = vcmp.lt.s32.totalorder %v906, 0
      %v1377 = vsub.s32 0, %v906
      %v1378 = vsel %vm1376, %v1377, %v906
      %v1379 = vshrl.u32 %v1378, 4
      %v1380 = vand.u32 %v1378, 15
      %v1381 = vsub.s32 0, %v1380
      %v1382 = vsel %vm1376, %v1381, %v1380
      %vm1383 = vcmp.lt.s32.totalorder %v907, 0
      %v1384 = vsub.s32 0, %v907
      %v1385 = vsel %vm1383, %v1384, %v907
      %v1386 = vshrl.u32 %v1385, 4
      %v1387 = vand.u32 %v1385, 15
      %v1388 = vsub.s32 0, %v1387
      %v1389 = vsel %vm1383, %v1388, %v1387
      %vm1390 = vcmp.lt.s32.totalorder %v908, 0
      %v1391 = vsub.s32 0, %v908
      %v1392 = vsel %vm1390, %v1391, %v908
      %v1393 = vshrl.u32 %v1392, 4
      %v1394 = vand.u32 %v1392, 15
      %v1395 = vsub.s32 0, %v1394
      %v1396 = vsel %vm1390, %v1395, %v1394
      %vm1397 = vcmp.lt.s32.totalorder %v909, 0
      %v1398 = vsub.s32 0, %v909
      %v1399 = vsel %vm1397, %v1398, %v909
      %v1400 = vshrl.u32 %v1399, 4
      %v1401 = vand.u32 %v1399, 15
      %v1402 = vsub.s32 0, %v1401
      %v1403 = vsel %vm1397, %v1402, %v1401
      %vm1404 = vcmp.lt.s32.totalorder %v910, 0
      %v1405 = vsub.s32 0, %v910
      %v1406 = vsel %vm1404, %v1405, %v910
      %v1407 = vshrl.u32 %v1406, 4
      %v1408 = vand.u32 %v1406, 15
      %v1409 = vsub.s32 0, %v1408
      %v1410 = vsel %vm1404, %v1409, %v1408
      %vm1411 = vcmp.lt.s32.totalorder %v911, 0
      %v1412 = vsub.s32 0, %v911
      %v1413 = vsel %vm1411, %v1412, %v911
      %v1414 = vshrl.u32 %v1413, 4
      %v1415 = vand.u32 %v1413, 15
      %v1416 = vsub.s32 0, %v1415
      %v1417 = vsel %vm1411, %v1416, %v1415
      %vm1418 = vcmp.lt.s32.totalorder %v912, 0
      %v1419 = vsub.s32 0, %v912
      %v1420 = vsel %vm1418, %v1419, %v912
      %v1421 = vshrl.u32 %v1420, 4
      %v1422 = vand.u32 %v1420, 15
      %v1423 = vsub.s32 0, %v1422
      %v1424 = vsel %vm1418, %v1423, %v1422
      %vm1425 = vcmp.lt.s32.totalorder %v913, 0
      %v1426 = vsub.s32 0, %v913
      %v1427 = vsel %vm1425, %v1426, %v913
      %v1428 = vshrl.u32 %v1427, 4
      %v1429 = vand.u32 %v1427, 15
      %v1430 = vsub.s32 0, %v1429
      %v1431 = vsel %vm1425, %v1430, %v1429
      %vm1432 = vcmp.lt.s32.totalorder %v914, 0
      %v1433 = vsub.s32 0, %v914
      %v1434 = vsel %vm1432, %v1433, %v914
      %v1435 = vshrl.u32 %v1434, 4
      %v1436 = vand.u32 %v1434, 15
      %v1437 = vsub.s32 0, %v1436
      %v1438 = vsel %vm1432, %v1437, %v1436
      %vm1439 = vcmp.lt.s32.totalorder %v915, 0
      %v1440 = vsub.s32 0, %v915
      %v1441 = vsel %vm1439, %v1440, %v915
      %v1442 = vshrl.u32 %v1441, 4
      %v1443 = vand.u32 %v1441, 15
      %v1444 = vsub.s32 0, %v1443
      %v1445 = vsel %vm1439, %v1444, %v1443
      %vm1446 = vcmp.lt.s32.totalorder %v916, 0
      %v1447 = vsub.s32 0, %v916
      %v1448 = vsel %vm1446, %v1447, %v916
      %v1449 = vshrl.u32 %v1448, 4
      %v1450 = vand.u32 %v1448, 15
      %v1451 = vsub.s32 0, %v1450
      %v1452 = vsel %vm1446, %v1451, %v1450
      %vm1453 = vcmp.lt.s32.totalorder %v917, 0
      %v1454 = vsub.s32 0, %v917
      %v1455 = vsel %vm1453, %v1454, %v917
      %v1456 = vshrl.u32 %v1455, 4
      %v1457 = vand.u32 %v1455, 15
      %v1458 = vsub.s32 0, %v1457
      %v1459 = vsel %vm1453, %v1458, %v1457
      %vm1460 = vcmp.lt.s32.totalorder %v918, 0
      %v1461 = vsub.s32 0, %v918
      %v1462 = vsel %vm1460, %v1461, %v918
      %v1463 = vshrl.u32 %v1462, 4
      %v1464 = vand.u32 %v1462, 15
      %v1465 = vsub.s32 0, %v1464
      %v1466 = vsel %vm1460, %v1465, %v1464
      %vm1467 = vcmp.lt.s32.totalorder %v919, 0
      %v1468 = vsub.s32 0, %v919
      %v1469 = vsel %vm1467, %v1468, %v919
      %v1470 = vshrl.u32 %v1469, 4
      %v1471 = vand.u32 %v1469, 15
      %v1472 = vsub.s32 0, %v1471
      %v1473 = vsel %vm1467, %v1472, %v1471
      %vm1474 = vcmp.lt.s32.totalorder %v920, 0
      %v1475 = vsub.s32 0, %v920
      %v1476 = vsel %vm1474, %v1475, %v920
      %v1477 = vshrl.u32 %v1476, 4
      %v1478 = vand.u32 %v1476, 15
      %v1479 = vsub.s32 0, %v1478
      %v1480 = vsel %vm1474, %v1479, %v1478
      %vm1481 = vcmp.lt.s32.totalorder %v921, 0
      %v1482 = vsub.s32 0, %v921
      %v1483 = vsel %vm1481, %v1482, %v921
      %v1484 = vshrl.u32 %v1483, 4
      %v1485 = vand.u32 %v1483, 15
      %v1486 = vsub.s32 0, %v1485
      %v1487 = vsel %vm1481, %v1486, %v1485
      %vm1488 = vcmp.lt.s32.totalorder %v922, 0
      %v1489 = vsub.s32 0, %v922
      %v1490 = vsel %vm1488, %v1489, %v922
      %v1491 = vshrl.u32 %v1490, 4
      %v1492 = vand.u32 %v1490, 15
      %v1493 = vsub.s32 0, %v1492
      %v1494 = vsel %vm1488, %v1493, %v1492
      %vm1495 = vcmp.lt.s32.totalorder %v923, 0
      %v1496 = vsub.s32 0, %v923
      %v1497 = vsel %vm1495, %v1496, %v923
      %v1498 = vshrl.u32 %v1497, 4
      %v1499 = vand.u32 %v1497, 15
      %v1500 = vsub.s32 0, %v1499
      %v1501 = vsel %vm1495, %v1500, %v1499
      %vm1502 = vcmp.lt.s32.totalorder %v924, 0
      %v1503 = vsub.s32 0, %v924
      %v1504 = vsel %vm1502, %v1503, %v924
      %v1505 = vshrl.u32 %v1504, 4
      %v1506 = vand.u32 %v1504, 15
      %v1507 = vsub.s32 0, %v1506
      %v1508 = vsel %vm1502, %v1507, %v1506
      %vm1509 = vcmp.lt.s32.totalorder %v925, 0
      %v1510 = vsub.s32 0, %v925
      %v1511 = vsel %vm1509, %v1510, %v925
      %v1512 = vshrl.u32 %v1511, 4
      %v1513 = vand.u32 %v1511, 15
      %v1514 = vsub.s32 0, %v1513
      %v1515 = vsel %vm1509, %v1514, %v1513
      %vm1516 = vcmp.lt.s32.totalorder %v926, 0
      %v1517 = vsub.s32 0, %v926
      %v1518 = vsel %vm1516, %v1517, %v926
      %v1519 = vshrl.u32 %v1518, 4
      %v1520 = vand.u32 %v1518, 15
      %v1521 = vsub.s32 0, %v1520
      %v1522 = vsel %vm1516, %v1521, %v1520
      %vm1523 = vcmp.lt.s32.totalorder %v927, 0
      %v1524 = vsub.s32 0, %v927
      %v1525 = vsel %vm1523, %v1524, %v927
      %v1526 = vshrl.u32 %v1525, 4
      %v1527 = vand.u32 %v1525, 15
      %v1528 = vsub.s32 0, %v1527
      %v1529 = vsel %vm1523, %v1528, %v1527
      %vm1530 = vcmp.lt.s32.totalorder %v928, 0
      %v1531 = vsub.s32 0, %v928
      %v1532 = vsel %vm1530, %v1531, %v928
      %v1533 = vshrl.u32 %v1532, 4
      %v1534 = vand.u32 %v1532, 15
      %v1535 = vsub.s32 0, %v1534
      %v1536 = vsel %vm1530, %v1535, %v1534
      %vm1537 = vcmp.ne.s32.totalorder %v1319, 0
      %vm1538 = vcmp.ne.s32.totalorder %v1326, 0
      %vm1539 = vcmp.ne.s32.totalorder %v1333, 0
      %vm1540 = vcmp.ne.s32.totalorder %v1340, 0
      %vm1541 = vcmp.ne.s32.totalorder %v1347, 0
      %vm1542 = vcmp.ne.s32.totalorder %v1354, 0
      %vm1543 = vcmp.ne.s32.totalorder %v1361, 0
      %vm1544 = vcmp.ne.s32.totalorder %v1368, 0
      %vm1545 = vcmp.ne.s32.totalorder %v1375, 0
      %vm1546 = vcmp.ne.s32.totalorder %v1382, 0
      %vm1547 = vcmp.ne.s32.totalorder %v1389, 0
      %vm1548 = vcmp.ne.s32.totalorder %v1396, 0
      %vm1549 = vcmp.ne.s32.totalorder %v1403, 0
      %vm1550 = vcmp.ne.s32.totalorder %v1410, 0
      %vm1551 = vcmp.ne.s32.totalorder %v1417, 0
      %vm1552 = vcmp.ne.s32.totalorder %v1424, 0
      %vm1553 = vcmp.ne.s32.totalorder %v1431, 0
      %vm1554 = vcmp.ne.s32.totalorder %v1438, 0
      %vm1555 = vcmp.ne.s32.totalorder %v1445, 0
      %vm1556 = vcmp.ne.s32.totalorder %v1452, 0
      %vm1557 = vcmp.ne.s32.totalorder %v1459, 0
      %vm1558 = vcmp.ne.s32.totalorder %v1466, 0
      %vm1559 = vcmp.ne.s32.totalorder %v1473, 0
      %vm1560 = vcmp.ne.s32.totalorder %v1480, 0
      %vm1561 = vcmp.ne.s32.totalorder %v1487, 0
      %vm1562 = vcmp.ne.s32.totalorder %v1494, 0
      %vm1563 = vcmp.ne.s32.totalorder %v1501, 0
      %vm1564 = vcmp.ne.s32.totalorder %v1508, 0
      %vm1565 = vcmp.ne.s32.totalorder %v1515, 0
      %vm1566 = vcmp.ne.s32.totalorder %v1522, 0
      %vm1567 = vcmp.ne.s32.totalorder %v1529, 0
      %vm1568 = vcmp.ne.s32.totalorder %v1536, 0
      %vm1569 = vcmp.lt.s32.totalorder %v1319, 0
      %vm1570 = vcmp.lt.s32.totalorder %v1326, 0
      %vm1571 = vcmp.lt.s32.totalorder %v1333, 0
      %vm1572 = vcmp.lt.s32.totalorder %v1340, 0
      %vm1573 = vcmp.lt.s32.totalorder %v1347, 0
      %vm1574 = vcmp.lt.s32.totalorder %v1354, 0
      %vm1575 = vcmp.lt.s32.totalorder %v1361, 0
      %vm1576 = vcmp.lt.s32.totalorder %v1368, 0
      %vm1577 = vcmp.lt.s32.totalorder %v1375, 0
      %vm1578 = vcmp.lt.s32.totalorder %v1382, 0
      %vm1579 = vcmp.lt.s32.totalorder %v1389, 0
      %vm1580 = vcmp.lt.s32.totalorder %v1396, 0
      %vm1581 = vcmp.lt.s32.totalorder %v1403, 0
      %vm1582 = vcmp.lt.s32.totalorder %v1410, 0
      %vm1583 = vcmp.lt.s32.totalorder %v1417, 0
      %vm1584 = vcmp.lt.s32.totalorder %v1424, 0
      %vm1585 = vcmp.lt.s32.totalorder %v1431, 0
      %vm1586 = vcmp.lt.s32.totalorder %v1438, 0
      %vm1587 = vcmp.lt.s32.totalorder %v1445, 0
      %vm1588 = vcmp.lt.s32.totalorder %v1452, 0
      %vm1589 = vcmp.lt.s32.totalorder %v1459, 0
      %vm1590 = vcmp.lt.s32.totalorder %v1466, 0
      %vm1591 = vcmp.lt.s32.totalorder %v1473, 0
      %vm1592 = vcmp.lt.s32.totalorder %v1480, 0
      %vm1593 = vcmp.lt.s32.totalorder %v1487, 0
      %vm1594 = vcmp.lt.s32.totalorder %v1494, 0
      %vm1595 = vcmp.lt.s32.totalorder %v1501, 0
      %vm1596 = vcmp.lt.s32.totalorder %v1508, 0
      %vm1597 = vcmp.lt.s32.totalorder %v1515, 0
      %vm1598 = vcmp.lt.s32.totalorder %v1522, 0
      %vm1599 = vcmp.lt.s32.totalorder %v1529, 0
      %vm1600 = vcmp.lt.s32.totalorder %v1536, 0
      %vm1601 = vmand %vm1569, %vm1537
      %vm1602 = vmand %vm1570, %vm1538
      %vm1603 = vmand %vm1571, %vm1539
      %vm1604 = vmand %vm1572, %vm1540
      %vm1605 = vmand %vm1573, %vm1541
      %vm1606 = vmand %vm1574, %vm1542
      %vm1607 = vmand %vm1575, %vm1543
      %vm1608 = vmand %vm1576, %vm1544
      %vm1609 = vmand %vm1577, %vm1545
      %vm1610 = vmand %vm1578, %vm1546
      %vm1611 = vmand %vm1579, %vm1547
      %vm1612 = vmand %vm1580, %vm1548
      %vm1613 = vmand %vm1581, %vm1549
      %vm1614 = vmand %vm1582, %vm1550
      %vm1615 = vmand %vm1583, %vm1551
      %vm1616 = vmand %vm1584, %vm1552
      %vm1617 = vmand %vm1585, %vm1553
      %vm1618 = vmand %vm1586, %vm1554
      %vm1619 = vmand %vm1587, %vm1555
      %vm1620 = vmand %vm1588, %vm1556
      %vm1621 = vmand %vm1589, %vm1557
      %vm1622 = vmand %vm1590, %vm1558
      %vm1623 = vmand %vm1591, %vm1559
      %vm1624 = vmand %vm1592, %vm1560
      %vm1625 = vmand %vm1593, %vm1561
      %vm1626 = vmand %vm1594, %vm1562
      %vm1627 = vmand %vm1595, %vm1563
      %vm1628 = vmand %vm1596, %vm1564
      %vm1629 = vmand %vm1597, %vm1565
      %vm1630 = vmand %vm1598, %vm1566
      %vm1631 = vmand %vm1599, %vm1567
      %vm1632 = vmand %vm1600, %vm1568
      %v1633 = vadd.s32 %v1319, 16
      %v1634 = vadd.s32 %v1326, 16
      %v1635 = vadd.s32 %v1333, 16
      %v1636 = vadd.s32 %v1340, 16
      %v1637 = vadd.s32 %v1347, 16
      %v1638 = vadd.s32 %v1354, 16
      %v1639 = vadd.s32 %v1361, 16
      %v1640 = vadd.s32 %v1368, 16
      %v1641 = vadd.s32 %v1375, 16
      %v1642 = vadd.s32 %v1382, 16
      %v1643 = vadd.s32 %v1389, 16
      %v1644 = vadd.s32 %v1396, 16
      %v1645 = vadd.s32 %v1403, 16
      %v1646 = vadd.s32 %v1410, 16
      %v1647 = vadd.s32 %v1417, 16
      %v1648 = vadd.s32 %v1424, 16
      %v1649 = vadd.s32 %v1431, 16
      %v1650 = vadd.s32 %v1438, 16
      %v1651 = vadd.s32 %v1445, 16
      %v1652 = vadd.s32 %v1452, 16
      %v1653 = vadd.s32 %v1459, 16
      %v1654 = vadd.s32 %v1466, 16
      %v1655 = vadd.s32 %v1473, 16
      %v1656 = vadd.s32 %v1480, 16
      %v1657 = vadd.s32 %v1487, 16
      %v1658 = vadd.s32 %v1494, 16
      %v1659 = vadd.s32 %v1501, 16
      %v1660 = vadd.s32 %v1508, 16
      %v1661 = vadd.s32 %v1515, 16
      %v1662 = vadd.s32 %v1522, 16
      %v1663 = vadd.s32 %v1529, 16
      %v1664 = vadd.s32 %v1536, 16
      %v1665 = vsel %vm1601, %v1633, %v1319
      %v1666 = vsel %vm1602, %v1634, %v1326
      %v1667 = vsel %vm1603, %v1635, %v1333
      %v1668 = vsel %vm1604, %v1636, %v1340
      %v1669 = vsel %vm1605, %v1637, %v1347
      %v1670 = vsel %vm1606, %v1638, %v1354
      %v1671 = vsel %vm1607, %v1639, %v1361
      %v1672 = vsel %vm1608, %v1640, %v1368
      %v1673 = vsel %vm1609, %v1641, %v1375
      %v1674 = vsel %vm1610, %v1642, %v1382
      %v1675 = vsel %vm1611, %v1643, %v1389
      %v1676 = vsel %vm1612, %v1644, %v1396
      %v1677 = vsel %vm1613, %v1645, %v1403
      %v1678 = vsel %vm1614, %v1646, %v1410
      %v1679 = vsel %vm1615, %v1647, %v1417
      %v1680 = vsel %vm1616, %v1648, %v1424
      %v1681 = vsel %vm1617, %v1649, %v1431
      %v1682 = vsel %vm1618, %v1650, %v1438
      %v1683 = vsel %vm1619, %v1651, %v1445
      %v1684 = vsel %vm1620, %v1652, %v1452
      %v1685 = vsel %vm1621, %v1653, %v1459
      %v1686 = vsel %vm1622, %v1654, %v1466
      %v1687 = vsel %vm1623, %v1655, %v1473
      %v1688 = vsel %vm1624, %v1656, %v1480
      %v1689 = vsel %vm1625, %v1657, %v1487
      %v1690 = vsel %vm1626, %v1658, %v1494
      %v1691 = vsel %vm1627, %v1659, %v1501
      %v1692 = vsel %vm1628, %v1660, %v1508
      %v1693 = vsel %vm1629, %v1661, %v1515
      %v1694 = vsel %vm1630, %v1662, %v1522
      %v1695 = vsel %vm1631, %v1663, %v1529
      %v1696 = vsel %vm1632, %v1664, %v1536
      %vm1697 = vcmp.ge.s32.totalorder %v1281, 16
      %vm1698 = vcmp.ge.s32.totalorder %v1282, 16
      %vm1699 = vcmp.ge.s32.totalorder %v1283, 16
      %vm1700 = vcmp.ge.s32.totalorder %v1284, 16
      %vm1701 = vcmp.ge.s32.totalorder %v1285, 16
      %vm1702 = vcmp.ge.s32.totalorder %v1286, 16
      %vm1703 = vcmp.ge.s32.totalorder %v1287, 16
      %vm1704 = vcmp.ge.s32.totalorder %v1288, 16
      %vm1705 = vcmp.ge.s32.totalorder %v1289, 16
      %vm1706 = vcmp.ge.s32.totalorder %v1290, 16
      %vm1707 = vcmp.ge.s32.totalorder %v1291, 16
      %vm1708 = vcmp.ge.s32.totalorder %v1292, 16
      %vm1709 = vcmp.ge.s32.totalorder %v1293, 16
      %vm1710 = vcmp.ge.s32.totalorder %v1294, 16
      %vm1711 = vcmp.ge.s32.totalorder %v1295, 16
      %vm1712 = vcmp.ge.s32.totalorder %v1296, 16
      %vm1713 = vcmp.ge.s32.totalorder %v1297, 16
      %vm1714 = vcmp.ge.s32.totalorder %v1298, 16
      %vm1715 = vcmp.ge.s32.totalorder %v1299, 16
      %vm1716 = vcmp.ge.s32.totalorder %v1300, 16
      %vm1717 = vcmp.ge.s32.totalorder %v1301, 16
      %vm1718 = vcmp.ge.s32.totalorder %v1302, 16
      %vm1719 = vcmp.ge.s32.totalorder %v1303, 16
      %vm1720 = vcmp.ge.s32.totalorder %v1304, 16
      %vm1721 = vcmp.ge.s32.totalorder %v1305, 16
      %vm1722 = vcmp.ge.s32.totalorder %v1306, 16
      %vm1723 = vcmp.ge.s32.totalorder %v1307, 16
      %vm1724 = vcmp.ge.s32.totalorder %v1308, 16
      %vm1725 = vcmp.ge.s32.totalorder %v1309, 16
      %vm1726 = vcmp.ge.s32.totalorder %v1310, 16
      %vm1727 = vcmp.ge.s32.totalorder %v1311, 16
      %vm1728 = vcmp.ge.s32.totalorder %v1312, 16
      %v1729 = vsel %vm1697, 1, 0
      %v1730 = vsel %vm1698, 1, 0
      %v1731 = vsel %vm1699, 1, 0
      %v1732 = vsel %vm1700, 1, 0
      %v1733 = vsel %vm1701, 1, 0
      %v1734 = vsel %vm1702, 1, 0
      %v1735 = vsel %vm1703, 1, 0
      %v1736 = vsel %vm1704, 1, 0
      %v1737 = vsel %vm1705, 1, 0
      %v1738 = vsel %vm1706, 1, 0
      %v1739 = vsel %vm1707, 1, 0
      %v1740 = vsel %vm1708, 1, 0
      %v1741 = vsel %vm1709, 1, 0
      %v1742 = vsel %vm1710, 1, 0
      %v1743 = vsel %vm1711, 1, 0
      %v1744 = vsel %vm1712, 1, 0
      %v1745 = vsel %vm1713, 1, 0
      %v1746 = vsel %vm1714, 1, 0
      %v1747 = vsel %vm1715, 1, 0
      %v1748 = vsel %vm1716, 1, 0
      %v1749 = vsel %vm1717, 1, 0
      %v1750 = vsel %vm1718, 1, 0
      %v1751 = vsel %vm1719, 1, 0
      %v1752 = vsel %vm1720, 1, 0
      %v1753 = vsel %vm1721, 1, 0
      %v1754 = vsel %vm1722, 1, 0
      %v1755 = vsel %vm1723, 1, 0
      %v1756 = vsel %vm1724, 1, 0
      %v1757 = vsel %vm1725, 1, 0
      %v1758 = vsel %vm1726, 1, 0
      %v1759 = vsel %vm1727, 1, 0
      %v1760 = vsel %vm1728, 1, 0
      %v1761 = vcvt.s32.f32 %v1729
      %v1762 = vcvt.s32.f32 %v1730
      %v1763 = vcvt.s32.f32 %v1731
      %v1764 = vcvt.s32.f32 %v1732
      %v1765 = vcvt.s32.f32 %v1733
      %v1766 = vcvt.s32.f32 %v1734
      %v1767 = vcvt.s32.f32 %v1735
      %v1768 = vcvt.s32.f32 %v1736
      %v1769 = vcvt.s32.f32 %v1737
      %v1770 = vcvt.s32.f32 %v1738
      %v1771 = vcvt.s32.f32 %v1739
      %v1772 = vcvt.s32.f32 %v1740
      %v1773 = vcvt.s32.f32 %v1741
      %v1774 = vcvt.s32.f32 %v1742
      %v1775 = vcvt.s32.f32 %v1743
      %v1776 = vcvt.s32.f32 %v1744
      %v1777 = vcvt.s32.f32 %v1745
      %v1778 = vcvt.s32.f32 %v1746
      %v1779 = vcvt.s32.f32 %v1747
      %v1780 = vcvt.s32.f32 %v1748
      %v1781 = vcvt.s32.f32 %v1749
      %v1782 = vcvt.s32.f32 %v1750
      %v1783 = vcvt.s32.f32 %v1751
      %v1784 = vcvt.s32.f32 %v1752
      %v1785 = vcvt.s32.f32 %v1753
      %v1786 = vcvt.s32.f32 %v1754
      %v1787 = vcvt.s32.f32 %v1755
      %v1788 = vcvt.s32.f32 %v1756
      %v1789 = vcvt.s32.f32 %v1757
      %v1790 = vcvt.s32.f32 %v1758
      %v1791 = vcvt.s32.f32 %v1759
      %v1792 = vcvt.s32.f32 %v1760
      %vm1793 = vcmp.lt.s32.totalorder %v1281, 240
      %vm1794 = vcmp.lt.s32.totalorder %v1282, 240
      %vm1795 = vcmp.lt.s32.totalorder %v1283, 240
      %vm1796 = vcmp.lt.s32.totalorder %v1284, 240
      %vm1797 = vcmp.lt.s32.totalorder %v1285, 240
      %vm1798 = vcmp.lt.s32.totalorder %v1286, 240
      %vm1799 = vcmp.lt.s32.totalorder %v1287, 240
      %vm1800 = vcmp.lt.s32.totalorder %v1288, 240
      %vm1801 = vcmp.lt.s32.totalorder %v1289, 240
      %vm1802 = vcmp.lt.s32.totalorder %v1290, 240
      %vm1803 = vcmp.lt.s32.totalorder %v1291, 240
      %vm1804 = vcmp.lt.s32.totalorder %v1292, 240
      %vm1805 = vcmp.lt.s32.totalorder %v1293, 240
      %vm1806 = vcmp.lt.s32.totalorder %v1294, 240
      %vm1807 = vcmp.lt.s32.totalorder %v1295, 240
      %vm1808 = vcmp.lt.s32.totalorder %v1296, 240
      %vm1809 = vcmp.lt.s32.totalorder %v1297, 240
      %vm1810 = vcmp.lt.s32.totalorder %v1298, 240
      %vm1811 = vcmp.lt.s32.totalorder %v1299, 240
      %vm1812 = vcmp.lt.s32.totalorder %v1300, 240
      %vm1813 = vcmp.lt.s32.totalorder %v1301, 240
      %vm1814 = vcmp.lt.s32.totalorder %v1302, 240
      %vm1815 = vcmp.lt.s32.totalorder %v1303, 240
      %vm1816 = vcmp.lt.s32.totalorder %v1304, 240
      %vm1817 = vcmp.lt.s32.totalorder %v1305, 240
      %vm1818 = vcmp.lt.s32.totalorder %v1306, 240
      %vm1819 = vcmp.lt.s32.totalorder %v1307, 240
      %vm1820 = vcmp.lt.s32.totalorder %v1308, 240
      %vm1821 = vcmp.lt.s32.totalorder %v1309, 240
      %vm1822 = vcmp.lt.s32.totalorder %v1310, 240
      %vm1823 = vcmp.lt.s32.totalorder %v1311, 240
      %vm1824 = vcmp.lt.s32.totalorder %v1312, 240
      %v1825 = vsel %vm1793, 1, 0
      %v1826 = vsel %vm1794, 1, 0
      %v1827 = vsel %vm1795, 1, 0
      %v1828 = vsel %vm1796, 1, 0
      %v1829 = vsel %vm1797, 1, 0
      %v1830 = vsel %vm1798, 1, 0
      %v1831 = vsel %vm1799, 1, 0
      %v1832 = vsel %vm1800, 1, 0
      %v1833 = vsel %vm1801, 1, 0
      %v1834 = vsel %vm1802, 1, 0
      %v1835 = vsel %vm1803, 1, 0
      %v1836 = vsel %vm1804, 1, 0
      %v1837 = vsel %vm1805, 1, 0
      %v1838 = vsel %vm1806, 1, 0
      %v1839 = vsel %vm1807, 1, 0
      %v1840 = vsel %vm1808, 1, 0
      %v1841 = vsel %vm1809, 1, 0
      %v1842 = vsel %vm1810, 1, 0
      %v1843 = vsel %vm1811, 1, 0
      %v1844 = vsel %vm1812, 1, 0
      %v1845 = vsel %vm1813, 1, 0
      %v1846 = vsel %vm1814, 1, 0
      %v1847 = vsel %vm1815, 1, 0
      %v1848 = vsel %vm1816, 1, 0
      %v1849 = vsel %vm1817, 1, 0
      %v1850 = vsel %vm1818, 1, 0
      %v1851 = vsel %vm1819, 1, 0
      %v1852 = vsel %vm1820, 1, 0
      %v1853 = vsel %vm1821, 1, 0
      %v1854 = vsel %vm1822, 1, 0
      %v1855 = vsel %vm1823, 1, 0
      %v1856 = vsel %vm1824, 1, 0
      %v1857 = vcvt.s32.f32 %v1825
      %v1858 = vcvt.s32.f32 %v1826
      %v1859 = vcvt.s32.f32 %v1827
      %v1860 = vcvt.s32.f32 %v1828
      %v1861 = vcvt.s32.f32 %v1829
      %v1862 = vcvt.s32.f32 %v1830
      %v1863 = vcvt.s32.f32 %v1831
      %v1864 = vcvt.s32.f32 %v1832
      %v1865 = vcvt.s32.f32 %v1833
      %v1866 = vcvt.s32.f32 %v1834
      %v1867 = vcvt.s32.f32 %v1835
      %v1868 = vcvt.s32.f32 %v1836
      %v1869 = vcvt.s32.f32 %v1837
      %v1870 = vcvt.s32.f32 %v1838
      %v1871 = vcvt.s32.f32 %v1839
      %v1872 = vcvt.s32.f32 %v1840
      %v1873 = vcvt.s32.f32 %v1841
      %v1874 = vcvt.s32.f32 %v1842
      %v1875 = vcvt.s32.f32 %v1843
      %v1876 = vcvt.s32.f32 %v1844
      %v1877 = vcvt.s32.f32 %v1845
      %v1878 = vcvt.s32.f32 %v1846
      %v1879 = vcvt.s32.f32 %v1847
      %v1880 = vcvt.s32.f32 %v1848
      %v1881 = vcvt.s32.f32 %v1849
      %v1882 = vcvt.s32.f32 %v1850
      %v1883 = vcvt.s32.f32 %v1851
      %v1884 = vcvt.s32.f32 %v1852
      %v1885 = vcvt.s32.f32 %v1853
      %v1886 = vcvt.s32.f32 %v1854
      %v1887 = vcvt.s32.f32 %v1855
      %v1888 = vcvt.s32.f32 %v1856
      %vm1889 = vcmp.ge.s32.totalorder %v1665, 1
      %vm1890 = vcmp.ge.s32.totalorder %v1666, 1
      %vm1891 = vcmp.ge.s32.totalorder %v1667, 1
      %vm1892 = vcmp.ge.s32.totalorder %v1668, 1
      %vm1893 = vcmp.ge.s32.totalorder %v1669, 1
      %vm1894 = vcmp.ge.s32.totalorder %v1670, 1
      %vm1895 = vcmp.ge.s32.totalorder %v1671, 1
      %vm1896 = vcmp.ge.s32.totalorder %v1672, 1
      %vm1897 = vcmp.ge.s32.totalorder %v1673, 1
      %vm1898 = vcmp.ge.s32.totalorder %v1674, 1
      %vm1899 = vcmp.ge.s32.totalorder %v1675, 1
      %vm1900 = vcmp.ge.s32.totalorder %v1676, 1
      %vm1901 = vcmp.ge.s32.totalorder %v1677, 1
      %vm1902 = vcmp.ge.s32.totalorder %v1678, 1
      %vm1903 = vcmp.ge.s32.totalorder %v1679, 1
      %vm1904 = vcmp.ge.s32.totalorder %v1680, 1
      %vm1905 = vcmp.ge.s32.totalorder %v1681, 1
      %vm1906 = vcmp.ge.s32.totalorder %v1682, 1
      %vm1907 = vcmp.ge.s32.totalorder %v1683, 1
      %vm1908 = vcmp.ge.s32.totalorder %v1684, 1
      %vm1909 = vcmp.ge.s32.totalorder %v1685, 1
      %vm1910 = vcmp.ge.s32.totalorder %v1686, 1
      %vm1911 = vcmp.ge.s32.totalorder %v1687, 1
      %vm1912 = vcmp.ge.s32.totalorder %v1688, 1
      %vm1913 = vcmp.ge.s32.totalorder %v1689, 1
      %vm1914 = vcmp.ge.s32.totalorder %v1690, 1
      %vm1915 = vcmp.ge.s32.totalorder %v1691, 1
      %vm1916 = vcmp.ge.s32.totalorder %v1692, 1
      %vm1917 = vcmp.ge.s32.totalorder %v1693, 1
      %vm1918 = vcmp.ge.s32.totalorder %v1694, 1
      %vm1919 = vcmp.ge.s32.totalorder %v1695, 1
      %vm1920 = vcmp.ge.s32.totalorder %v1696, 1
      %v1921 = vsel %vm1889, 1, 0
      %v1922 = vsel %vm1890, 1, 0
      %v1923 = vsel %vm1891, 1, 0
      %v1924 = vsel %vm1892, 1, 0
      %v1925 = vsel %vm1893, 1, 0
      %v1926 = vsel %vm1894, 1, 0
      %v1927 = vsel %vm1895, 1, 0
      %v1928 = vsel %vm1896, 1, 0
      %v1929 = vsel %vm1897, 1, 0
      %v1930 = vsel %vm1898, 1, 0
      %v1931 = vsel %vm1899, 1, 0
      %v1932 = vsel %vm1900, 1, 0
      %v1933 = vsel %vm1901, 1, 0
      %v1934 = vsel %vm1902, 1, 0
      %v1935 = vsel %vm1903, 1, 0
      %v1936 = vsel %vm1904, 1, 0
      %v1937 = vsel %vm1905, 1, 0
      %v1938 = vsel %vm1906, 1, 0
      %v1939 = vsel %vm1907, 1, 0
      %v1940 = vsel %vm1908, 1, 0
      %v1941 = vsel %vm1909, 1, 0
      %v1942 = vsel %vm1910, 1, 0
      %v1943 = vsel %vm1911, 1, 0
      %v1944 = vsel %vm1912, 1, 0
      %v1945 = vsel %vm1913, 1, 0
      %v1946 = vsel %vm1914, 1, 0
      %v1947 = vsel %vm1915, 1, 0
      %v1948 = vsel %vm1916, 1, 0
      %v1949 = vsel %vm1917, 1, 0
      %v1950 = vsel %vm1918, 1, 0
      %v1951 = vsel %vm1919, 1, 0
      %v1952 = vsel %vm1920, 1, 0
      %v1953 = vcvt.s32.f32 %v1921
      %v1954 = vcvt.s32.f32 %v1922
      %v1955 = vcvt.s32.f32 %v1923
      %v1956 = vcvt.s32.f32 %v1924
      %v1957 = vcvt.s32.f32 %v1925
      %v1958 = vcvt.s32.f32 %v1926
      %v1959 = vcvt.s32.f32 %v1927
      %v1960 = vcvt.s32.f32 %v1928
      %v1961 = vcvt.s32.f32 %v1929
      %v1962 = vcvt.s32.f32 %v1930
      %v1963 = vcvt.s32.f32 %v1931
      %v1964 = vcvt.s32.f32 %v1932
      %v1965 = vcvt.s32.f32 %v1933
      %v1966 = vcvt.s32.f32 %v1934
      %v1967 = vcvt.s32.f32 %v1935
      %v1968 = vcvt.s32.f32 %v1936
      %v1969 = vcvt.s32.f32 %v1937
      %v1970 = vcvt.s32.f32 %v1938
      %v1971 = vcvt.s32.f32 %v1939
      %v1972 = vcvt.s32.f32 %v1940
      %v1973 = vcvt.s32.f32 %v1941
      %v1974 = vcvt.s32.f32 %v1942
      %v1975 = vcvt.s32.f32 %v1943
      %v1976 = vcvt.s32.f32 %v1944
      %v1977 = vcvt.s32.f32 %v1945
      %v1978 = vcvt.s32.f32 %v1946
      %v1979 = vcvt.s32.f32 %v1947
      %v1980 = vcvt.s32.f32 %v1948
      %v1981 = vcvt.s32.f32 %v1949
      %v1982 = vcvt.s32.f32 %v1950
      %v1983 = vcvt.s32.f32 %v1951
      %v1984 = vcvt.s32.f32 %v1952
      %vm1985 = vcmp.lt.s32.totalorder %v1665, 15
      %vm1986 = vcmp.lt.s32.totalorder %v1666, 15
      %vm1987 = vcmp.lt.s32.totalorder %v1667, 15
      %vm1988 = vcmp.lt.s32.totalorder %v1668, 15
      %vm1989 = vcmp.lt.s32.totalorder %v1669, 15
      %vm1990 = vcmp.lt.s32.totalorder %v1670, 15
      %vm1991 = vcmp.lt.s32.totalorder %v1671, 15
      %vm1992 = vcmp.lt.s32.totalorder %v1672, 15
      %vm1993 = vcmp.lt.s32.totalorder %v1673, 15
      %vm1994 = vcmp.lt.s32.totalorder %v1674, 15
      %vm1995 = vcmp.lt.s32.totalorder %v1675, 15
      %vm1996 = vcmp.lt.s32.totalorder %v1676, 15
      %vm1997 = vcmp.lt.s32.totalorder %v1677, 15
      %vm1998 = vcmp.lt.s32.totalorder %v1678, 15
      %vm1999 = vcmp.lt.s32.totalorder %v1679, 15
      %vm2000 = vcmp.lt.s32.totalorder %v1680, 15
      %vm2001 = vcmp.lt.s32.totalorder %v1681, 15
      %vm2002 = vcmp.lt.s32.totalorder %v1682, 15
      %vm2003 = vcmp.lt.s32.totalorder %v1683, 15
      %vm2004 = vcmp.lt.s32.totalorder %v1684, 15
      %vm2005 = vcmp.lt.s32.totalorder %v1685, 15
      %vm2006 = vcmp.lt.s32.totalorder %v1686, 15
      %vm2007 = vcmp.lt.s32.totalorder %v1687, 15
      %vm2008 = vcmp.lt.s32.totalorder %v1688, 15
      %vm2009 = vcmp.lt.s32.totalorder %v1689, 15
      %vm2010 = vcmp.lt.s32.totalorder %v1690, 15
      %vm2011 = vcmp.lt.s32.totalorder %v1691, 15
      %vm2012 = vcmp.lt.s32.totalorder %v1692, 15
      %vm2013 = vcmp.lt.s32.totalorder %v1693, 15
      %vm2014 = vcmp.lt.s32.totalorder %v1694, 15
      %vm2015 = vcmp.lt.s32.totalorder %v1695, 15
      %vm2016 = vcmp.lt.s32.totalorder %v1696, 15
      %v2017 = vsel %vm1985, 1, 0
      %v2018 = vsel %vm1986, 1, 0
      %v2019 = vsel %vm1987, 1, 0
      %v2020 = vsel %vm1988, 1, 0
      %v2021 = vsel %vm1989, 1, 0
      %v2022 = vsel %vm1990, 1, 0
      %v2023 = vsel %vm1991, 1, 0
      %v2024 = vsel %vm1992, 1, 0
      %v2025 = vsel %vm1993, 1, 0
      %v2026 = vsel %vm1994, 1, 0
      %v2027 = vsel %vm1995, 1, 0
      %v2028 = vsel %vm1996, 1, 0
      %v2029 = vsel %vm1997, 1, 0
      %v2030 = vsel %vm1998, 1, 0
      %v2031 = vsel %vm1999, 1, 0
      %v2032 = vsel %vm2000, 1, 0
      %v2033 = vsel %vm2001, 1, 0
      %v2034 = vsel %vm2002, 1, 0
      %v2035 = vsel %vm2003, 1, 0
      %v2036 = vsel %vm2004, 1, 0
      %v2037 = vsel %vm2005, 1, 0
      %v2038 = vsel %vm2006, 1, 0
      %v2039 = vsel %vm2007, 1, 0
      %v2040 = vsel %vm2008, 1, 0
      %v2041 = vsel %vm2009, 1, 0
      %v2042 = vsel %vm2010, 1, 0
      %v2043 = vsel %vm2011, 1, 0
      %v2044 = vsel %vm2012, 1, 0
      %v2045 = vsel %vm2013, 1, 0
      %v2046 = vsel %vm2014, 1, 0
      %v2047 = vsel %vm2015, 1, 0
      %v2048 = vsel %vm2016, 1, 0
      %v2049 = vcvt.s32.f32 %v2017
      %v2050 = vcvt.s32.f32 %v2018
      %v2051 = vcvt.s32.f32 %v2019
      %v2052 = vcvt.s32.f32 %v2020
      %v2053 = vcvt.s32.f32 %v2021
      %v2054 = vcvt.s32.f32 %v2022
      %v2055 = vcvt.s32.f32 %v2023
      %v2056 = vcvt.s32.f32 %v2024
      %v2057 = vcvt.s32.f32 %v2025
      %v2058 = vcvt.s32.f32 %v2026
      %v2059 = vcvt.s32.f32 %v2027
      %v2060 = vcvt.s32.f32 %v2028
      %v2061 = vcvt.s32.f32 %v2029
      %v2062 = vcvt.s32.f32 %v2030
      %v2063 = vcvt.s32.f32 %v2031
      %v2064 = vcvt.s32.f32 %v2032
      %v2065 = vcvt.s32.f32 %v2033
      %v2066 = vcvt.s32.f32 %v2034
      %v2067 = vcvt.s32.f32 %v2035
      %v2068 = vcvt.s32.f32 %v2036
      %v2069 = vcvt.s32.f32 %v2037
      %v2070 = vcvt.s32.f32 %v2038
      %v2071 = vcvt.s32.f32 %v2039
      %v2072 = vcvt.s32.f32 %v2040
      %v2073 = vcvt.s32.f32 %v2041
      %v2074 = vcvt.s32.f32 %v2042
      %v2075 = vcvt.s32.f32 %v2043
      %v2076 = vcvt.s32.f32 %v2044
      %v2077 = vcvt.s32.f32 %v2045
      %v2078 = vcvt.s32.f32 %v2046
      %v2079 = vcvt.s32.f32 %v2047
      %v2080 = vcvt.s32.f32 %v2048
      %v2081 = vmul.f32 %v1761, %v1953
      %v2082 = vmul.f32 %v1762, %v1954
      %v2083 = vmul.f32 %v1763, %v1955
      %v2084 = vmul.f32 %v1764, %v1956
      %v2085 = vmul.f32 %v1765, %v1957
      %v2086 = vmul.f32 %v1766, %v1958
      %v2087 = vmul.f32 %v1767, %v1959
      %v2088 = vmul.f32 %v1768, %v1960
      %v2089 = vmul.f32 %v1769, %v1961
      %v2090 = vmul.f32 %v1770, %v1962
      %v2091 = vmul.f32 %v1771, %v1963
      %v2092 = vmul.f32 %v1772, %v1964
      %v2093 = vmul.f32 %v1773, %v1965
      %v2094 = vmul.f32 %v1774, %v1966
      %v2095 = vmul.f32 %v1775, %v1967
      %v2096 = vmul.f32 %v1776, %v1968
      %v2097 = vmul.f32 %v1777, %v1969
      %v2098 = vmul.f32 %v1778, %v1970
      %v2099 = vmul.f32 %v1779, %v1971
      %v2100 = vmul.f32 %v1780, %v1972
      %v2101 = vmul.f32 %v1781, %v1973
      %v2102 = vmul.f32 %v1782, %v1974
      %v2103 = vmul.f32 %v1783, %v1975
      %v2104 = vmul.f32 %v1784, %v1976
      %v2105 = vmul.f32 %v1785, %v1977
      %v2106 = vmul.f32 %v1786, %v1978
      %v2107 = vmul.f32 %v1787, %v1979
      %v2108 = vmul.f32 %v1788, %v1980
      %v2109 = vmul.f32 %v1789, %v1981
      %v2110 = vmul.f32 %v1790, %v1982
      %v2111 = vmul.f32 %v1791, %v1983
      %v2112 = vmul.f32 %v1792, %v1984
      %v2113 = vmul.f32 %v1761, %v2049
      %v2114 = vmul.f32 %v1762, %v2050
      %v2115 = vmul.f32 %v1763, %v2051
      %v2116 = vmul.f32 %v1764, %v2052
      %v2117 = vmul.f32 %v1765, %v2053
      %v2118 = vmul.f32 %v1766, %v2054
      %v2119 = vmul.f32 %v1767, %v2055
      %v2120 = vmul.f32 %v1768, %v2056
      %v2121 = vmul.f32 %v1769, %v2057
      %v2122 = vmul.f32 %v1770, %v2058
      %v2123 = vmul.f32 %v1771, %v2059
      %v2124 = vmul.f32 %v1772, %v2060
      %v2125 = vmul.f32 %v1773, %v2061
      %v2126 = vmul.f32 %v1774, %v2062
      %v2127 = vmul.f32 %v1775, %v2063
      %v2128 = vmul.f32 %v1776, %v2064
      %v2129 = vmul.f32 %v1777, %v2065
      %v2130 = vmul.f32 %v1778, %v2066
      %v2131 = vmul.f32 %v1779, %v2067
      %v2132 = vmul.f32 %v1780, %v2068
      %v2133 = vmul.f32 %v1781, %v2069
      %v2134 = vmul.f32 %v1782, %v2070
      %v2135 = vmul.f32 %v1783, %v2071
      %v2136 = vmul.f32 %v1784, %v2072
      %v2137 = vmul.f32 %v1785, %v2073
      %v2138 = vmul.f32 %v1786, %v2074
      %v2139 = vmul.f32 %v1787, %v2075
      %v2140 = vmul.f32 %v1788, %v2076
      %v2141 = vmul.f32 %v1789, %v2077
      %v2142 = vmul.f32 %v1790, %v2078
      %v2143 = vmul.f32 %v1791, %v2079
      %v2144 = vmul.f32 %v1792, %v2080
      %v2145 = vmul.f32 %v1857, %v1953
      %v2146 = vmul.f32 %v1858, %v1954
      %v2147 = vmul.f32 %v1859, %v1955
      %v2148 = vmul.f32 %v1860, %v1956
      %v2149 = vmul.f32 %v1861, %v1957
      %v2150 = vmul.f32 %v1862, %v1958
      %v2151 = vmul.f32 %v1863, %v1959
      %v2152 = vmul.f32 %v1864, %v1960
      %v2153 = vmul.f32 %v1865, %v1961
      %v2154 = vmul.f32 %v1866, %v1962
      %v2155 = vmul.f32 %v1867, %v1963
      %v2156 = vmul.f32 %v1868, %v1964
      %v2157 = vmul.f32 %v1869, %v1965
      %v2158 = vmul.f32 %v1870, %v1966
      %v2159 = vmul.f32 %v1871, %v1967
      %v2160 = vmul.f32 %v1872, %v1968
      %v2161 = vmul.f32 %v1873, %v1969
      %v2162 = vmul.f32 %v1874, %v1970
      %v2163 = vmul.f32 %v1875, %v1971
      %v2164 = vmul.f32 %v1876, %v1972
      %v2165 = vmul.f32 %v1877, %v1973
      %v2166 = vmul.f32 %v1878, %v1974
      %v2167 = vmul.f32 %v1879, %v1975
      %v2168 = vmul.f32 %v1880, %v1976
      %v2169 = vmul.f32 %v1881, %v1977
      %v2170 = vmul.f32 %v1882, %v1978
      %v2171 = vmul.f32 %v1883, %v1979
      %v2172 = vmul.f32 %v1884, %v1980
      %v2173 = vmul.f32 %v1885, %v1981
      %v2174 = vmul.f32 %v1886, %v1982
      %v2175 = vmul.f32 %v1887, %v1983
      %v2176 = vmul.f32 %v1888, %v1984
      %v2177 = vmul.f32 %v1857, %v2049
      %v2178 = vmul.f32 %v1858, %v2050
      %v2179 = vmul.f32 %v1859, %v2051
      %v2180 = vmul.f32 %v1860, %v2052
      %v2181 = vmul.f32 %v1861, %v2053
      %v2182 = vmul.f32 %v1862, %v2054
      %v2183 = vmul.f32 %v1863, %v2055
      %v2184 = vmul.f32 %v1864, %v2056
      %v2185 = vmul.f32 %v1865, %v2057
      %v2186 = vmul.f32 %v1866, %v2058
      %v2187 = vmul.f32 %v1867, %v2059
      %v2188 = vmul.f32 %v1868, %v2060
      %v2189 = vmul.f32 %v1869, %v2061
      %v2190 = vmul.f32 %v1870, %v2062
      %v2191 = vmul.f32 %v1871, %v2063
      %v2192 = vmul.f32 %v1872, %v2064
      %v2193 = vmul.f32 %v1873, %v2065
      %v2194 = vmul.f32 %v1874, %v2066
      %v2195 = vmul.f32 %v1875, %v2067
      %v2196 = vmul.f32 %v1876, %v2068
      %v2197 = vmul.f32 %v1877, %v2069
      %v2198 = vmul.f32 %v1878, %v2070
      %v2199 = vmul.f32 %v1879, %v2071
      %v2200 = vmul.f32 %v1880, %v2072
      %v2201 = vmul.f32 %v1881, %v2073
      %v2202 = vmul.f32 %v1882, %v2074
      %v2203 = vmul.f32 %v1883, %v2075
      %v2204 = vmul.f32 %v1884, %v2076
      %v2205 = vmul.f32 %v1885, %v2077
      %v2206 = vmul.f32 %v1886, %v2078
      %v2207 = vmul.f32 %v1887, %v2079
      %v2208 = vmul.f32 %v1888, %v2080
      %v2209 = vld [vmem:[%s7] sm:$0xff]
      %v2210 = vld [vmem:[%s7 + $0x8] sm:$0x1]
      %v2211 = vlaneseq
      %v2212 = vshrl.u32 %v2211, 7
      %v2213 = vsub.s32 4, %v2212
      %v2214 = vrot.slane %v2209, %v2213
      %v2215 = vmul.f32 %v738, %v2214
      %v2216 = vmul.f32 %v743, %v2214
      %v2217 = vmul.f32 %v748, %v2214
      %v2218 = vmul.f32 %v753, %v2214
      %v2219 = vmul.f32 %v758, %v2214
      %v2220 = vmul.f32 %v763, %v2214
      %v2221 = vmul.f32 %v768, %v2214
      %v2222 = vmul.f32 %v773, %v2214
      %v2223 = vmul.f32 %v778, %v2214
      %v2224 = vmul.f32 %v783, %v2214
      %v2225 = vmul.f32 %v788, %v2214
      %v2226 = vmul.f32 %v793, %v2214
      %v2227 = vmul.f32 %v798, %v2214
      %v2228 = vmul.f32 %v803, %v2214
      %v2229 = vmul.f32 %v808, %v2214
      %v2230 = vmul.f32 %v813, %v2214
      %v2231 = vmul.f32 %v818, %v2214
      %v2232 = vmul.f32 %v823, %v2214
      %v2233 = vmul.f32 %v828, %v2214
      %v2234 = vmul.f32 %v833, %v2214
      %v2235 = vmul.f32 %v838, %v2214
      %v2236 = vmul.f32 %v843, %v2214
      %v2237 = vmul.f32 %v848, %v2214
      %v2238 = vmul.f32 %v853, %v2214
      %v2239 = vmul.f32 %v858, %v2214
      %v2240 = vmul.f32 %v863, %v2214
      %v2241 = vmul.f32 %v868, %v2214
      %v2242 = vmul.f32 %v873, %v2214
      %v2243 = vmul.f32 %v878, %v2214
      %v2244 = vmul.f32 %v883, %v2214
      %v2245 = vmul.f32 %v888, %v2214
      %v2246 = vmul.f32 %v893, %v2214
      %v2247 = vrot.slane %v738, 7
      %v2248 = vrot.slane %v743, 7
      %v2249 = vrot.slane %v748, 7
      %v2250 = vrot.slane %v753, 7
      %v2251 = vrot.slane %v758, 7
      %v2252 = vrot.slane %v763, 7
      %v2253 = vrot.slane %v768, 7
      %v2254 = vrot.slane %v773, 7
      %v2255 = vrot.slane %v778, 7
      %v2256 = vrot.slane %v783, 7
      %v2257 = vrot.slane %v788, 7
      %v2258 = vrot.slane %v793, 7
      %v2259 = vrot.slane %v798, 7
      %v2260 = vrot.slane %v803, 7
      %v2261 = vrot.slane %v808, 7
      %v2262 = vrot.slane %v813, 7
      %v2263 = vrot.slane %v818, 7
      %v2264 = vrot.slane %v823, 7
      %v2265 = vrot.slane %v828, 7
      %v2266 = vrot.slane %v833, 7
      %v2267 = vrot.slane %v838, 7
      %v2268 = vrot.slane %v843, 7
      %v2269 = vrot.slane %v848, 7
      %v2270 = vrot.slane %v853, 7
      %v2271 = vrot.slane %v858, 7
      %v2272 = vrot.slane %v863, 7
      %v2273 = vrot.slane %v868, 7
      %v2274 = vrot.slane %v873, 7
      %v2275 = vrot.slane %v878, 7
      %v2276 = vrot.slane %v883, 7
      %v2277 = vrot.slane %v888, 7
      %v2278 = vrot.slane %v893, 7
      %vm2279 = vcmp.lt.s32.totalorder %v897, 1
      %v2280 = vsel %vm2279, %v2277, %v2278
      %v2281 = vsel %vm2279, %v2276, %v2277
      %v2282 = vsel %vm2279, %v2275, %v2276
      %v2283 = vsel %vm2279, %v2274, %v2275
      %v2284 = vsel %vm2279, %v2273, %v2274
      %v2285 = vsel %vm2279, %v2272, %v2273
      %v2286 = vsel %vm2279, %v2271, %v2272
      %v2287 = vsel %vm2279, %v2270, %v2271
      %v2288 = vsel %vm2279, %v2269, %v2270
      %v2289 = vsel %vm2279, %v2268, %v2269
      %v2290 = vsel %vm2279, %v2267, %v2268
      %v2291 = vsel %vm2279, %v2266, %v2267
      %v2292 = vsel %vm2279, %v2265, %v2266
      %v2293 = vsel %vm2279, %v2264, %v2265
      %v2294 = vsel %vm2279, %v2263, %v2264
      %v2295 = vsel %vm2279, %v2262, %v2263
      %v2296 = vsel %vm2279, %v2261, %v2262
      %v2297 = vsel %vm2279, %v2260, %v2261
      %v2298 = vsel %vm2279, %v2259, %v2260
      %v2299 = vsel %vm2279, %v2258, %v2259
      %v2300 = vsel %vm2279, %v2257, %v2258
      %v2301 = vsel %vm2279, %v2256, %v2257
      %v2302 = vsel %vm2279, %v2255, %v2256
      %v2303 = vsel %vm2279, %v2254, %v2255
      %v2304 = vsel %vm2279, %v2253, %v2254
      %v2305 = vsel %vm2279, %v2252, %v2253
      %v2306 = vsel %vm2279, %v2251, %v2252
      %v2307 = vsel %vm2279, %v2250, %v2251
      %v2308 = vsel %vm2279, %v2249, %v2250
      %v2309 = vsel %vm2279, %v2248, %v2249
      %v2310 = vsel %vm2279, %v2247, %v2248
      %v2311 = vsel %vm2279, %v2278, %v2247
      %v2312 = vmul.f32 %v2281, %v2081
      %v2313 = vmul.f32 %v2280, %v2082
      %v2314 = vmul.f32 %v2311, %v2083
      %v2315 = vmul.f32 %v2310, %v2084
      %v2316 = vmul.f32 %v2309, %v2085
      %v2317 = vmul.f32 %v2308, %v2086
      %v2318 = vmul.f32 %v2307, %v2087
      %v2319 = vmul.f32 %v2306, %v2088
      %v2320 = vmul.f32 %v2305, %v2089
      %v2321 = vmul.f32 %v2304, %v2090
      %v2322 = vmul.f32 %v2303, %v2091
      %v2323 = vmul.f32 %v2302, %v2092
      %v2324 = vmul.f32 %v2301, %v2093
      %v2325 = vmul.f32 %v2300, %v2094
      %v2326 = vmul.f32 %v2299, %v2095
      %v2327 = vmul.f32 %v2298, %v2096
      %v2328 = vmul.f32 %v2297, %v2097
      %v2329 = vmul.f32 %v2296, %v2098
      %v2330 = vmul.f32 %v2295, %v2099
      %v2331 = vmul.f32 %v2294, %v2100
      %v2332 = vmul.f32 %v2293, %v2101
      %v2333 = vmul.f32 %v2292, %v2102
      %v2334 = vmul.f32 %v2291, %v2103
      %v2335 = vmul.f32 %v2290, %v2104
      %v2336 = vmul.f32 %v2289, %v2105
      %v2337 = vmul.f32 %v2288, %v2106
      %v2338 = vmul.f32 %v2287, %v2107
      %v2339 = vmul.f32 %v2286, %v2108
      %v2340 = vmul.f32 %v2285, %v2109
      %v2341 = vmul.f32 %v2284, %v2110
      %v2342 = vmul.f32 %v2283, %v2111
      %v2343 = vmul.f32 %v2282, %v2112
      %v2344 = vlaneseq
      %v2345 = vshrl.u32 %v2344, 7
      %v2346 = vsub.s32 0, %v2345
      %v2347 = vrot.slane %v2209, %v2346
      %v2348 = vmul.f32 %v2312, %v2347
      %v2349 = vmul.f32 %v2313, %v2347
      %v2350 = vmul.f32 %v2314, %v2347
      %v2351 = vmul.f32 %v2315, %v2347
      %v2352 = vmul.f32 %v2316, %v2347
      %v2353 = vmul.f32 %v2317, %v2347
      %v2354 = vmul.f32 %v2318, %v2347
      %v2355 = vmul.f32 %v2319, %v2347
      %v2356 = vmul.f32 %v2320, %v2347
      %v2357 = vmul.f32 %v2321, %v2347
      %v2358 = vmul.f32 %v2322, %v2347
      %v2359 = vmul.f32 %v2323, %v2347
      %v2360 = vmul.f32 %v2324, %v2347
      %v2361 = vmul.f32 %v2325, %v2347
      %v2362 = vmul.f32 %v2326, %v2347
      %v2363 = vmul.f32 %v2327, %v2347
      %v2364 = vmul.f32 %v2328, %v2347
      %v2365 = vmul.f32 %v2329, %v2347
      %v2366 = vmul.f32 %v2330, %v2347
      %v2367 = vmul.f32 %v2331, %v2347
      %v2368 = vmul.f32 %v2332, %v2347
      %v2369 = vmul.f32 %v2333, %v2347
      %v2370 = vmul.f32 %v2334, %v2347
      %v2371 = vmul.f32 %v2335, %v2347
      %v2372 = vmul.f32 %v2336, %v2347
      %v2373 = vmul.f32 %v2337, %v2347
      %v2374 = vmul.f32 %v2338, %v2347
      %v2375 = vmul.f32 %v2339, %v2347
      %v2376 = vmul.f32 %v2340, %v2347
      %v2377 = vmul.f32 %v2341, %v2347
      %v2378 = vmul.f32 %v2342, %v2347
      %v2379 = vmul.f32 %v2343, %v2347
      %v2380 = vadd.f32 %v2215, %v2348
      %v2381 = vadd.f32 %v2216, %v2349
      %v2382 = vadd.f32 %v2217, %v2350
      %v2383 = vadd.f32 %v2218, %v2351
      %v2384 = vadd.f32 %v2219, %v2352
      %v2385 = vadd.f32 %v2220, %v2353
      %v2386 = vadd.f32 %v2221, %v2354
      %v2387 = vadd.f32 %v2222, %v2355
      %v2388 = vadd.f32 %v2223, %v2356
      %v2389 = vadd.f32 %v2224, %v2357
      %v2390 = vadd.f32 %v2225, %v2358
      %v2391 = vadd.f32 %v2226, %v2359
      %v2392 = vadd.f32 %v2227, %v2360
      %v2393 = vadd.f32 %v2228, %v2361
      %v2394 = vadd.f32 %v2229, %v2362
      %v2395 = vadd.f32 %v2230, %v2363
      %v2396 = vadd.f32 %v2231, %v2364
      %v2397 = vadd.f32 %v2232, %v2365
      %v2398 = vadd.f32 %v2233, %v2366
      %v2399 = vadd.f32 %v2234, %v2367
      %v2400 = vadd.f32 %v2235, %v2368
      %v2401 = vadd.f32 %v2236, %v2369
      %v2402 = vadd.f32 %v2237, %v2370
      %v2403 = vadd.f32 %v2238, %v2371
      %v2404 = vadd.f32 %v2239, %v2372
      %v2405 = vadd.f32 %v2240, %v2373
      %v2406 = vadd.f32 %v2241, %v2374
      %v2407 = vadd.f32 %v2242, %v2375
      %v2408 = vadd.f32 %v2243, %v2376
      %v2409 = vadd.f32 %v2244, %v2377
      %v2410 = vadd.f32 %v2245, %v2378
      %v2411 = vadd.f32 %v2246, %v2379
      %v2412 = vmul.f32 %v888, %v1761
      %v2413 = vmul.f32 %v893, %v1762
      %v2414 = vmul.f32 %v738, %v1763
      %v2415 = vmul.f32 %v743, %v1764
      %v2416 = vmul.f32 %v748, %v1765
      %v2417 = vmul.f32 %v753, %v1766
      %v2418 = vmul.f32 %v758, %v1767
      %v2419 = vmul.f32 %v763, %v1768
      %v2420 = vmul.f32 %v768, %v1769
      %v2421 = vmul.f32 %v773, %v1770
      %v2422 = vmul.f32 %v778, %v1771
      %v2423 = vmul.f32 %v783, %v1772
      %v2424 = vmul.f32 %v788, %v1773
      %v2425 = vmul.f32 %v793, %v1774
      %v2426 = vmul.f32 %v798, %v1775
      %v2427 = vmul.f32 %v803, %v1776
      %v2428 = vmul.f32 %v808, %v1777
      %v2429 = vmul.f32 %v813, %v1778
      %v2430 = vmul.f32 %v818, %v1779
      %v2431 = vmul.f32 %v823, %v1780
      %v2432 = vmul.f32 %v828, %v1781
      %v2433 = vmul.f32 %v833, %v1782
      %v2434 = vmul.f32 %v838, %v1783
      %v2435 = vmul.f32 %v843, %v1784
      %v2436 = vmul.f32 %v848, %v1785
      %v2437 = vmul.f32 %v853, %v1786
      %v2438 = vmul.f32 %v858, %v1787
      %v2439 = vmul.f32 %v863, %v1788
      %v2440 = vmul.f32 %v868, %v1789
      %v2441 = vmul.f32 %v873, %v1790
      %v2442 = vmul.f32 %v878, %v1791
      %v2443 = vmul.f32 %v883, %v1792
      %v2444 = vlaneseq
      %v2445 = vshrl.u32 %v2444, 7
      %v2446 = vsub.s32 1, %v2445
      %v2447 = vrot.slane %v2209, %v2446
      %v2448 = vmul.f32 %v2412, %v2447
      %v2449 = vmul.f32 %v2413, %v2447
      %v2450 = vmul.f32 %v2414, %v2447
      %v2451 = vmul.f32 %v2415, %v2447
      %v2452 = vmul.f32 %v2416, %v2447
      %v2453 = vmul.f32 %v2417, %v2447
      %v2454 = vmul.f32 %v2418, %v2447
      %v2455 = vmul.f32 %v2419, %v2447
      %v2456 = vmul.f32 %v2420, %v2447
      %v2457 = vmul.f32 %v2421, %v2447
      %v2458 = vmul.f32 %v2422, %v2447
      %v2459 = vmul.f32 %v2423, %v2447
      %v2460 = vmul.f32 %v2424, %v2447
      %v2461 = vmul.f32 %v2425, %v2447
      %v2462 = vmul.f32 %v2426, %v2447
      %v2463 = vmul.f32 %v2427, %v2447
      %v2464 = vmul.f32 %v2428, %v2447
      %v2465 = vmul.f32 %v2429, %v2447
      %v2466 = vmul.f32 %v2430, %v2447
      %v2467 = vmul.f32 %v2431, %v2447
      %v2468 = vmul.f32 %v2432, %v2447
      %v2469 = vmul.f32 %v2433, %v2447
      %v2470 = vmul.f32 %v2434, %v2447
      %v2471 = vmul.f32 %v2435, %v2447
      %v2472 = vmul.f32 %v2436, %v2447
      %v2473 = vmul.f32 %v2437, %v2447
      %v2474 = vmul.f32 %v2438, %v2447
      %v2475 = vmul.f32 %v2439, %v2447
      %v2476 = vmul.f32 %v2440, %v2447
      %v2477 = vmul.f32 %v2441, %v2447
      %v2478 = vmul.f32 %v2442, %v2447
      %v2479 = vmul.f32 %v2443, %v2447
      %v2480 = vadd.f32 %v2380, %v2448
      %v2481 = vadd.f32 %v2381, %v2449
      %v2482 = vadd.f32 %v2382, %v2450
      %v2483 = vadd.f32 %v2383, %v2451
      %v2484 = vadd.f32 %v2384, %v2452
      %v2485 = vadd.f32 %v2385, %v2453
      %v2486 = vadd.f32 %v2386, %v2454
      %v2487 = vadd.f32 %v2387, %v2455
      %v2488 = vadd.f32 %v2388, %v2456
      %v2489 = vadd.f32 %v2389, %v2457
      %v2490 = vadd.f32 %v2390, %v2458
      %v2491 = vadd.f32 %v2391, %v2459
      %v2492 = vadd.f32 %v2392, %v2460
      %v2493 = vadd.f32 %v2393, %v2461
      %v2494 = vadd.f32 %v2394, %v2462
      %v2495 = vadd.f32 %v2395, %v2463
      %v2496 = vadd.f32 %v2396, %v2464
      %v2497 = vadd.f32 %v2397, %v2465
      %v2498 = vadd.f32 %v2398, %v2466
      %v2499 = vadd.f32 %v2399, %v2467
      %v2500 = vadd.f32 %v2400, %v2468
      %v2501 = vadd.f32 %v2401, %v2469
      %v2502 = vadd.f32 %v2402, %v2470
      %v2503 = vadd.f32 %v2403, %v2471
      %v2504 = vadd.f32 %v2404, %v2472
      %v2505 = vadd.f32 %v2405, %v2473
      %v2506 = vadd.f32 %v2406, %v2474
      %v2507 = vadd.f32 %v2407, %v2475
      %v2508 = vadd.f32 %v2408, %v2476
      %v2509 = vadd.f32 %v2409, %v2477
      %v2510 = vadd.f32 %v2410, %v2478
      %v2511 = vadd.f32 %v2411, %v2479
      %v2512 = vrot.slane %v738, 1
      %v2513 = vrot.slane %v743, 1
      %v2514 = vrot.slane %v748, 1
      %v2515 = vrot.slane %v753, 1
      %v2516 = vrot.slane %v758, 1
      %v2517 = vrot.slane %v763, 1
      %v2518 = vrot.slane %v768, 1
      %v2519 = vrot.slane %v773, 1
      %v2520 = vrot.slane %v778, 1
      %v2521 = vrot.slane %v783, 1
      %v2522 = vrot.slane %v788, 1
      %v2523 = vrot.slane %v793, 1
      %v2524 = vrot.slane %v798, 1
      %v2525 = vrot.slane %v803, 1
      %v2526 = vrot.slane %v808, 1
      %v2527 = vrot.slane %v813, 1
      %v2528 = vrot.slane %v818, 1
      %v2529 = vrot.slane %v823, 1
      %v2530 = vrot.slane %v828, 1
      %v2531 = vrot.slane %v833, 1
      %v2532 = vrot.slane %v838, 1
      %v2533 = vrot.slane %v843, 1
      %v2534 = vrot.slane %v848, 1
      %v2535 = vrot.slane %v853, 1
      %v2536 = vrot.slane %v858, 1
      %v2537 = vrot.slane %v863, 1
      %v2538 = vrot.slane %v868, 1
      %v2539 = vrot.slane %v873, 1
      %v2540 = vrot.slane %v878, 1
      %v2541 = vrot.slane %v883, 1
      %v2542 = vrot.slane %v888, 1
      %v2543 = vrot.slane %v893, 1
      %vm2544 = vcmp.lt.s32.totalorder %v897, 7
      %v2545 = vsel %vm2544, %v2542, %v2543
      %v2546 = vsel %vm2544, %v2541, %v2542
      %v2547 = vsel %vm2544, %v2540, %v2541
      %v2548 = vsel %vm2544, %v2539, %v2540
      %v2549 = vsel %vm2544, %v2538, %v2539
      %v2550 = vsel %vm2544, %v2537, %v2538
      %v2551 = vsel %vm2544, %v2536, %v2537
      %v2552 = vsel %vm2544, %v2535, %v2536
      %v2553 = vsel %vm2544, %v2534, %v2535
      %v2554 = vsel %vm2544, %v2533, %v2534
      %v2555 = vsel %vm2544, %v2532, %v2533
      %v2556 = vsel %vm2544, %v2531, %v2532
      %v2557 = vsel %vm2544, %v2530, %v2531
      %v2558 = vsel %vm2544, %v2529, %v2530
      %v2559 = vsel %vm2544, %v2528, %v2529
      %v2560 = vsel %vm2544, %v2527, %v2528
      %v2561 = vsel %vm2544, %v2526, %v2527
      %v2562 = vsel %vm2544, %v2525, %v2526
      %v2563 = vsel %vm2544, %v2524, %v2525
      %v2564 = vsel %vm2544, %v2523, %v2524
      %v2565 = vsel %vm2544, %v2522, %v2523
      %v2566 = vsel %vm2544, %v2521, %v2522
      %v2567 = vsel %vm2544, %v2520, %v2521
      %v2568 = vsel %vm2544, %v2519, %v2520
      %v2569 = vsel %vm2544, %v2518, %v2519
      %v2570 = vsel %vm2544, %v2517, %v2518
      %v2571 = vsel %vm2544, %v2516, %v2517
      %v2572 = vsel %vm2544, %v2515, %v2516
      %v2573 = vsel %vm2544, %v2514, %v2515
      %v2574 = vsel %vm2544, %v2513, %v2514
      %v2575 = vsel %vm2544, %v2512, %v2513
      %v2576 = vsel %vm2544, %v2543, %v2512
      %v2577 = vmul.f32 %v2545, %v2113
      %v2578 = vmul.f32 %v2576, %v2114
      %v2579 = vmul.f32 %v2575, %v2115
      %v2580 = vmul.f32 %v2574, %v2116
      %v2581 = vmul.f32 %v2573, %v2117
      %v2582 = vmul.f32 %v2572, %v2118
      %v2583 = vmul.f32 %v2571, %v2119
      %v2584 = vmul.f32 %v2570, %v2120
      %v2585 = vmul.f32 %v2569, %v2121
      %v2586 = vmul.f32 %v2568, %v2122
      %v2587 = vmul.f32 %v2567, %v2123
      %v2588 = vmul.f32 %v2566, %v2124
      %v2589 = vmul.f32 %v2565, %v2125
      %v2590 = vmul.f32 %v2564, %v2126
      %v2591 = vmul.f32 %v2563, %v2127
      %v2592 = vmul.f32 %v2562, %v2128
      %v2593 = vmul.f32 %v2561, %v2129
      %v2594 = vmul.f32 %v2560, %v2130
      %v2595 = vmul.f32 %v2559, %v2131
      %v2596 = vmul.f32 %v2558, %v2132
      %v2597 = vmul.f32 %v2557, %v2133
      %v2598 = vmul.f32 %v2556, %v2134
      %v2599 = vmul.f32 %v2555, %v2135
      %v2600 = vmul.f32 %v2554, %v2136
      %v2601 = vmul.f32 %v2553, %v2137
      %v2602 = vmul.f32 %v2552, %v2138
      %v2603 = vmul.f32 %v2551, %v2139
      %v2604 = vmul.f32 %v2550, %v2140
      %v2605 = vmul.f32 %v2549, %v2141
      %v2606 = vmul.f32 %v2548, %v2142
      %v2607 = vmul.f32 %v2547, %v2143
      %v2608 = vmul.f32 %v2546, %v2144
      %v2609 = vlaneseq
      %v2610 = vshrl.u32 %v2609, 7
      %v2611 = vsub.s32 2, %v2610
      %v2612 = vrot.slane %v2209, %v2611
      %v2613 = vmul.f32 %v2577, %v2612
      %v2614 = vmul.f32 %v2578, %v2612
      %v2615 = vmul.f32 %v2579, %v2612
      %v2616 = vmul.f32 %v2580, %v2612
      %v2617 = vmul.f32 %v2581, %v2612
      %v2618 = vmul.f32 %v2582, %v2612
      %v2619 = vmul.f32 %v2583, %v2612
      %v2620 = vmul.f32 %v2584, %v2612
      %v2621 = vmul.f32 %v2585, %v2612
      %v2622 = vmul.f32 %v2586, %v2612
      %v2623 = vmul.f32 %v2587, %v2612
      %v2624 = vmul.f32 %v2588, %v2612
      %v2625 = vmul.f32 %v2589, %v2612
      %v2626 = vmul.f32 %v2590, %v2612
      %v2627 = vmul.f32 %v2591, %v2612
      %v2628 = vmul.f32 %v2592, %v2612
      %v2629 = vmul.f32 %v2593, %v2612
      %v2630 = vmul.f32 %v2594, %v2612
      %v2631 = vmul.f32 %v2595, %v2612
      %v2632 = vmul.f32 %v2596, %v2612
      %v2633 = vmul.f32 %v2597, %v2612
      %v2634 = vmul.f32 %v2598, %v2612
      %v2635 = vmul.f32 %v2599, %v2612
      %v2636 = vmul.f32 %v2600, %v2612
      %v2637 = vmul.f32 %v2601, %v2612
      %v2638 = vmul.f32 %v2602, %v2612
      %v2639 = vmul.f32 %v2603, %v2612
      %v2640 = vmul.f32 %v2604, %v2612
      %v2641 = vmul.f32 %v2605, %v2612
      %v2642 = vmul.f32 %v2606, %v2612
      %v2643 = vmul.f32 %v2607, %v2612
      %v2644 = vmul.f32 %v2608, %v2612
      %v2645 = vadd.f32 %v2480, %v2613
      %v2646 = vadd.f32 %v2481, %v2614
      %v2647 = vadd.f32 %v2482, %v2615
      %v2648 = vadd.f32 %v2483, %v2616
      %v2649 = vadd.f32 %v2484, %v2617
      %v2650 = vadd.f32 %v2485, %v2618
      %v2651 = vadd.f32 %v2486, %v2619
      %v2652 = vadd.f32 %v2487, %v2620
      %v2653 = vadd.f32 %v2488, %v2621
      %v2654 = vadd.f32 %v2489, %v2622
      %v2655 = vadd.f32 %v2490, %v2623
      %v2656 = vadd.f32 %v2491, %v2624
      %v2657 = vadd.f32 %v2492, %v2625
      %v2658 = vadd.f32 %v2493, %v2626
      %v2659 = vadd.f32 %v2494, %v2627
      %v2660 = vadd.f32 %v2495, %v2628
      %v2661 = vadd.f32 %v2496, %v2629
      %v2662 = vadd.f32 %v2497, %v2630
      %v2663 = vadd.f32 %v2498, %v2631
      %v2664 = vadd.f32 %v2499, %v2632
      %v2665 = vadd.f32 %v2500, %v2633
      %v2666 = vadd.f32 %v2501, %v2634
      %v2667 = vadd.f32 %v2502, %v2635
      %v2668 = vadd.f32 %v2503, %v2636
      %v2669 = vadd.f32 %v2504, %v2637
      %v2670 = vadd.f32 %v2505, %v2638
      %v2671 = vadd.f32 %v2506, %v2639
      %v2672 = vadd.f32 %v2507, %v2640
      %v2673 = vadd.f32 %v2508, %v2641
      %v2674 = vadd.f32 %v2509, %v2642
      %v2675 = vadd.f32 %v2510, %v2643
      %v2676 = vadd.f32 %v2511, %v2644
      %v2677 = vmul.f32 %v2311, %v1953
      %v2678 = vmul.f32 %v2310, %v1954
      %v2679 = vmul.f32 %v2309, %v1955
      %v2680 = vmul.f32 %v2308, %v1956
      %v2681 = vmul.f32 %v2307, %v1957
      %v2682 = vmul.f32 %v2306, %v1958
      %v2683 = vmul.f32 %v2305, %v1959
      %v2684 = vmul.f32 %v2304, %v1960
      %v2685 = vmul.f32 %v2303, %v1961
      %v2686 = vmul.f32 %v2302, %v1962
      %v2687 = vmul.f32 %v2301, %v1963
      %v2688 = vmul.f32 %v2300, %v1964
      %v2689 = vmul.f32 %v2299, %v1965
      %v2690 = vmul.f32 %v2298, %v1966
      %v2691 = vmul.f32 %v2297, %v1967
      %v2692 = vmul.f32 %v2296, %v1968
      %v2693 = vmul.f32 %v2295, %v1969
      %v2694 = vmul.f32 %v2294, %v1970
      %v2695 = vmul.f32 %v2293, %v1971
      %v2696 = vmul.f32 %v2292, %v1972
      %v2697 = vmul.f32 %v2291, %v1973
      %v2698 = vmul.f32 %v2290, %v1974
      %v2699 = vmul.f32 %v2289, %v1975
      %v2700 = vmul.f32 %v2288, %v1976
      %v2701 = vmul.f32 %v2287, %v1977
      %v2702 = vmul.f32 %v2286, %v1978
      %v2703 = vmul.f32 %v2285, %v1979
      %v2704 = vmul.f32 %v2284, %v1980
      %v2705 = vmul.f32 %v2283, %v1981
      %v2706 = vmul.f32 %v2282, %v1982
      %v2707 = vmul.f32 %v2281, %v1983
      %v2708 = vmul.f32 %v2280, %v1984
      %v2709 = vlaneseq
      %v2710 = vshrl.u32 %v2709, 7
      %v2711 = vsub.s32 3, %v2710
      %v2712 = vrot.slane %v2209, %v2711
      %v2713 = vmul.f32 %v2677, %v2712
      %v2714 = vmul.f32 %v2678, %v2712
      %v2715 = vmul.f32 %v2679, %v2712
      %v2716 = vmul.f32 %v2680, %v2712
      %v2717 = vmul.f32 %v2681, %v2712
      %v2718 = vmul.f32 %v2682, %v2712
      %v2719 = vmul.f32 %v2683, %v2712
      %v2720 = vmul.f32 %v2684, %v2712
      %v2721 = vmul.f32 %v2685, %v2712
      %v2722 = vmul.f32 %v2686, %v2712
      %v2723 = vmul.f32 %v2687, %v2712
      %v2724 = vmul.f32 %v2688, %v2712
      %v2725 = vmul.f32 %v2689, %v2712
      %v2726 = vmul.f32 %v2690, %v2712
      %v2727 = vmul.f32 %v2691, %v2712
      %v2728 = vmul.f32 %v2692, %v2712
      %v2729 = vmul.f32 %v2693, %v2712
      %v2730 = vmul.f32 %v2694, %v2712
      %v2731 = vmul.f32 %v2695, %v2712
      %v2732 = vmul.f32 %v2696, %v2712
      %v2733 = vmul.f32 %v2697, %v2712
      %v2734 = vmul.f32 %v2698, %v2712
      %v2735 = vmul.f32 %v2699, %v2712
      %v2736 = vmul.f32 %v2700, %v2712
      %v2737 = vmul.f32 %v2701, %v2712
      %v2738 = vmul.f32 %v2702, %v2712
      %v2739 = vmul.f32 %v2703, %v2712
      %v2740 = vmul.f32 %v2704, %v2712
      %v2741 = vmul.f32 %v2705, %v2712
      %v2742 = vmul.f32 %v2706, %v2712
      %v2743 = vmul.f32 %v2707, %v2712
      %v2744 = vmul.f32 %v2708, %v2712
      %v2745 = vadd.f32 %v2645, %v2713
      %v2746 = vadd.f32 %v2646, %v2714
      %v2747 = vadd.f32 %v2647, %v2715
      %v2748 = vadd.f32 %v2648, %v2716
      %v2749 = vadd.f32 %v2649, %v2717
      %v2750 = vadd.f32 %v2650, %v2718
      %v2751 = vadd.f32 %v2651, %v2719
      %v2752 = vadd.f32 %v2652, %v2720
      %v2753 = vadd.f32 %v2653, %v2721
      %v2754 = vadd.f32 %v2654, %v2722
      %v2755 = vadd.f32 %v2655, %v2723
      %v2756 = vadd.f32 %v2656, %v2724
      %v2757 = vadd.f32 %v2657, %v2725
      %v2758 = vadd.f32 %v2658, %v2726
      %v2759 = vadd.f32 %v2659, %v2727
      %v2760 = vadd.f32 %v2660, %v2728
      %v2761 = vadd.f32 %v2661, %v2729
      %v2762 = vadd.f32 %v2662, %v2730
      %v2763 = vadd.f32 %v2663, %v2731
      %v2764 = vadd.f32 %v2664, %v2732
      %v2765 = vadd.f32 %v2665, %v2733
      %v2766 = vadd.f32 %v2666, %v2734
      %v2767 = vadd.f32 %v2667, %v2735
      %v2768 = vadd.f32 %v2668, %v2736
      %v2769 = vadd.f32 %v2669, %v2737
      %v2770 = vadd.f32 %v2670, %v2738
      %v2771 = vadd.f32 %v2671, %v2739
      %v2772 = vadd.f32 %v2672, %v2740
      %v2773 = vadd.f32 %v2673, %v2741
      %v2774 = vadd.f32 %v2674, %v2742
      %v2775 = vadd.f32 %v2675, %v2743
      %v2776 = vadd.f32 %v2676, %v2744
      %v2777 = vmul.f32 %v2575, %v2049
      %v2778 = vmul.f32 %v2574, %v2050
      %v2779 = vmul.f32 %v2573, %v2051
      %v2780 = vmul.f32 %v2572, %v2052
      %v2781 = vmul.f32 %v2571, %v2053
      %v2782 = vmul.f32 %v2570, %v2054
      %v2783 = vmul.f32 %v2569, %v2055
      %v2784 = vmul.f32 %v2568, %v2056
      %v2785 = vmul.f32 %v2567, %v2057
      %v2786 = vmul.f32 %v2566, %v2058
      %v2787 = vmul.f32 %v2565, %v2059
      %v2788 = vmul.f32 %v2564, %v2060
      %v2789 = vmul.f32 %v2563, %v2061
      %v2790 = vmul.f32 %v2562, %v2062
      %v2791 = vmul.f32 %v2561, %v2063
      %v2792 = vmul.f32 %v2560, %v2064
      %v2793 = vmul.f32 %v2559, %v2065
      %v2794 = vmul.f32 %v2558, %v2066
      %v2795 = vmul.f32 %v2557, %v2067
      %v2796 = vmul.f32 %v2556, %v2068
      %v2797 = vmul.f32 %v2555, %v2069
      %v2798 = vmul.f32 %v2554, %v2070
      %v2799 = vmul.f32 %v2553, %v2071
      %v2800 = vmul.f32 %v2552, %v2072
      %v2801 = vmul.f32 %v2551, %v2073
      %v2802 = vmul.f32 %v2550, %v2074
      %v2803 = vmul.f32 %v2549, %v2075
      %v2804 = vmul.f32 %v2548, %v2076
      %v2805 = vmul.f32 %v2547, %v2077
      %v2806 = vmul.f32 %v2546, %v2078
      %v2807 = vmul.f32 %v2545, %v2079
      %v2808 = vmul.f32 %v2576, %v2080
      %v2809 = vlaneseq
      %v2810 = vshrl.u32 %v2809, 7
      %v2811 = vsub.s32 5, %v2810
      %v2812 = vrot.slane %v2209, %v2811
      %v2813 = vmul.f32 %v2777, %v2812
      %v2814 = vmul.f32 %v2778, %v2812
      %v2815 = vmul.f32 %v2779, %v2812
      %v2816 = vmul.f32 %v2780, %v2812
      %v2817 = vmul.f32 %v2781, %v2812
      %v2818 = vmul.f32 %v2782, %v2812
      %v2819 = vmul.f32 %v2783, %v2812
      %v2820 = vmul.f32 %v2784, %v2812
      %v2821 = vmul.f32 %v2785, %v2812
      %v2822 = vmul.f32 %v2786, %v2812
      %v2823 = vmul.f32 %v2787, %v2812
      %v2824 = vmul.f32 %v2788, %v2812
      %v2825 = vmul.f32 %v2789, %v2812
      %v2826 = vmul.f32 %v2790, %v2812
      %v2827 = vmul.f32 %v2791, %v2812
      %v2828 = vmul.f32 %v2792, %v2812
      %v2829 = vmul.f32 %v2793, %v2812
      %v2830 = vmul.f32 %v2794, %v2812
      %v2831 = vmul.f32 %v2795, %v2812
      %v2832 = vmul.f32 %v2796, %v2812
      %v2833 = vmul.f32 %v2797, %v2812
      %v2834 = vmul.f32 %v2798, %v2812
      %v2835 = vmul.f32 %v2799, %v2812
      %v2836 = vmul.f32 %v2800, %v2812
      %v2837 = vmul.f32 %v2801, %v2812
      %v2838 = vmul.f32 %v2802, %v2812
      %v2839 = vmul.f32 %v2803, %v2812
      %v2840 = vmul.f32 %v2804, %v2812
      %v2841 = vmul.f32 %v2805, %v2812
      %v2842 = vmul.f32 %v2806, %v2812
      %v2843 = vmul.f32 %v2807, %v2812
      %v2844 = vmul.f32 %v2808, %v2812
      %v2845 = vadd.f32 %v2745, %v2813
      %v2846 = vadd.f32 %v2746, %v2814
      %v2847 = vadd.f32 %v2747, %v2815
      %v2848 = vadd.f32 %v2748, %v2816
      %v2849 = vadd.f32 %v2749, %v2817
      %v2850 = vadd.f32 %v2750, %v2818
      %v2851 = vadd.f32 %v2751, %v2819
      %v2852 = vadd.f32 %v2752, %v2820
      %v2853 = vadd.f32 %v2753, %v2821
      %v2854 = vadd.f32 %v2754, %v2822
      %v2855 = vadd.f32 %v2755, %v2823
      %v2856 = vadd.f32 %v2756, %v2824
      %v2857 = vadd.f32 %v2757, %v2825
      %v2858 = vadd.f32 %v2758, %v2826
      %v2859 = vadd.f32 %v2759, %v2827
      %v2860 = vadd.f32 %v2760, %v2828
      %v2861 = vadd.f32 %v2761, %v2829
      %v2862 = vadd.f32 %v2762, %v2830
      %v2863 = vadd.f32 %v2763, %v2831
      %v2864 = vadd.f32 %v2764, %v2832
      %v2865 = vadd.f32 %v2765, %v2833
      %v2866 = vadd.f32 %v2766, %v2834
      %v2867 = vadd.f32 %v2767, %v2835
      %v2868 = vadd.f32 %v2768, %v2836
      %v2869 = vadd.f32 %v2769, %v2837
      %v2870 = vadd.f32 %v2770, %v2838
      %v2871 = vadd.f32 %v2771, %v2839
      %v2872 = vadd.f32 %v2772, %v2840
      %v2873 = vadd.f32 %v2773, %v2841
      %v2874 = vadd.f32 %v2774, %v2842
      %v2875 = vadd.f32 %v2775, %v2843
      %v2876 = vadd.f32 %v2776, %v2844
      %v2877 = vmul.f32 %v2309, %v2145
      %v2878 = vmul.f32 %v2308, %v2146
      %v2879 = vmul.f32 %v2307, %v2147
      %v2880 = vmul.f32 %v2306, %v2148
      %v2881 = vmul.f32 %v2305, %v2149
      %v2882 = vmul.f32 %v2304, %v2150
      %v2883 = vmul.f32 %v2303, %v2151
      %v2884 = vmul.f32 %v2302, %v2152
      %v2885 = vmul.f32 %v2301, %v2153
      %v2886 = vmul.f32 %v2300, %v2154
      %v2887 = vmul.f32 %v2299, %v2155
      %v2888 = vmul.f32 %v2298, %v2156
      %v2889 = vmul.f32 %v2297, %v2157
      %v2890 = vmul.f32 %v2296, %v2158
      %v2891 = vmul.f32 %v2295, %v2159
      %v2892 = vmul.f32 %v2294, %v2160
      %v2893 = vmul.f32 %v2293, %v2161
      %v2894 = vmul.f32 %v2292, %v2162
      %v2895 = vmul.f32 %v2291, %v2163
      %v2896 = vmul.f32 %v2290, %v2164
      %v2897 = vmul.f32 %v2289, %v2165
      %v2898 = vmul.f32 %v2288, %v2166
      %v2899 = vmul.f32 %v2287, %v2167
      %v2900 = vmul.f32 %v2286, %v2168
      %v2901 = vmul.f32 %v2285, %v2169
      %v2902 = vmul.f32 %v2284, %v2170
      %v2903 = vmul.f32 %v2283, %v2171
      %v2904 = vmul.f32 %v2282, %v2172
      %v2905 = vmul.f32 %v2281, %v2173
      %v2906 = vmul.f32 %v2280, %v2174
      %v2907 = vmul.f32 %v2311, %v2175
      %v2908 = vmul.f32 %v2310, %v2176
      %v2909 = vlaneseq
      %v2910 = vshrl.u32 %v2909, 7
      %v2911 = vsub.s32 6, %v2910
      %v2912 = vrot.slane %v2209, %v2911
      %v2913 = vmul.f32 %v2877, %v2912
      %v2914 = vmul.f32 %v2878, %v2912
      %v2915 = vmul.f32 %v2879, %v2912
      %v2916 = vmul.f32 %v2880, %v2912
      %v2917 = vmul.f32 %v2881, %v2912
      %v2918 = vmul.f32 %v2882, %v2912
      %v2919 = vmul.f32 %v2883, %v2912
      %v2920 = vmul.f32 %v2884, %v2912
      %v2921 = vmul.f32 %v2885, %v2912
      %v2922 = vmul.f32 %v2886, %v2912
      %v2923 = vmul.f32 %v2887, %v2912
      %v2924 = vmul.f32 %v2888, %v2912
      %v2925 = vmul.f32 %v2889, %v2912
      %v2926 = vmul.f32 %v2890, %v2912
      %v2927 = vmul.f32 %v2891, %v2912
      %v2928 = vmul.f32 %v2892, %v2912
      %v2929 = vmul.f32 %v2893, %v2912
      %v2930 = vmul.f32 %v2894, %v2912
      %v2931 = vmul.f32 %v2895, %v2912
      %v2932 = vmul.f32 %v2896, %v2912
      %v2933 = vmul.f32 %v2897, %v2912
      %v2934 = vmul.f32 %v2898, %v2912
      %v2935 = vmul.f32 %v2899, %v2912
      %v2936 = vmul.f32 %v2900, %v2912
      %v2937 = vmul.f32 %v2901, %v2912
      %v2938 = vmul.f32 %v2902, %v2912
      %v2939 = vmul.f32 %v2903, %v2912
      %v2940 = vmul.f32 %v2904, %v2912
      %v2941 = vmul.f32 %v2905, %v2912
      %v2942 = vmul.f32 %v2906, %v2912
      %v2943 = vmul.f32 %v2907, %v2912
      %v2944 = vmul.f32 %v2908, %v2912
      %v2945 = vadd.f32 %v2845, %v2913
      %v2946 = vadd.f32 %v2846, %v2914
      %v2947 = vadd.f32 %v2847, %v2915
      %v2948 = vadd.f32 %v2848, %v2916
      %v2949 = vadd.f32 %v2849, %v2917
      %v2950 = vadd.f32 %v2850, %v2918
      %v2951 = vadd.f32 %v2851, %v2919
      %v2952 = vadd.f32 %v2852, %v2920
      %v2953 = vadd.f32 %v2853, %v2921
      %v2954 = vadd.f32 %v2854, %v2922
      %v2955 = vadd.f32 %v2855, %v2923
      %v2956 = vadd.f32 %v2856, %v2924
      %v2957 = vadd.f32 %v2857, %v2925
      %v2958 = vadd.f32 %v2858, %v2926
      %v2959 = vadd.f32 %v2859, %v2927
      %v2960 = vadd.f32 %v2860, %v2928
      %v2961 = vadd.f32 %v2861, %v2929
      %v2962 = vadd.f32 %v2862, %v2930
      %v2963 = vadd.f32 %v2863, %v2931
      %v2964 = vadd.f32 %v2864, %v2932
      %v2965 = vadd.f32 %v2865, %v2933
      %v2966 = vadd.f32 %v2866, %v2934
      %v2967 = vadd.f32 %v2867, %v2935
      %v2968 = vadd.f32 %v2868, %v2936
      %v2969 = vadd.f32 %v2869, %v2937
      %v2970 = vadd.f32 %v2870, %v2938
      %v2971 = vadd.f32 %v2871, %v2939
      %v2972 = vadd.f32 %v2872, %v2940
      %v2973 = vadd.f32 %v2873, %v2941
      %v2974 = vadd.f32 %v2874, %v2942
      %v2975 = vadd.f32 %v2875, %v2943
      %v2976 = vadd.f32 %v2876, %v2944
      %v2977 = vmul.f32 %v748, %v1857
      %v2978 = vmul.f32 %v753, %v1858
      %v2979 = vmul.f32 %v758, %v1859
      %v2980 = vmul.f32 %v763, %v1860
      %v2981 = vmul.f32 %v768, %v1861
      %v2982 = vmul.f32 %v773, %v1862
      %v2983 = vmul.f32 %v778, %v1863
      %v2984 = vmul.f32 %v783, %v1864
      %v2985 = vmul.f32 %v788, %v1865
      %v2986 = vmul.f32 %v793, %v1866
      %v2987 = vmul.f32 %v798, %v1867
      %v2988 = vmul.f32 %v803, %v1868
      %v2989 = vmul.f32 %v808, %v1869
      %v2990 = vmul.f32 %v813, %v1870
      %v2991 = vmul.f32 %v818, %v1871
      %v2992 = vmul.f32 %v823, %v1872
      %v2993 = vmul.f32 %v828, %v1873
      %v2994 = vmul.f32 %v833, %v1874
      %v2995 = vmul.f32 %v838, %v1875
      %v2996 = vmul.f32 %v843, %v1876
      %v2997 = vmul.f32 %v848, %v1877
      %v2998 = vmul.f32 %v853, %v1878
      %v2999 = vmul.f32 %v858, %v1879
      %v3000 = vmul.f32 %v863, %v1880
      %v3001 = vmul.f32 %v868, %v1881
      %v3002 = vmul.f32 %v873, %v1882
      %v3003 = vmul.f32 %v878, %v1883
      %v3004 = vmul.f32 %v883, %v1884
      %v3005 = vmul.f32 %v888, %v1885
      %v3006 = vmul.f32 %v893, %v1886
      %v3007 = vmul.f32 %v738, %v1887
      %v3008 = vmul.f32 %v743, %v1888
      %v3009 = vlaneseq
      %v3010 = vshrl.u32 %v3009, 7
      %v3011 = vsub.s32 7, %v3010
      %v3012 = vrot.slane %v2209, %v3011
      %v3013 = vmul.f32 %v2977, %v3012
      %v3014 = vmul.f32 %v2978, %v3012
      %v3015 = vmul.f32 %v2979, %v3012
      %v3016 = vmul.f32 %v2980, %v3012
      %v3017 = vmul.f32 %v2981, %v3012
      %v3018 = vmul.f32 %v2982, %v3012
      %v3019 = vmul.f32 %v2983, %v3012
      %v3020 = vmul.f32 %v2984, %v3012
      %v3021 = vmul.f32 %v2985, %v3012
      %v3022 = vmul.f32 %v2986, %v3012
      %v3023 = vmul.f32 %v2987, %v3012
      %v3024 = vmul.f32 %v2988, %v3012
      %v3025 = vmul.f32 %v2989, %v3012
      %v3026 = vmul.f32 %v2990, %v3012
      %v3027 = vmul.f32 %v2991, %v3012
      %v3028 = vmul.f32 %v2992, %v3012
      %v3029 = vmul.f32 %v2993, %v3012
      %v3030 = vmul.f32 %v2994, %v3012
      %v3031 = vmul.f32 %v2995, %v3012
      %v3032 = vmul.f32 %v2996, %v3012
      %v3033 = vmul.f32 %v2997, %v3012
      %v3034 = vmul.f32 %v2998, %v3012
      %v3035 = vmul.f32 %v2999, %v3012
      %v3036 = vmul.f32 %v3000, %v3012
      %v3037 = vmul.f32 %v3001, %v3012
      %v3038 = vmul.f32 %v3002, %v3012
      %v3039 = vmul.f32 %v3003, %v3012
      %v3040 = vmul.f32 %v3004, %v3012
      %v3041 = vmul.f32 %v3005, %v3012
      %v3042 = vmul.f32 %v3006, %v3012
      %v3043 = vmul.f32 %v3007, %v3012
      %v3044 = vmul.f32 %v3008, %v3012
      %v3045 = vadd.f32 %v2945, %v3013
      %v3046 = vadd.f32 %v2946, %v3014
      %v3047 = vadd.f32 %v2947, %v3015
      %v3048 = vadd.f32 %v2948, %v3016
      %v3049 = vadd.f32 %v2949, %v3017
      %v3050 = vadd.f32 %v2950, %v3018
      %v3051 = vadd.f32 %v2951, %v3019
      %v3052 = vadd.f32 %v2952, %v3020
      %v3053 = vadd.f32 %v2953, %v3021
      %v3054 = vadd.f32 %v2954, %v3022
      %v3055 = vadd.f32 %v2955, %v3023
      %v3056 = vadd.f32 %v2956, %v3024
      %v3057 = vadd.f32 %v2957, %v3025
      %v3058 = vadd.f32 %v2958, %v3026
      %v3059 = vadd.f32 %v2959, %v3027
      %v3060 = vadd.f32 %v2960, %v3028
      %v3061 = vadd.f32 %v2961, %v3029
      %v3062 = vadd.f32 %v2962, %v3030
      %v3063 = vadd.f32 %v2963, %v3031
      %v3064 = vadd.f32 %v2964, %v3032
      %v3065 = vadd.f32 %v2965, %v3033
      %v3066 = vadd.f32 %v2966, %v3034
      %v3067 = vadd.f32 %v2967, %v3035
      %v3068 = vadd.f32 %v2968, %v3036
      %v3069 = vadd.f32 %v2969, %v3037
      %v3070 = vadd.f32 %v2970, %v3038
      %v3071 = vadd.f32 %v2971, %v3039
      %v3072 = vadd.f32 %v2972, %v3040
      %v3073 = vadd.f32 %v2973, %v3041
      %v3074 = vadd.f32 %v2974, %v3042
      %v3075 = vadd.f32 %v2975, %v3043
      %v3076 = vadd.f32 %v2976, %v3044
      %v3077 = vmul.f32 %v2573, %v2177
      %v3078 = vmul.f32 %v2572, %v2178
      %v3079 = vmul.f32 %v2571, %v2179
      %v3080 = vmul.f32 %v2570, %v2180
      %v3081 = vmul.f32 %v2569, %v2181
      %v3082 = vmul.f32 %v2568, %v2182
      %v3083 = vmul.f32 %v2567, %v2183
      %v3084 = vmul.f32 %v2566, %v2184
      %v3085 = vmul.f32 %v2565, %v2185
      %v3086 = vmul.f32 %v2564, %v2186
      %v3087 = vmul.f32 %v2563, %v2187
      %v3088 = vmul.f32 %v2562, %v2188
      %v3089 = vmul.f32 %v2561, %v2189
      %v3090 = vmul.f32 %v2560, %v2190
      %v3091 = vmul.f32 %v2559, %v2191
      %v3092 = vmul.f32 %v2558, %v2192
      %v3093 = vmul.f32 %v2557, %v2193
      %v3094 = vmul.f32 %v2556, %v2194
      %v3095 = vmul.f32 %v2555, %v2195
      %v3096 = vmul.f32 %v2554, %v2196
      %v3097 = vmul.f32 %v2553, %v2197
      %v3098 = vmul.f32 %v2552, %v2198
      %v3099 = vmul.f32 %v2551, %v2199
      %v3100 = vmul.f32 %v2550, %v2200
      %v3101 = vmul.f32 %v2549, %v2201
      %v3102 = vmul.f32 %v2548, %v2202
      %v3103 = vmul.f32 %v2547, %v2203
      %v3104 = vmul.f32 %v2546, %v2204
      %v3105 = vmul.f32 %v2545, %v2205
      %v3106 = vmul.f32 %v2576, %v2206
      %v3107 = vmul.f32 %v2575, %v2207
      %v3108 = vmul.f32 %v2574, %v2208
      %v3109 = vlaneseq
      %v3110 = vshrl.u32 %v3109, 7
      %v3111 = vsub.s32 0, %v3110
      %v3112 = vrot.slane %v2210, %v3111
      %v3113 = vmul.f32 %v3077, %v3112
      %v3114 = vmul.f32 %v3078, %v3112
      %v3115 = vmul.f32 %v3079, %v3112
      %v3116 = vmul.f32 %v3080, %v3112
      %v3117 = vmul.f32 %v3081, %v3112
      %v3118 = vmul.f32 %v3082, %v3112
      %v3119 = vmul.f32 %v3083, %v3112
      %v3120 = vmul.f32 %v3084, %v3112
      %v3121 = vmul.f32 %v3085, %v3112
      %v3122 = vmul.f32 %v3086, %v3112
      %v3123 = vmul.f32 %v3087, %v3112
      %v3124 = vmul.f32 %v3088, %v3112
      %v3125 = vmul.f32 %v3089, %v3112
      %v3126 = vmul.f32 %v3090, %v3112
      %v3127 = vmul.f32 %v3091, %v3112
      %v3128 = vmul.f32 %v3092, %v3112
      %v3129 = vmul.f32 %v3093, %v3112
      %v3130 = vmul.f32 %v3094, %v3112
      %v3131 = vmul.f32 %v3095, %v3112
      %v3132 = vmul.f32 %v3096, %v3112
      %v3133 = vmul.f32 %v3097, %v3112
      %v3134 = vmul.f32 %v3098, %v3112
      %v3135 = vmul.f32 %v3099, %v3112
      %v3136 = vmul.f32 %v3100, %v3112
      %v3137 = vmul.f32 %v3101, %v3112
      %v3138 = vmul.f32 %v3102, %v3112
      %v3139 = vmul.f32 %v3103, %v3112
      %v3140 = vmul.f32 %v3104, %v3112
      %v3141 = vmul.f32 %v3105, %v3112
      %v3142 = vmul.f32 %v3106, %v3112
      %v3143 = vmul.f32 %v3107, %v3112
      %v3144 = vmul.f32 %v3108, %v3112
      %v3145 = vadd.f32 %v3045, %v3113
      %v3146 = vadd.f32 %v3046, %v3114
      %v3147 = vadd.f32 %v3047, %v3115
      %v3148 = vadd.f32 %v3048, %v3116
      %v3149 = vadd.f32 %v3049, %v3117
      %v3150 = vadd.f32 %v3050, %v3118
      %v3151 = vadd.f32 %v3051, %v3119
      %v3152 = vadd.f32 %v3052, %v3120
      %v3153 = vadd.f32 %v3053, %v3121
      %v3154 = vadd.f32 %v3054, %v3122
      %v3155 = vadd.f32 %v3055, %v3123
      %v3156 = vadd.f32 %v3056, %v3124
      %v3157 = vadd.f32 %v3057, %v3125
      %v3158 = vadd.f32 %v3058, %v3126
      %v3159 = vadd.f32 %v3059, %v3127
      %v3160 = vadd.f32 %v3060, %v3128
      %v3161 = vadd.f32 %v3061, %v3129
      %v3162 = vadd.f32 %v3062, %v3130
      %v3163 = vadd.f32 %v3063, %v3131
      %v3164 = vadd.f32 %v3064, %v3132
      %v3165 = vadd.f32 %v3065, %v3133
      %v3166 = vadd.f32 %v3066, %v3134
      %v3167 = vadd.f32 %v3067, %v3135
      %v3168 = vadd.f32 %v3068, %v3136
      %v3169 = vadd.f32 %v3069, %v3137
      %v3170 = vadd.f32 %v3070, %v3138
      %v3171 = vadd.f32 %v3071, %v3139
      %v3172 = vadd.f32 %v3072, %v3140
      %v3173 = vadd.f32 %v3073, %v3141
      %v3174 = vadd.f32 %v3074, %v3142
      %v3175 = vadd.f32 %v3075, %v3143
      %v3176 = vadd.f32 %v3076, %v3144
      %v3177 = vld [vmem:[%s5] sm:$0x1]
      %v3179 = vlaneseq
      %v3180 = vshrl.u32 %v3179, 7
      %v3181 = vsub.s32 0, %v3180
      %v3182 = vrot.slane %v3177, %v3181
      %v3184 = vadd.f32 %v3145, %v3182
      %v3185 = vadd.f32 %v3146, %v3182
      %v3186 = vadd.f32 %v3147, %v3182
      %v3187 = vadd.f32 %v3148, %v3182
      %v3188 = vadd.f32 %v3149, %v3182
      %v3189 = vadd.f32 %v3150, %v3182
      %v3190 = vadd.f32 %v3151, %v3182
      %v3191 = vadd.f32 %v3152, %v3182
      %v3192 = vadd.f32 %v3153, %v3182
      %v3193 = vadd.f32 %v3154, %v3182
      %v3194 = vadd.f32 %v3155, %v3182
      %v3195 = vadd.f32 %v3156, %v3182
      %v3196 = vadd.f32 %v3157, %v3182
      %v3197 = vadd.f32 %v3158, %v3182
      %v3198 = vadd.f32 %v3159, %v3182
      %v3199 = vadd.f32 %v3160, %v3182
      %v3200 = vadd.f32 %v3161, %v3182
      %v3201 = vadd.f32 %v3162, %v3182
      %v3202 = vadd.f32 %v3163, %v3182
      %v3203 = vadd.f32 %v3164, %v3182
      %v3204 = vadd.f32 %v3165, %v3182
      %v3205 = vadd.f32 %v3166, %v3182
      %v3206 = vadd.f32 %v3167, %v3182
      %v3207 = vadd.f32 %v3168, %v3182
      %v3208 = vadd.f32 %v3169, %v3182
      %v3209 = vadd.f32 %v3170, %v3182
      %v3210 = vadd.f32 %v3171, %v3182
      %v3211 = vadd.f32 %v3172, %v3182
      %v3212 = vadd.f32 %v3173, %v3182
      %v3213 = vadd.f32 %v3174, %v3182
      %v3214 = vadd.f32 %v3175, %v3182
      %v3215 = vadd.f32 %v3176, %v3182
      %v3216 = vmax.f32 %v3184, 0.0
      %v3217 = vmax.f32 %v3185, 0.0
      %v3218 = vmax.f32 %v3186, 0.0
      %v3219 = vmax.f32 %v3187, 0.0
      %v3220 = vmax.f32 %v3188, 0.0
      %v3221 = vmax.f32 %v3189, 0.0
      %v3222 = vmax.f32 %v3190, 0.0
      %v3223 = vmax.f32 %v3191, 0.0
      %v3224 = vmax.f32 %v3192, 0.0
      %v3225 = vmax.f32 %v3193, 0.0
      %v3226 = vmax.f32 %v3194, 0.0
      %v3227 = vmax.f32 %v3195, 0.0
      %v3228 = vmax.f32 %v3196, 0.0
      %v3229 = vmax.f32 %v3197, 0.0
      %v3230 = vmax.f32 %v3198, 0.0
      %v3231 = vmax.f32 %v3199, 0.0
      %v3232 = vmax.f32 %v3200, 0.0
      %v3233 = vmax.f32 %v3201, 0.0
      %v3234 = vmax.f32 %v3202, 0.0
      %v3235 = vmax.f32 %v3203, 0.0
      %v3236 = vmax.f32 %v3204, 0.0
      %v3237 = vmax.f32 %v3205, 0.0
      %v3238 = vmax.f32 %v3206, 0.0
      %v3239 = vmax.f32 %v3207, 0.0
      %v3240 = vmax.f32 %v3208, 0.0
      %v3241 = vmax.f32 %v3209, 0.0
      %v3242 = vmax.f32 %v3210, 0.0
      %v3243 = vmax.f32 %v3211, 0.0
      %v3244 = vmax.f32 %v3212, 0.0
      %v3245 = vmax.f32 %v3213, 0.0
      %v3246 = vmax.f32 %v3214, 0.0
      %v3247 = vmax.f32 %v3215, 0.0
      %v3248 = vld [vmem:[%s3] sm:$0xff]
      %v3249 = vld [vmem:[%s3 + $0x8] sm:$0xff]
      %v3250 = vld [vmem:[%s3 + $0x10] sm:$0xff]
      %v3251 = vld [vmem:[%s3 + $0x18] sm:$0xff]
      %v3252 = vld [vmem:[%s6] sm:$0x1]
      %v3254 = vlaneseq
      %v3255 = vshrl.u32 %v3254, 7
      %v3256 = vsub.s32 0, %v3255
      %v3257 = vrot.slane %v3252, %v3256
      %vm3259 = vcmask 261120
      %v3261 = vsel %vm3259, %v3216, 0
      %v3264 = vsel %vm3259, %v3217, 0
      %v3267 = vsel %vm3259, %v3218, 0
      %v3270 = vsel %vm3259, %v3219, 0
      %v3273 = vsel %vm3259, %v3220, 0
      %v3276 = vsel %vm3259, %v3221, 0
      %v3279 = vsel %vm3259, %v3222, 0
      %v3282 = vsel %vm3259, %v3223, 0
      %v3285 = vsel %vm3259, %v3224, 0
      %v3288 = vsel %vm3259, %v3225, 0
      %v3291 = vsel %vm3259, %v3226, 0
      %v3294 = vsel %vm3259, %v3227, 0
      %v3297 = vsel %vm3259, %v3228, 0
      %v3300 = vsel %vm3259, %v3229, 0
      %v3303 = vsel %vm3259, %v3230, 0
      %v3306 = vsel %vm3259, %v3231, 0
      %v3309 = vsel %vm3259, %v3232, 0
      %v3312 = vsel %vm3259, %v3233, 0
      %v3315 = vsel %vm3259, %v3234, 0
      %v3318 = vsel %vm3259, %v3235, 0
      %v3321 = vsel %vm3259, %v3236, 0
      %v3324 = vsel %vm3259, %v3237, 0
      %v3327 = vsel %vm3259, %v3238, 0
      %v3330 = vsel %vm3259, %v3239, 0
      %v3333 = vsel %vm3259, %v3240, 0
      %v3336 = vsel %vm3259, %v3241, 0
      %v3339 = vsel %vm3259, %v3242, 0
      %v3342 = vsel %vm3259, %v3243, 0
      %v3345 = vsel %vm3259, %v3244, 0
      %v3348 = vsel %vm3259, %v3245, 0
      %v3351 = vsel %vm3259, %v3246, 0
      %v3354 = vsel %vm3259, %v3247, 0
      %3356 = vmatprep.subr.mxu0 0.0
      %3357 = vmatpush1.msra.mxu0 %v3248
      %3358 = vmatprep.subr.mxu0 0.0
      %3359 = vmatpush1.msra.mxu0 %v3249
      %3360 = vmatprep.subr.mxu0 0.0
      %3361 = vmatpush1.msra.mxu0 %v3250
      %3362 = vmatprep.subr.mxu0 0.0
      %3363 = vmatpush1.msra.mxu0 %v3251
      %3364 = vmatprep.subr.mxu0 0.0
      %3365 = vmatpush1.msra.mxu0 0.0
      %3366 = vmatprep.subr.mxu0 0.0
      %3367 = vmatpush1.msra.mxu0 0.0
      %3368 = vmatprep.subr.mxu0 0.0
      %3369 = vmatpush1.msra.mxu0 0.0
      %3370 = vmatprep.subr.mxu0 0.0
      %3371 = vmatpush1.msra.mxu0 0.0
      %3372 = vmatprep.subr.mxu0 0.0
      %3373 = vmatpush1.msra.mxu0 0.0
      %3374 = vmatprep.subr.mxu0 0.0
      %3375 = vmatpush1.msra.mxu0 0.0
      %3376 = vmatprep.subr.mxu0 0.0
      %3377 = vmatpush1.msra.mxu0 0.0
      %3378 = vmatprep.subr.mxu0 0.0
      %3379 = vmatpush1.msra.mxu0 0.0
      %3380 = vmatprep.subr.mxu0 0.0
      %3381 = vmatpush1.msra.mxu0 0.0
      %3382 = vmatprep.subr.mxu0 0.0
      %3383 = vmatpush1.msra.mxu0 0.0
      %3384 = vmatprep.subr.mxu0 0.0
      %3385 = vmatpush1.msra.mxu0 0.0
      %3386 = vmatprep.subr.mxu0 0.0
      %3387 = vmatpush1.msra.mxu0 0.0
      %3388 = vmatprep.subr.mxu0 0.0
      %3389 = vmatpush1.msra.mxu0 0.0
      %3390 = vmatprep.subr.mxu0 0.0
      %3391 = vmatpush1.msra.mxu0 0.0
      %3392 = vmatprep.subr.mxu0 0.0
      %3393 = vmatpush1.msra.mxu0 0.0
      %3394 = vmatprep.subr.mxu0 0.0
      %3395 = vmatpush1.msra.mxu0 0.0
      %3396 = vmatprep.subr.mxu0 0.0
      %3397 = vmatpush1.msra.mxu0 0.0
      %3398 = vmatprep.subr.mxu0 0.0
      %3399 = vmatpush1.msra.mxu0 0.0
      %3400 = vmatprep.subr.mxu0 0.0
      %3401 = vmatpush1.msra.mxu0 0.0
      %3402 = vmatprep.subr.mxu0 0.0
      %3403 = vmatpush1.msra.mxu0 0.0
      %3404 = vmatprep.subr.mxu0 0.0
      %3405 = vmatpush1.msra.mxu0 0.0
      %3406 = vmatprep.subr.mxu0 0.0
      %3407 = vmatpush1.msra.mxu0 0.0
      %3408 = vmatprep.subr.mxu0 0.0
      %3409 = vmatpush1.msra.mxu0 0.0
      %3410 = vmatprep.subr.mxu0 0.0
      %3411 = vmatpush1.msra.mxu0 0.0
      %3412 = vmatprep.subr.mxu0 0.0
      %3413 = vmatpush1.msra.mxu0 0.0
      %3414 = vmatprep.subr.mxu0 0.0
      %3415 = vmatpush1.msra.mxu0 0.0
      %3416 = vmatprep.subr.mxu0 0.0
      %3417 = vmatpush1.msra.mxu0 0.0
      %3418 = vmatprep.subr.mxu0 0.0
      %3419 = vmatpush1.msra.mxu0 0.0
      %3420 = vmatprep.mubr.f32.mxu0 0.0
      %3421 = vmatmul.mubr.f32.gmra.mrb[0].mxu0 %v3261
      %v3422 = vpop.f32.mrb[0].mxu0
      %v3423 = vadd.f32 %v3257, %v3422
      %v3424 = vpop.f32.mrb[0].mxu0
      %3425 = vmatprep.mubr.f32.mxu0 0.0
      %3426 = vmatmul.mubr.f32.gmra.mrb[0].mxu0 %v3264
      %v3427 = vpop.f32.mrb[0].mxu0
      %v3428 = vadd.f32 %v3257, %v3427
      %v3429 = vpop.f32.mrb[0].mxu0
      %3430 = vmatprep.mubr.f32.mxu0 0.0
      %3431 = vmatmul.mubr.f32.gmra.mrb[0].mxu0 %v3267
      %v3432 = vpop.f32.mrb[0].mxu0
      %v3433 = vadd.f32 %v3257, %v3432
      %v3434 = vpop.f32.mrb[0].mxu0
      %3435 = vmatprep.mubr.f32.mxu0 0.0
      %3436 = vmatmul.mubr.f32.gmra.mrb[0].mxu0 %v3270
      %v3437 = vpop.f32.mrb[0].mxu0
      %v3438 = vadd.f32 %v3257, %v3437
      %v3439 = vpop.f32.mrb[0].mxu0
      %3440 = vmatprep.mubr.f32.mxu0 0.0
      %3441 = vmatmul.mubr.f32.gmra.mrb[0].mxu0 %v3273
      %v3442 = vpop.f32.mrb[0].mxu0
      %v3443 = vadd.f32 %v3257, %v3442
      %v3444 = vpop.f32.mrb[0].mxu0
      %3445 = vmatprep.mubr.f32.mxu0 0.0
      %3446 = vmatmul.mubr.f32.gmra.mrb[0].mxu0 %v3276
      %v3447 = vpop.f32.mrb[0].mxu0
      %v3448 = vadd.f32 %v3257, %v3447
      %v3449 = vpop.f32.mrb[0].mxu0
      %3450 = vmatprep.mubr.f32.mxu0 0.0
      %3451 = vmatmul.mubr.f32.gmra.mrb[0].mxu0 %v3279
      %v3452 = vpop.f32.mrb[0].mxu0
      %v3453 = vadd.f32 %v3257, %v3452
      %v3454 = vpop.f32.mrb[0].mxu0
      %3455 = vmatprep.mubr.f32.mxu0 0.0
      %3456 = vmatmul.mubr.f32.gmra.mrb[0].mxu0 %v3282
      %v3457 = vpop.f32.mrb[0].mxu0
      %v3458 = vadd.f32 %v3257, %v3457
      %v3459 = vpop.f32.mrb[0].mxu0
      %3460 = vmatprep.mubr.f32.mxu0 0.0
      %3461 = vmatmul.mubr.f32.gmra.mrb[0].mxu0 %v3285
      %v3462 = vpop.f32.mrb[0].mxu0
      %v3463 = vadd.f32 %v3257, %v3462
      %v3464 = vpop.f32.mrb[0].mxu0
      %3465 = vmatprep.mubr.f32.mxu0 0.0
      %3466 = vmatmul.mubr.f32.gmra.mrb[0].mxu0 %v3288
      %v3467 = vpop.f32.mrb[0].mxu0
      %v3468 = vadd.f32 %v3257, %v3467
      %v3469 = vpop.f32.mrb[0].mxu0
      %3470 = vmatprep.mubr.f32.mxu0 0.0
      %3471 = vmatmul.mubr.f32.gmra.mrb[0].mxu0 %v3291
      %v3472 = vpop.f32.mrb[0].mxu0
      %v3473 = vadd.f32 %v3257, %v3472
      %v3474 = vpop.f32.mrb[0].mxu0
      %3475 = vmatprep.mubr.f32.mxu0 0.0
      %3476 = vmatmul.mubr.f32.gmra.mrb[0].mxu0 %v3294
      %v3477 = vpop.f32.mrb[0].mxu0
      %v3478 = vadd.f32 %v3257, %v3477
      %v3479 = vpop.f32.mrb[0].mxu0
      %3480 = vmatprep.mubr.f32.mxu0 0.0
      %3481 = vmatmul.mubr.f32.gmra.mrb[0].mxu0 %v3297
      %v3482 = vpop.f32.mrb[0].mxu0
      %v3483 = vadd.f32 %v3257, %v3482
      %v3484 = vpop.f32.mrb[0].mxu0
      %3485 = vmatprep.mubr.f32.mxu0 0.0
      %3486 = vmatmul.mubr.f32.gmra.mrb[0].mxu0 %v3300
      %v3487 = vpop.f32.mrb[0].mxu0
      %v3488 = vadd.f32 %v3257, %v3487
      %v3489 = vpop.f32.mrb[0].mxu0
      %3490 = vmatprep.mubr.f32.mxu0 0.0
      %3491 = vmatmul.mubr.f32.gmra.mrb[0].mxu0 %v3303
      %v3492 = vpop.f32.mrb[0].mxu0
      %v3493 = vadd.f32 %v3257, %v3492
      %v3494 = vpop.f32.mrb[0].mxu0
      %3495 = vmatprep.mubr.f32.mxu0 0.0
      %3496 = vmatmul.mubr.f32.gmra.mrb[0].mxu0 %v3306
      %v3497 = vpop.f32.mrb[0].mxu0
      %v3498 = vadd.f32 %v3257, %v3497
      %v3499 = vpop.f32.mrb[0].mxu0
      %3500 = vmatprep.mubr.f32.mxu0 0.0
      %3501 = vmatmul.mubr.f32.gmra.mrb[0].mxu0 %v3309
      %v3502 = vpop.f32.mrb[0].mxu0
      %v3503 = vadd.f32 %v3257, %v3502
      %v3504 = vpop.f32.mrb[0].mxu0
      %3505 = vmatprep.mubr.f32.mxu0 0.0
      %3506 = vmatmul.mubr.f32.gmra.mrb[0].mxu0 %v3312
      %v3507 = vpop.f32.mrb[0].mxu0
      %v3508 = vadd.f32 %v3257, %v3507
      %v3509 = vpop.f32.mrb[0].mxu0
      %3510 = vmatprep.mubr.f32.mxu0 0.0
      %3511 = vmatmul.mubr.f32.gmra.mrb[0].mxu0 %v3315
      %v3512 = vpop.f32.mrb[0].mxu0
      %v3513 = vadd.f32 %v3257, %v3512
      %v3514 = vpop.f32.mrb[0].mxu0
      %3515 = vmatprep.mubr.f32.mxu0 0.0
      %3516 = vmatmul.mubr.f32.gmra.mrb[0].mxu0 %v3318
      %v3517 = vpop.f32.mrb[0].mxu0
      %v3518 = vadd.f32 %v3257, %v3517
      %v3519 = vpop.f32.mrb[0].mxu0
      %3520 = vmatprep.mubr.f32.mxu0 0.0
      %3521 = vmatmul.mubr.f32.gmra.mrb[0].mxu0 %v3321
      %v3522 = vpop.f32.mrb[0].mxu0
      %v3523 = vadd.f32 %v3257, %v3522
      %v3524 = vpop.f32.mrb[0].mxu0
      %3525 = vmatprep.mubr.f32.mxu0 0.0
      %3526 = vmatmul.mubr.f32.gmra.mrb[0].mxu0 %v3324
      %v3527 = vpop.f32.mrb[0].mxu0
      %v3528 = vadd.f32 %v3257, %v3527
      %v3529 = vpop.f32.mrb[0].mxu0
      %3530 = vmatprep.mubr.f32.mxu0 0.0
      %3531 = vmatmul.mubr.f32.gmra.mrb[0].mxu0 %v3327
      %v3532 = vpop.f32.mrb[0].mxu0
      %v3533 = vadd.f32 %v3257, %v3532
      %v3534 = vpop.f32.mrb[0].mxu0
      %3535 = vmatprep.mubr.f32.mxu0 0.0
      %3536 = vmatmul.mubr.f32.gmra.mrb[0].mxu0 %v3330
      %v3537 = vpop.f32.mrb[0].mxu0
      %v3538 = vadd.f32 %v3257, %v3537
      %v3539 = vpop.f32.mrb[0].mxu0
      %3540 = vmatprep.mubr.f32.mxu0 0.0
      %3541 = vmatmul.mubr.f32.gmra.mrb[0].mxu0 %v3333
      %v3542 = vpop.f32.mrb[0].mxu0
      %v3543 = vadd.f32 %v3257, %v3542
      %v3544 = vpop.f32.mrb[0].mxu0
      %3545 = vmatprep.mubr.f32.mxu0 0.0
      %3546 = vmatmul.mubr.f32.gmra.mrb[0].mxu0 %v3336
      %v3547 = vpop.f32.mrb[0].mxu0
      %v3548 = vadd.f32 %v3257, %v3547
      %v3549 = vpop.f32.mrb[0].mxu0
      %3550 = vmatprep.mubr.f32.mxu0 0.0
      %3551 = vmatmul.mubr.f32.gmra.mrb[0].mxu0 %v3339
      %v3552 = vpop.f32.mrb[0].mxu0
      %v3553 = vadd.f32 %v3257, %v3552
      %v3554 = vpop.f32.mrb[0].mxu0
      %3555 = vmatprep.mubr.f32.mxu0 0.0
      %3556 = vmatmul.mubr.f32.gmra.mrb[0].mxu0 %v3342
      %v3557 = vpop.f32.mrb[0].mxu0
      %v3558 = vadd.f32 %v3257, %v3557
      %v3559 = vpop.f32.mrb[0].mxu0
      %3560 = vmatprep.mubr.f32.mxu0 0.0
      %3561 = vmatmul.mubr.f32.gmra.mrb[0].mxu0 %v3345
      %v3562 = vpop.f32.mrb[0].mxu0
      %v3563 = vadd.f32 %v3257, %v3562
      %v3564 = vpop.f32.mrb[0].mxu0
      %3565 = vmatprep.mubr.f32.mxu0 0.0
      %3566 = vmatmul.mubr.f32.gmra.mrb[0].mxu0 %v3348
      %v3567 = vpop.f32.mrb[0].mxu0
      %v3568 = vadd.f32 %v3257, %v3567
      %v3569 = vpop.f32.mrb[0].mxu0
      %3570 = vmatprep.mubr.f32.mxu0 0.0
      %3571 = vmatmul.mubr.f32.gmra.mrb[0].mxu0 %v3351
      %v3572 = vpop.f32.mrb[0].mxu0
      %v3573 = vadd.f32 %v3257, %v3572
      %v3574 = vpop.f32.mrb[0].mxu0
      %3575 = vmatprep.mubr.f32.mxu0 0.0
      %3576 = vmatmul.mubr.f32.gmra.mrb[0].mxu0 %v3354
      %v3577 = vpop.f32.mrb[0].mxu0
      %v3578 = vadd.f32 %v3257, %v3577
      %v3579 = vpop.f32.mrb[0].mxu0
      %3580 = vdwg.mxu0
      %v3581 = vsel %vm3259, %v3423, 0.0
      %v3582 = vsel %vm3259, %v3428, 0.0
      %v3583 = vadd.f32 %v3581, %v3582
      %v3584 = vsel %vm3259, %v3433, 0.0
      %v3585 = vadd.f32 %v3583, %v3584
      %v3586 = vsel %vm3259, %v3438, 0.0
      %v3587 = vadd.f32 %v3585, %v3586
      %v3588 = vsel %vm3259, %v3443, 0.0
      %v3589 = vadd.f32 %v3587, %v3588
      %v3590 = vsel %vm3259, %v3448, 0.0
      %v3591 = vadd.f32 %v3589, %v3590
      %v3592 = vsel %vm3259, %v3453, 0.0
      %v3593 = vadd.f32 %v3591, %v3592
      %v3594 = vsel %vm3259, %v3458, 0.0
      %v3595 = vadd.f32 %v3593, %v3594
      %v3596 = vsel %vm3259, %v3463, 0.0
      %v3597 = vadd.f32 %v3595, %v3596
      %v3598 = vsel %vm3259, %v3468, 0.0
      %v3599 = vadd.f32 %v3597, %v3598
      %v3600 = vsel %vm3259, %v3473, 0.0
      %v3601 = vadd.f32 %v3599, %v3600
      %v3602 = vsel %vm3259, %v3478, 0.0
      %v3603 = vadd.f32 %v3601, %v3602
      %v3604 = vsel %vm3259, %v3483, 0.0
      %v3605 = vadd.f32 %v3603, %v3604
      %v3606 = vsel %vm3259, %v3488, 0.0
      %v3607 = vadd.f32 %v3605, %v3606
      %v3608 = vsel %vm3259, %v3493, 0.0
      %v3609 = vadd.f32 %v3607, %v3608
      %v3610 = vsel %vm3259, %v3498, 0.0
      %v3611 = vadd.f32 %v3609, %v3610
      %v3612 = vsel %vm3259, %v3503, 0.0
      %v3613 = vadd.f32 %v3611, %v3612
      %v3614 = vsel %vm3259, %v3508, 0.0
      %v3615 = vadd.f32 %v3613, %v3614
      %v3616 = vsel %vm3259, %v3513, 0.0
      %v3617 = vadd.f32 %v3615, %v3616
      %v3618 = vsel %vm3259, %v3518, 0.0
      %v3619 = vadd.f32 %v3617, %v3618
      %v3620 = vsel %vm3259, %v3523, 0.0
      %v3621 = vadd.f32 %v3619, %v3620
      %v3622 = vsel %vm3259, %v3528, 0.0
      %v3623 = vadd.f32 %v3621, %v3622
      %v3624 = vsel %vm3259, %v3533, 0.0
      %v3625 = vadd.f32 %v3623, %v3624
      %v3626 = vsel %vm3259, %v3538, 0.0
      %v3627 = vadd.f32 %v3625, %v3626
      %v3628 = vsel %vm3259, %v3543, 0.0
      %v3629 = vadd.f32 %v3627, %v3628
      %v3630 = vsel %vm3259, %v3548, 0.0
      %v3631 = vadd.f32 %v3629, %v3630
      %v3632 = vsel %vm3259, %v3553, 0.0
      %v3633 = vadd.f32 %v3631, %v3632
      %v3634 = vsel %vm3259, %v3558, 0.0
      %v3635 = vadd.f32 %v3633, %v3634
      %v3636 = vsel %vm3259, %v3563, 0.0
      %v3637 = vadd.f32 %v3635, %v3636
      %v3638 = vsel %vm3259, %v3568, 0.0
      %v3639 = vadd.f32 %v3637, %v3638
      %v3640 = vsel %vm3259, %v3573, 0.0
      %v3641 = vadd.f32 %v3639, %v3640
      %v3642 = vsel %vm3259, %v3578, 0.0
      %v3643 = vadd.f32 %v3641, %v3642
      %v3644 = vrot.slane %v3643, 4
      %v3645 = vadd.f32 %v3643, %v3644
      %v3646 = vrot.slane %v3645, 2
      %v3647 = vadd.f32 %v3645, %v3646
      %v3648 = vrot.slane %v3647, 1
      %v3649 = vadd.f32 %v3647, %v3648
      %vm3650 = vcmask 253952
      %3651 = vst.msk [vmem:[%s305] sm:$0x1] %vm3650, %v3649
      %v3652 = vmul.f32 %v3423, %v3423
      %v3653 = vmul.f32 %v3428, %v3428
      %v3654 = vmul.f32 %v3433, %v3433
      %v3655 = vmul.f32 %v3438, %v3438
      %v3656 = vmul.f32 %v3443, %v3443
      %v3657 = vmul.f32 %v3448, %v3448
      %v3658 = vmul.f32 %v3453, %v3453
      %v3659 = vmul.f32 %v3458, %v3458
      %v3660 = vmul.f32 %v3463, %v3463
      %v3661 = vmul.f32 %v3468, %v3468
      %v3662 = vmul.f32 %v3473, %v3473
      %v3663 = vmul.f32 %v3478, %v3478
      %v3664 = vmul.f32 %v3483, %v3483
      %v3665 = vmul.f32 %v3488, %v3488
      %v3666 = vmul.f32 %v3493, %v3493
      %v3667 = vmul.f32 %v3498, %v3498
      %v3668 = vmul.f32 %v3503, %v3503
      %v3669 = vmul.f32 %v3508, %v3508
      %v3670 = vmul.f32 %v3513, %v3513
      %v3671 = vmul.f32 %v3518, %v3518
      %v3672 = vmul.f32 %v3523, %v3523
      %v3673 = vmul.f32 %v3528, %v3528
      %v3674 = vmul.f32 %v3533, %v3533
      %v3675 = vmul.f32 %v3538, %v3538
      %v3676 = vmul.f32 %v3543, %v3543
      %v3677 = vmul.f32 %v3548, %v3548
      %v3678 = vmul.f32 %v3553, %v3553
      %v3679 = vmul.f32 %v3558, %v3558
      %v3680 = vmul.f32 %v3563, %v3563
      %v3681 = vmul.f32 %v3568, %v3568
      %v3682 = vmul.f32 %v3573, %v3573
      %v3683 = vmul.f32 %v3578, %v3578
      %v3684 = vsel %vm3259, %v3652, 0.0
      %v3685 = vsel %vm3259, %v3653, 0.0
      %v3686 = vadd.f32 %v3684, %v3685
      %v3687 = vsel %vm3259, %v3654, 0.0
      %v3688 = vadd.f32 %v3686, %v3687
      %v3689 = vsel %vm3259, %v3655, 0.0
      %v3690 = vadd.f32 %v3688, %v3689
      %v3691 = vsel %vm3259, %v3656, 0.0
      %v3692 = vadd.f32 %v3690, %v3691
      %v3693 = vsel %vm3259, %v3657, 0.0
      %v3694 = vadd.f32 %v3692, %v3693
      %v3695 = vsel %vm3259, %v3658, 0.0
      %v3696 = vadd.f32 %v3694, %v3695
      %v3697 = vsel %vm3259, %v3659, 0.0
      %v3698 = vadd.f32 %v3696, %v3697
      %v3699 = vsel %vm3259, %v3660, 0.0
      %v3700 = vadd.f32 %v3698, %v3699
      %v3701 = vsel %vm3259, %v3661, 0.0
      %v3702 = vadd.f32 %v3700, %v3701
      %v3703 = vsel %vm3259, %v3662, 0.0
      %v3704 = vadd.f32 %v3702, %v3703
      %v3705 = vsel %vm3259, %v3663, 0.0
      %v3706 = vadd.f32 %v3704, %v3705
      %v3707 = vsel %vm3259, %v3664, 0.0
      %v3708 = vadd.f32 %v3706, %v3707
      %v3709 = vsel %vm3259, %v3665, 0.0
      %v3710 = vadd.f32 %v3708, %v3709
      %v3711 = vsel %vm3259, %v3666, 0.0
      %v3712 = vadd.f32 %v3710, %v3711
      %v3713 = vsel %vm3259, %v3667, 0.0
      %v3714 = vadd.f32 %v3712, %v3713
      %v3715 = vsel %vm3259, %v3668, 0.0
      %v3716 = vadd.f32 %v3714, %v3715
      %v3717 = vsel %vm3259, %v3669, 0.0
      %v3718 = vadd.f32 %v3716, %v3717
      %v3719 = vsel %vm3259, %v3670, 0.0
      %v3720 = vadd.f32 %v3718, %v3719
      %v3721 = vsel %vm3259, %v3671, 0.0
      %v3722 = vadd.f32 %v3720, %v3721
      %v3723 = vsel %vm3259, %v3672, 0.0
      %v3724 = vadd.f32 %v3722, %v3723
      %v3725 = vsel %vm3259, %v3673, 0.0
      %v3726 = vadd.f32 %v3724, %v3725
      %v3727 = vsel %vm3259, %v3674, 0.0
      %v3728 = vadd.f32 %v3726, %v3727
      %v3729 = vsel %vm3259, %v3675, 0.0
      %v3730 = vadd.f32 %v3728, %v3729
      %v3731 = vsel %vm3259, %v3676, 0.0
      %v3732 = vadd.f32 %v3730, %v3731
      %v3733 = vsel %vm3259, %v3677, 0.0
      %v3734 = vadd.f32 %v3732, %v3733
      %v3735 = vsel %vm3259, %v3678, 0.0
      %v3736 = vadd.f32 %v3734, %v3735
      %v3737 = vsel %vm3259, %v3679, 0.0
      %v3738 = vadd.f32 %v3736, %v3737
      %v3739 = vsel %vm3259, %v3680, 0.0
      %v3740 = vadd.f32 %v3738, %v3739
      %v3741 = vsel %vm3259, %v3681, 0.0
      %v3742 = vadd.f32 %v3740, %v3741
      %v3743 = vsel %vm3259, %v3682, 0.0
      %v3744 = vadd.f32 %v3742, %v3743
      %v3745 = vsel %vm3259, %v3683, 0.0
      %v3746 = vadd.f32 %v3744, %v3745
      %v3747 = vrot.slane %v3746, 4
      %v3748 = vadd.f32 %v3746, %v3747
      %v3749 = vrot.slane %v3748, 2
      %v3750 = vadd.f32 %v3748, %v3749
      %v3751 = vrot.slane %v3750, 1
      %v3752 = vadd.f32 %v3750, %v3751
      %3753 = vst.msk [vmem:[%s305 + $0x1] sm:$0x1] %vm3650, %v3752
      %v3754 = vsel %vm3259, %v504, 0.0
      %v3755 = vsel %vm3259, %v509, 0.0
      %v3756 = vadd.f32 %v3754, %v3755
      %v3757 = vsel %vm3259, %v514, 0.0
      %v3758 = vadd.f32 %v3756, %v3757
      %v3759 = vsel %vm3259, %v519, 0.0
      %v3760 = vadd.f32 %v3758, %v3759
      %v3761 = vsel %vm3259, %v524, 0.0
      %v3762 = vadd.f32 %v3760, %v3761
      %v3763 = vsel %vm3259, %v529, 0.0
      %v3764 = vadd.f32 %v3762, %v3763
      %v3765 = vsel %vm3259, %v534, 0.0
      %v3766 = vadd.f32 %v3764, %v3765
      %v3767 = vsel %vm3259, %v539, 0.0
      %v3768 = vadd.f32 %v3766, %v3767
      %v3769 = vsel %vm3259, %v544, 0.0
      %v3770 = vadd.f32 %v3768, %v3769
      %v3771 = vsel %vm3259, %v549, 0.0
      %v3772 = vadd.f32 %v3770, %v3771
      %v3773 = vsel %vm3259, %v554, 0.0
      %v3774 = vadd.f32 %v3772, %v3773
      %v3775 = vsel %vm3259, %v559, 0.0
      %v3776 = vadd.f32 %v3774, %v3775
      %v3777 = vsel %vm3259, %v564, 0.0
      %v3778 = vadd.f32 %v3776, %v3777
      %v3779 = vsel %vm3259, %v569, 0.0
      %v3780 = vadd.f32 %v3778, %v3779
      %v3781 = vsel %vm3259, %v574, 0.0
      %v3782 = vadd.f32 %v3780, %v3781
      %v3783 = vsel %vm3259, %v579, 0.0
      %v3784 = vadd.f32 %v3782, %v3783
      %v3785 = vsel %vm3259, %v584, 0.0
      %v3786 = vadd.f32 %v3784, %v3785
      %v3787 = vsel %vm3259, %v589, 0.0
      %v3788 = vadd.f32 %v3786, %v3787
      %v3789 = vsel %vm3259, %v594, 0.0
      %v3790 = vadd.f32 %v3788, %v3789
      %v3791 = vsel %vm3259, %v599, 0.0
      %v3792 = vadd.f32 %v3790, %v3791
      %v3793 = vsel %vm3259, %v604, 0.0
      %v3794 = vadd.f32 %v3792, %v3793
      %v3795 = vsel %vm3259, %v609, 0.0
      %v3796 = vadd.f32 %v3794, %v3795
      %v3797 = vsel %vm3259, %v614, 0.0
      %v3798 = vadd.f32 %v3796, %v3797
      %v3799 = vsel %vm3259, %v619, 0.0
      %v3800 = vadd.f32 %v3798, %v3799
      %v3801 = vsel %vm3259, %v624, 0.0
      %v3802 = vadd.f32 %v3800, %v3801
      %v3803 = vsel %vm3259, %v629, 0.0
      %v3804 = vadd.f32 %v3802, %v3803
      %v3805 = vsel %vm3259, %v634, 0.0
      %v3806 = vadd.f32 %v3804, %v3805
      %v3807 = vsel %vm3259, %v639, 0.0
      %v3808 = vadd.f32 %v3806, %v3807
      %v3809 = vsel %vm3259, %v644, 0.0
      %v3810 = vadd.f32 %v3808, %v3809
      %v3811 = vsel %vm3259, %v649, 0.0
      %v3812 = vadd.f32 %v3810, %v3811
      %v3813 = vsel %vm3259, %v654, 0.0
      %v3814 = vadd.f32 %v3812, %v3813
      %v3815 = vsel %vm3259, %v659, 0.0
      %v3816 = vadd.f32 %v3814, %v3815
      %v3817 = vrot.slane %v3816, 4
      %v3818 = vadd.f32 %v3816, %v3817
      %v3819 = vrot.slane %v3818, 2
      %v3820 = vadd.f32 %v3818, %v3819
      %v3821 = vrot.slane %v3820, 1
      %v3822 = vadd.f32 %v3820, %v3821
      %3823 = vst.msk [vmem:[%s305 + $0x2] sm:$0x1] %vm3650, %v3822
      %v3824 = vmul.f32 %v504, %v504
      %v3825 = vmul.f32 %v509, %v509
      %v3826 = vmul.f32 %v514, %v514
      %v3827 = vmul.f32 %v519, %v519
      %v3828 = vmul.f32 %v524, %v524
      %v3829 = vmul.f32 %v529, %v529
      %v3830 = vmul.f32 %v534, %v534
      %v3831 = vmul.f32 %v539, %v539
      %v3832 = vmul.f32 %v544, %v544
      %v3833 = vmul.f32 %v549, %v549
      %v3834 = vmul.f32 %v554, %v554
      %v3835 = vmul.f32 %v559, %v559
      %v3836 = vmul.f32 %v564, %v564
      %v3837 = vmul.f32 %v569, %v569
      %v3838 = vmul.f32 %v574, %v574
      %v3839 = vmul.f32 %v579, %v579
      %v3840 = vmul.f32 %v584, %v584
      %v3841 = vmul.f32 %v589, %v589
      %v3842 = vmul.f32 %v594, %v594
      %v3843 = vmul.f32 %v599, %v599
      %v3844 = vmul.f32 %v604, %v604
      %v3845 = vmul.f32 %v609, %v609
      %v3846 = vmul.f32 %v614, %v614
      %v3847 = vmul.f32 %v619, %v619
      %v3848 = vmul.f32 %v624, %v624
      %v3849 = vmul.f32 %v629, %v629
      %v3850 = vmul.f32 %v634, %v634
      %v3851 = vmul.f32 %v639, %v639
      %v3852 = vmul.f32 %v644, %v644
      %v3853 = vmul.f32 %v649, %v649
      %v3854 = vmul.f32 %v654, %v654
      %v3855 = vmul.f32 %v659, %v659
      %v3856 = vsel %vm3259, %v3824, 0.0
      %v3857 = vsel %vm3259, %v3825, 0.0
      %v3858 = vadd.f32 %v3856, %v3857
      %v3859 = vsel %vm3259, %v3826, 0.0
      %v3860 = vadd.f32 %v3858, %v3859
      %v3861 = vsel %vm3259, %v3827, 0.0
      %v3862 = vadd.f32 %v3860, %v3861
      %v3863 = vsel %vm3259, %v3828, 0.0
      %v3864 = vadd.f32 %v3862, %v3863
      %v3865 = vsel %vm3259, %v3829, 0.0
      %v3866 = vadd.f32 %v3864, %v3865
      %v3867 = vsel %vm3259, %v3830, 0.0
      %v3868 = vadd.f32 %v3866, %v3867
      %v3869 = vsel %vm3259, %v3831, 0.0
      %v3870 = vadd.f32 %v3868, %v3869
      %v3871 = vsel %vm3259, %v3832, 0.0
      %v3872 = vadd.f32 %v3870, %v3871
      %v3873 = vsel %vm3259, %v3833, 0.0
      %v3874 = vadd.f32 %v3872, %v3873
      %v3875 = vsel %vm3259, %v3834, 0.0
      %v3876 = vadd.f32 %v3874, %v3875
      %v3877 = vsel %vm3259, %v3835, 0.0
      %v3878 = vadd.f32 %v3876, %v3877
      %v3879 = vsel %vm3259, %v3836, 0.0
      %v3880 = vadd.f32 %v3878, %v3879
      %v3881 = vsel %vm3259, %v3837, 0.0
      %v3882 = vadd.f32 %v3880, %v3881
      %v3883 = vsel %vm3259, %v3838, 0.0
      %v3884 = vadd.f32 %v3882, %v3883
      %v3885 = vsel %vm3259, %v3839, 0.0
      %v3886 = vadd.f32 %v3884, %v3885
      %v3887 = vsel %vm3259, %v3840, 0.0
      %v3888 = vadd.f32 %v3886, %v3887
      %v3889 = vsel %vm3259, %v3841, 0.0
      %v3890 = vadd.f32 %v3888, %v3889
      %v3891 = vsel %vm3259, %v3842, 0.0
      %v3892 = vadd.f32 %v3890, %v3891
      %v3893 = vsel %vm3259, %v3843, 0.0
      %v3894 = vadd.f32 %v3892, %v3893
      %v3895 = vsel %vm3259, %v3844, 0.0
      %v3896 = vadd.f32 %v3894, %v3895
      %v3897 = vsel %vm3259, %v3845, 0.0
      %v3898 = vadd.f32 %v3896, %v3897
      %v3899 = vsel %vm3259, %v3846, 0.0
      %v3900 = vadd.f32 %v3898, %v3899
      %v3901 = vsel %vm3259, %v3847, 0.0
      %v3902 = vadd.f32 %v3900, %v3901
      %v3903 = vsel %vm3259, %v3848, 0.0
      %v3904 = vadd.f32 %v3902, %v3903
      %v3905 = vsel %vm3259, %v3849, 0.0
      %v3906 = vadd.f32 %v3904, %v3905
      %v3907 = vsel %vm3259, %v3850, 0.0
      %v3908 = vadd.f32 %v3906, %v3907
      %v3909 = vsel %vm3259, %v3851, 0.0
      %v3910 = vadd.f32 %v3908, %v3909
      %v3911 = vsel %vm3259, %v3852, 0.0
      %v3912 = vadd.f32 %v3910, %v3911
      %v3913 = vsel %vm3259, %v3853, 0.0
      %v3914 = vadd.f32 %v3912, %v3913
      %v3915 = vsel %vm3259, %v3854, 0.0
      %v3916 = vadd.f32 %v3914, %v3915
      %v3917 = vsel %vm3259, %v3855, 0.0
      %v3918 = vadd.f32 %v3916, %v3917
      %v3919 = vrot.slane %v3918, 4
      %v3920 = vadd.f32 %v3918, %v3919
      %v3921 = vrot.slane %v3920, 2
      %v3922 = vadd.f32 %v3920, %v3921
      %v3923 = vrot.slane %v3922, 1
      %v3924 = vadd.f32 %v3922, %v3923
      %3925 = vst.msk [vmem:[%s305 + $0x3] sm:$0x1] %vm3650, %v3924
      %v3926 = vmul.f32 %v504, %v3423
      %v3927 = vmul.f32 %v509, %v3428
      %v3928 = vmul.f32 %v514, %v3433
      %v3929 = vmul.f32 %v519, %v3438
      %v3930 = vmul.f32 %v524, %v3443
      %v3931 = vmul.f32 %v529, %v3448
      %v3932 = vmul.f32 %v534, %v3453
      %v3933 = vmul.f32 %v539, %v3458
      %v3934 = vmul.f32 %v544, %v3463
      %v3935 = vmul.f32 %v549, %v3468
      %v3936 = vmul.f32 %v554, %v3473
      %v3937 = vmul.f32 %v559, %v3478
      %v3938 = vmul.f32 %v564, %v3483
      %v3939 = vmul.f32 %v569, %v3488
      %v3940 = vmul.f32 %v574, %v3493
      %v3941 = vmul.f32 %v579, %v3498
      %v3942 = vmul.f32 %v584, %v3503
      %v3943 = vmul.f32 %v589, %v3508
      %v3944 = vmul.f32 %v594, %v3513
      %v3945 = vmul.f32 %v599, %v3518
      %v3946 = vmul.f32 %v604, %v3523
      %v3947 = vmul.f32 %v609, %v3528
      %v3948 = vmul.f32 %v614, %v3533
      %v3949 = vmul.f32 %v619, %v3538
      %v3950 = vmul.f32 %v624, %v3543
      %v3951 = vmul.f32 %v629, %v3548
      %v3952 = vmul.f32 %v634, %v3553
      %v3953 = vmul.f32 %v639, %v3558
      %v3954 = vmul.f32 %v644, %v3563
      %v3955 = vmul.f32 %v649, %v3568
      %v3956 = vmul.f32 %v654, %v3573
      %v3957 = vmul.f32 %v659, %v3578
      %v3958 = vsel %vm3259, %v3926, 0.0
      %v3959 = vsel %vm3259, %v3927, 0.0
      %v3960 = vadd.f32 %v3958, %v3959
      %v3961 = vsel %vm3259, %v3928, 0.0
      %v3962 = vadd.f32 %v3960, %v3961
      %v3963 = vsel %vm3259, %v3929, 0.0
      %v3964 = vadd.f32 %v3962, %v3963
      %v3965 = vsel %vm3259, %v3930, 0.0
      %v3966 = vadd.f32 %v3964, %v3965
      %v3967 = vsel %vm3259, %v3931, 0.0
      %v3968 = vadd.f32 %v3966, %v3967
      %v3969 = vsel %vm3259, %v3932, 0.0
      %v3970 = vadd.f32 %v3968, %v3969
      %v3971 = vsel %vm3259, %v3933, 0.0
      %v3972 = vadd.f32 %v3970, %v3971
      %v3973 = vsel %vm3259, %v3934, 0.0
      %v3974 = vadd.f32 %v3972, %v3973
      %v3975 = vsel %vm3259, %v3935, 0.0
      %v3976 = vadd.f32 %v3974, %v3975
      %v3977 = vsel %vm3259, %v3936, 0.0
      %v3978 = vadd.f32 %v3976, %v3977
      %v3979 = vsel %vm3259, %v3937, 0.0
      %v3980 = vadd.f32 %v3978, %v3979
      %v3981 = vsel %vm3259, %v3938, 0.0
      %v3982 = vadd.f32 %v3980, %v3981
      %v3983 = vsel %vm3259, %v3939, 0.0
      %v3984 = vadd.f32 %v3982, %v3983
      %v3985 = vsel %vm3259, %v3940, 0.0
      %v3986 = vadd.f32 %v3984, %v3985
      %v3987 = vsel %vm3259, %v3941, 0.0
      %v3988 = vadd.f32 %v3986, %v3987
      %v3989 = vsel %vm3259, %v3942, 0.0
      %v3990 = vadd.f32 %v3988, %v3989
      %v3991 = vsel %vm3259, %v3943, 0.0
      %v3992 = vadd.f32 %v3990, %v3991
      %v3993 = vsel %vm3259, %v3944, 0.0
      %v3994 = vadd.f32 %v3992, %v3993
      %v3995 = vsel %vm3259, %v3945, 0.0
      %v3996 = vadd.f32 %v3994, %v3995
      %v3997 = vsel %vm3259, %v3946, 0.0
      %v3998 = vadd.f32 %v3996, %v3997
      %v3999 = vsel %vm3259, %v3947, 0.0
      %v4000 = vadd.f32 %v3998, %v3999
      %v4001 = vsel %vm3259, %v3948, 0.0
      %v4002 = vadd.f32 %v4000, %v4001
      %v4003 = vsel %vm3259, %v3949, 0.0
      %v4004 = vadd.f32 %v4002, %v4003
      %v4005 = vsel %vm3259, %v3950, 0.0
      %v4006 = vadd.f32 %v4004, %v4005
      %v4007 = vsel %vm3259, %v3951, 0.0
      %v4008 = vadd.f32 %v4006, %v4007
      %v4009 = vsel %vm3259, %v3952, 0.0
      %v4010 = vadd.f32 %v4008, %v4009
      %v4011 = vsel %vm3259, %v3953, 0.0
      %v4012 = vadd.f32 %v4010, %v4011
      %v4013 = vsel %vm3259, %v3954, 0.0
      %v4014 = vadd.f32 %v4012, %v4013
      %v4015 = vsel %vm3259, %v3955, 0.0
      %v4016 = vadd.f32 %v4014, %v4015
      %v4017 = vsel %vm3259, %v3956, 0.0
      %v4018 = vadd.f32 %v4016, %v4017
      %v4019 = vsel %vm3259, %v3957, 0.0
      %v4020 = vadd.f32 %v4018, %v4019
      %v4021 = vrot.slane %v4020, 4
      %v4022 = vadd.f32 %v4020, %v4021
      %v4023 = vrot.slane %v4022, 2
      %v4024 = vadd.f32 %v4022, %v4023
      %v4025 = vrot.slane %v4024, 1
      %v4026 = vadd.f32 %v4024, %v4025
      %4027 = vst.msk [vmem:[%s305 + $0x4] sm:$0x1] %vm3650, %v4026
      %p4028 = scmp.lt.s32.totalorder %s19, 1
      %s4029 = scalar_select %p4028, %s19, 1
      %s4030 = smul.addr %s4029, 8
      %s4031 = scalar_lea.vmem %s8, %s4030
      // Predicated region
      $region53: #{tpu_custom_call.1} parent=51 // pred_check
        %p4032 = pneg %p210
      $region54: #{tpu_custom_call.1} parent=51 // pred_check_branch
        %4034 = sbr.rel (%p4032) target = $region56
      $region55: #{tpu_custom_call.1} parent=51 // pred_region
        _
      $region56: #{tpu_custom_call.1} parent=51 // pred_fallthru
        _
    $region52: #{tpu_custom_call.1} parent=5 // pred_fallthru
      _
    %p4035 = scmp.le.s32.totalorder 2, %s14
    // Predicated region
    $region57: #{tpu_custom_call.1} parent=5 // pred_check
      %p4036 = pneg %p4035
    $region58: #{tpu_custom_call.1} parent=5 // pred_check_branch
      %4038 = sbr.rel (%p4036) target = $region60
    $region59: #{tpu_custom_call.1} parent=5 // pred_region
      %s4039 = ssub.s32 %s14, 2
      // Predicated region
      $region61: #{tpu_custom_call.1} parent=59 // pred_check
        %p4040 = pneg %p216
      $region62: #{tpu_custom_call.1} parent=59 // pred_check_branch
        %4042 = sbr.rel (%p4040) target = $region64
      $region63: #{tpu_custom_call.1} parent=59 // pred_region
        %p4043 = scmp.lt.s32.totalorder %s20, 1
        %s4044 = scalar_select %p4043, %s20, 1
        %s4045 = smul.addr %s4044, 8
        %s4046 = scalar_lea.vmem %s8, %s4045
      $region64: #{tpu_custom_call.1} parent=59 // pred_fallthru
        _
    $region60: #{tpu_custom_call.1} parent=5 // pred_fallthru
      _
  $region6: #{tpu_custom_call.1} parent=0 // loop_footer
    %s18 = sadd.s32 1, %s14
  $region7: #{tpu_custom_call.1} parent=0 // loop_footer_branch
    %13 = sbr.rel target = $region3
  $region8: #{tpu_custom_call.1} parent=0 // loop_exit
    _

</llo_original>
